<compile_context>
chip_gen: v7x
topology: tpu7x:2x2x1
jax: 0.10.0
libtpu: 0.0.40
codegen_flags: <defaults>
</compile_context>

<pallas_src>
import jax
import jax.numpy as jnp
from jax.experimental import pallas as pl
from jax.experimental.pallas import tpu as pltpu

MAX_LEN = 10           # self.max_length
EMB = 512              # self.emb (LSTM input size)
LSTM_HIDDEN = 256      # nn.LSTM(512, 256)
FEAT = 128             # hand_emb(64) + action_emb(63) + betsize(1)
PAD_ROWS = 16          # history rows padded to a sublane-aligned 16
PAD_OUT = 128          # fc3 output padded to one lane tile; real outputs in [:nC]

MAPPING = {'state': {'rank': 0, 'previous_action': 1, 'previous_betsize': 2}}


# ----------------------------- Pallas kernel --------------------------------
def _actor_kernel(mlen_ref, feats_ref, mask_ref, pw_ref, pb_ref, wih_ref, bias_ref,
                  wfc3_ref, bfc3_ref, probs_ref, flat_ref):
    """Per grid step (one actor state):
       mlen_ref : (B,) int32 SMEM   number of real history rows (<= 10)
       feats_ref: (1,16,128) f32    embedded history features, rows >= M are zero
       mask_ref : (1,1,128)  f32    combined action/betsize mask (lane-padded)
       pw_ref   : (128,512)  bf16   PreProcessHistory projection weight
       pb_ref   : (1,512)    f32    projection bias
       wih_ref  : (512,768)  bf16   LSTM W_ih, gates packed [i|g|o] (f-gate dropped)
       bias_ref : (1,768)    f32    b_ih + b_hh, gates [i|g|o]
       wfc3_ref : (2560,128) bf16   fc3 weight^T, lane-padded to 128
       bfc3_ref : (1,128)    f32    fc3 bias, padded lanes = -1e9
       probs_ref: (1,1,128)  f32    OUT masked, renormalised action probabilities
       flat_ref : (1,2560)   f32    scratch: row-major flatten of the 10 LSTM outputs
    """
    sig = lambda z: 0.5 * (jnp.tanh(0.5 * z) + 1.0)     # sigmoid via EUP tanh

    m = mlen_ref[pl.program_id(0)]
    rowmask = (jax.lax.broadcasted_iota(jnp.int32, (PAD_ROWS, 1), 0) < m
               ).astype(jnp.float32)                                   # (16, 1)

    # --- PreProcessHistory projection: Linear(128, 512); padded rows forced to exact
    #     zero so the LSTM sees the same zero-padded input as torch.cat((out, zeros)).
    h = jnp.dot(feats_ref[0].astype(jnp.bfloat16), pw_ref[...],
                preferred_element_type=jnp.float32)
    h = (h + pb_ref[...]) * rowmask                                    # (16, 512)

    # --- nn.LSTM(512, 256): seq_len == 1, batch == 10, h0 = c0 = 0, so W_hh @ h0 == 0
    #     and the f-gate (multiplied by c0 == 0) is dropped entirely.
    #     NOTE: only valid for zero initial cell state; restore f-gate if c0 != 0.
    gates = jnp.dot(h.astype(jnp.bfloat16), wih_ref[...],
                    preferred_element_type=jnp.float32) + bias_ref[...]  # (16, 768)
    i = sig(gates[:, 0:LSTM_HIDDEN])
    g = jnp.tanh(gates[:, LSTM_HIDDEN:2 * LSTM_HIDDEN])
    o = sig(gates[:, 2 * LSTM_HIDDEN:3 * LSTM_HIDDEN])
    hidden = o * jnp.tanh(i * g)                                       # (16, 256)

    # --- fc3(x.view(-1)): pack the 10 real rows row-major into (1, 2560), then a
    #     single K=2560 MXU contraction instead of ten M=1 matmuls.
    for t in range(MAX_LEN):
        flat_ref[0:1, t * LSTM_HIDDEN:(t + 1) * LSTM_HIDDEN] = hidden[t:t + 1, :]
    logits = jnp.dot(flat_ref[...].astype(jnp.bfloat16), wfc3_ref[...],
                     preferred_element_type=jnp.float32) + bfc3_ref[...]  # (1, 128)

    # --- softmax + norm_frequencies (softmax Z cancels under the masked renorm)
    mx = jnp.max(logits, axis=-1, keepdims=True)
    e = jnp.exp(logits - mx) * mask_ref[0]
    probs_ref[0] = e * pl.reciprocal(jnp.sum(e, axis=-1, keepdims=True), approx=True)


def _actor_probs(mlen_b, feats_b, mask_b, params):
    """Batched probs: mlen_b (B,) int32, feats_b (B,16,128) f32, mask_b (B,1,128) f32
       -> (B,1,128) f32.  Weights are fetched once and amortized over the B grid steps."""
    B = feats_b.shape[0]
    wmap = lambda b: (0, 0)                              # resident weights: same block every step
    return pl.pallas_call(
        _actor_kernel,
        out_shape=jax.ShapeDtypeStruct((B, 1, PAD_OUT), jnp.float32),
        grid=(B,),
        in_specs=[
            pl.BlockSpec(memory_space=pltpu.MemorySpace.SMEM),         # mlen (B,)
            pl.BlockSpec((1, PAD_ROWS, FEAT), lambda b: (b, 0, 0)),    # feats
            pl.BlockSpec((1, 1, PAD_OUT), lambda b: (b, 0, 0)),        # mask
            pl.BlockSpec((FEAT, EMB), wmap),                           # proj W   (bf16)
            pl.BlockSpec((1, EMB), wmap),                              # proj b
            pl.BlockSpec((EMB, 3 * LSTM_HIDDEN), wmap),                # W_ih [i|g|o] (bf16)
            pl.BlockSpec((1, 3 * LSTM_HIDDEN), wmap),                  # bias [i|g|o]
            pl.BlockSpec((MAX_LEN * LSTM_HIDDEN, PAD_OUT), wmap),      # fc3 W^T (bf16)
            pl.BlockSpec((1, PAD_OUT), wmap),                          # fc3 bias (padded)
        ],
        out_specs=pl.BlockSpec((1, 1, PAD_OUT), lambda b: (b, 0, 0)),
        scratch_shapes=[pltpu.VMEM((1, MAX_LEN * LSTM_HIDDEN), jnp.float32)],
        compiler_params=pltpu.CompilerParams(dimension_semantics=("parallel",)),
    )(mlen_b, feats_b, mask_b,
      params['k_proj_w'], params['k_proj_b'], params['k_w_ih'], params['k_bias'],
      params['k_wfc3'], params['k_bfc3'])


# ----------------------------- parameters ------------------------------------
def pack_kernel_params(raw, nC):
    """One-time weight preprocessing (hoisted out of forward())."""
    H = LSTM_HIDDEN
    igo = lambda a: jnp.concatenate(                      # drop f-gate (c0 == 0)
        [a[..., 0:H], a[..., 2 * H:3 * H], a[..., 3 * H:4 * H]], axis=-1)
    wfc3 = jnp.zeros((MAX_LEN * H, PAD_OUT), jnp.float32).at[:, :nC].set(raw['fc3_w'].T)
    bfc3 = jnp.full((1, PAD_OUT), -1e9, jnp.float32).at[0, :nC].set(raw['fc3_b'])
    return {
        'k_proj_w': raw['proj_w'].astype(jnp.bfloat16),                 # (128, 512)
        'k_proj_b': raw['proj_b'].reshape(1, EMB),                      # (1, 512)
        'k_w_ih': igo(raw['w_ih']).astype(jnp.bfloat16),                # (512, 768)
        'k_bias': igo(raw['b_ih'] + raw['b_hh']).reshape(1, 3 * H),     # (1, 768)
        'k_wfc3': wfc3.astype(jnp.bfloat16),                            # (2560, 128)
        'k_bfc3': bfc3,                                                 # (1, 128)
    }


def init_params(key, nA, nB):
    nC = nA - 2 + nB
    ks = jax.random.split(key, 10)
    nrm = lambda k, shp, s=0.05: s * jax.random.normal(k, shp, dtype=jnp.float32)
    raw = {
        # TODO(synk): PreProcessHistory source is not in the given snippet; it is
        # reconstructed as hand_emb(5,64) + action_emb(6,63) + betsize scalar -> Linear(128,512).
        'hand_emb': nrm(ks[0], (5, 64)),
        'action_emb': nrm(ks[1], (6, 63)),
        'proj_w': nrm(ks[2], (FEAT, EMB)),
        'proj_b': nrm(ks[3], (EMB,)),
        # nn.LSTM(512, 256) — PyTorch gate order (i, f, g, o) along the 4H axis
        'w_ih': nrm(ks[4], (EMB, 4 * LSTM_HIDDEN)),
        'w_hh': nrm(ks[5], (LSTM_HIDDEN, 4 * LSTM_HIDDEN)),  # multiplies h0==0; unused
        'b_ih': nrm(ks[6], (4 * LSTM_HIDDEN,)),
        'b_hh': nrm(ks[7], (4 * LSTM_HIDDEN,)),
        # fc3 = nn.Linear(2560, combined_output)  (fc1/fc2/positional_emb unused in forward)
        'fc3_w': nrm(ks[8], (nC, MAX_LEN * LSTM_HIDDEN)),
        'fc3_b': nrm(ks[9], (nC,)),
    }
    raw.update(pack_kernel_params(raw, nC))
    return raw


# ----------------------------- glue / forward --------------------------------
def pack_mask(action_mask, betsize_mask, nC):
    # combined_masks: cat(action_mask[:-2], betsize_mask)   (1-D case)
    mask = jnp.concatenate([action_mask[:-2], betsize_mask], axis=-1).astype(jnp.float32)
    return jnp.zeros((1, PAD_OUT), jnp.float32).at[0, :nC].set(mask)


def preprocess_state(params, state):
    """Embedding gathers + zero-pad the per-row feature matrix to (16, 128)."""
    M = state.shape[0]
    rank = state[:, MAPPING['state']['rank']].astype(jnp.int32)
    prev_act = state[:, MAPPING['state']['previous_action']].astype(jnp.int32)
    pb_col = MAPPING['state']['previous_betsize']
    prev_bet = state[:, pb_col:pb_col + 1].astype(jnp.float32)
    feats = jnp.concatenate([params['hand_emb'][rank],
                             params['action_emb'][prev_act], prev_bet], axis=-1)  # (M, 128)
    return jnp.zeros((PAD_ROWS, FEAT), jnp.float32).at[:M].set(feats), M


def unwrap_action(action, last_action, nA, nB):
    # TODO(synk): NetworkFunctions.unwrap_action source not provided; reconstructed:
    # flat actions [0, nA-3] map directly, remaining nB entries are betsizes whose
    # action_category is bet(3) if game is unopened (prev in {0, 5}) else raise(4).
    is_direct = action < (nA - 2)
    betsize_category = jnp.where(is_direct, 0, action - (nA - 2))
    prev_aggro = jnp.logical_and(last_action != 5, last_action != 0)
    action_category = jnp.where(is_direct, action, jnp.where(prev_aggro, 4, 3))
    return action_category, betsize_category


def forward(params, state, action_mask, betsize_mask, nA, nB, sample_key):
    nC = nA - 2 + nB
    mask_pad = pack_mask(action_mask, betsize_mask, nC)           # (1, 128)
    feats_pad, M = preprocess_state(params, state)                # (16, 128)

    probs_pad = _actor_probs(jnp.array([M], jnp.int32), feats_pad[None],
                             mask_pad[None], params)              # (1, 1, 128)
    action_probs = probs_pad[0, 0, :nC]

    # TODO(synk): GaussianNoise is training-mode-only additive noise; eval-mode
    # (identity) semantics are used here for determinism.
    # Categorical sampling / log_prob kept in JAX glue (not a kernel hot path).
    action = jax.random.categorical(sample_key, jnp.log(action_probs))
    log_prob = jnp.log(action_probs[action])

    last_action = state[M - 1, MAPPING['state']['previous_action']].astype(jnp.int32)
    action_category, betsize_category = unwrap_action(action, last_action, nA, nB)

    return {'action': action,
            'action_category': action_category,
            'action_prob': log_prob,
            'action_probs': action_probs,
            'betsize': betsize_category}


# --------------------------------- main ---------------------------------------
if __name__ == "__main__":
    key = jax.random.PRNGKey(0)
    nS, nA, nB = 3, 5, 2                       # combined_output = nA - 2 + nB = 5
    nC = nA - 2 + nB
    pkey, skey, dkey = jax.random.split(key, 3)
    params = init_params(pkey, nA, nB)

    M = 4                                      # number of prior history steps (<= 10)
    k1, k2, k3 = jax.random.split(dkey, 3)
    rank = jax.random.randint(k1, (M, 1), 0, 5).astype(jnp.float32)
    prev_act = jax.random.randint(k2, (M, 1), 0, 6).astype(jnp.float32)
    prev_bet = jax.random.uniform(k3, (M, 1), dtype=jnp.float32)
    state = jnp.concatenate([rank, prev_act, prev_bet], axis=-1)   # (M, nS)

    action_mask = jnp.array([1.0, 1.0, 0.0, 1.0, 1.0], jnp.float32)   # (nA,)
    betsize_mask = jnp.array([1.0, 1.0], jnp.float32)                 # (nB,)

    # ---- single-state (module-equivalent) path ----
    outputs = forward(params, state, action_mask, betsize_mask, nA, nB, skey)
    outputs = jax.tree_util.tree_map(jax.block_until_ready, outputs)
    probs = outputs['action_probs']
    assert probs.shape == (nC,)
    assert bool(jnp.isfinite(probs).all()) and abs(float(probs.sum()) - 1.0) < 5e-3

    # ---- batched path: B states per pallas_call (weights amortized, parallel grid) ----
    B = 3
    states = [state, state[:2], state[:1]]
    fps, ms = zip(*(preprocess_state(params, s) for s in states))
    feats_b = jnp.stack(fps)                              # (B, 16, 128)
    mlen_b = jnp.array(ms, jnp.int32)                     # (B,)
    mask_b = jnp.broadcast_to(pack_mask(action_mask, betsize_mask, nC)[None],
                              (B, 1, PAD_OUT))
    probs_b = jax.block_until_ready(_actor_probs(mlen_b, feats_b, mask_b, params))
    sums = probs_b[:, 0, :nC].sum(-1)
    assert bool(jnp.isfinite(probs_b).all())
    assert bool(jnp.all(jnp.abs(sums - 1.0) < 5e-3))
    assert bool(jnp.allclose(probs_b[0, 0, :nC], probs, atol=1e-5))

    print("KERNEL_OK")
</pallas_src>

<mosaic_0001>
module attributes {stable_mosaic.version = 11 : i64} {
  func.func @_actor_kernel(%arg0: i32, %arg1: memref<1xi32, #tpu.memory_space<smem>>, %arg2: memref<1x16x128xf32, #tpu.memory_space<vmem>>, %arg3: memref<1x1x128xf32, #tpu.memory_space<vmem>>, %arg4: memref<128x512xbf16, #tpu.memory_space<vmem>>, %arg5: memref<1x512xf32, #tpu.memory_space<vmem>>, %arg6: memref<512x768xbf16, #tpu.memory_space<vmem>>, %arg7: memref<1x768xf32, #tpu.memory_space<vmem>>, %arg8: memref<2560x128xbf16, #tpu.memory_space<vmem>>, %arg9: memref<1x128xf32, #tpu.memory_space<vmem>>, %arg10: memref<1x1x128xf32, #tpu.memory_space<vmem>>, %arg11: memref<1x2560xf32, #tpu.memory_space<vmem>>) attributes {dimension_semantics = [#tpu.dimension_semantics<parallel>], iteration_bounds = array<i64: 1>, scalar_prefetch = 0 : i64, scratch_operands = 1 : i64, tpu.core_type = #tpu.core_type<tc>, window_params = [{transform_indices = @transform_0, window_bounds = array<i64: 1>}, {transform_indices = @transform_1, window_bounds = array<i64: 1, 16, 128>}, {transform_indices = @transform_2, window_bounds = array<i64: 1, 1, 128>}, {pipeline_mode = #tpu.pipeline_mode<synchronous>, transform_indices = @transform_3, window_bounds = array<i64: 128, 512>}, {pipeline_mode = #tpu.pipeline_mode<synchronous>, transform_indices = @transform_4, window_bounds = array<i64: 1, 512>}, {pipeline_mode = #tpu.pipeline_mode<synchronous>, transform_indices = @transform_5, window_bounds = array<i64: 512, 768>}, {pipeline_mode = #tpu.pipeline_mode<synchronous>, transform_indices = @transform_6, window_bounds = array<i64: 1, 768>}, {pipeline_mode = #tpu.pipeline_mode<synchronous>, transform_indices = @transform_7, window_bounds = array<i64: 2560, 128>}, {pipeline_mode = #tpu.pipeline_mode<synchronous>, transform_indices = @transform_8, window_bounds = array<i64: 1, 128>}, {transform_indices = @transform_9, window_bounds = array<i64: 1, 1, 128>}]} {
    %0 = arith.index_cast %arg0 : i32 to index
    %1 = memref.load %arg1[%0] : memref<1xi32, #tpu.memory_space<smem>>
    %2 = tpu.iota {dimensions = array<i32: 0>} : vector<16x1xi32>
    %3 = vector.broadcast %1 : i32 to vector<16x1xi32>
    %4 = arith.cmpi slt, %2, %3 : vector<16x1xi32>
    %5 = arith.extui %4 : vector<16x1xi1> to vector<16x1xi32>
    %6 = arith.sitofp %5 : vector<16x1xi32> to vector<16x1xf32>
    %c0 = arith.constant 0 : index
    %c0_0 = arith.constant 0 : index
    %c0_1 = arith.constant 0 : index
    %7 = vector.load %arg2[%c0, %c0_0, %c0_1] : memref<1x16x128xf32, #tpu.memory_space<vmem>>, vector<1x16x128xf32>
    %8 = vector.shape_cast %7 : vector<1x16x128xf32> to vector<16x128xf32>
    %9 = arith.truncf %8 : vector<16x128xf32> to vector<16x128xbf16>
    %c0_2 = arith.constant 0 : index
    %c0_3 = arith.constant 0 : index
    %10 = vector.load %arg4[%c0_2, %c0_3] : memref<128x512xbf16, #tpu.memory_space<vmem>>, vector<128x512xbf16>
    %cst = arith.constant dense<0.000000e+00> : vector<16x512xf32>
    %11 = tpu.matmul %9, %10, %cst {dimension_numbers = #tpu.dot_dimension_numbers<[1], [0], [0], [1], [0, 0, 1, 1], [], []>} : vector<16x128xbf16>, vector<128x512xbf16>, vector<16x512xf32> -> vector<16x512xf32>
    %c0_4 = arith.constant 0 : index
    %c0_5 = arith.constant 0 : index
    %12 = vector.load %arg5[%c0_4, %c0_5] : memref<1x512xf32, #tpu.memory_space<vmem>>, vector<1x512xf32>
    %13 = vector.broadcast %12 : vector<1x512xf32> to vector<16x512xf32>
    %14 = arith.addf %11, %13 : vector<16x512xf32>
    %15 = vector.broadcast %6 : vector<16x1xf32> to vector<16x512xf32>
    %16 = arith.mulf %14, %15 : vector<16x512xf32>
    %17 = arith.truncf %16 : vector<16x512xf32> to vector<16x512xbf16>
    %c0_6 = arith.constant 0 : index
    %c0_7 = arith.constant 0 : index
    %18 = vector.load %arg6[%c0_6, %c0_7] : memref<512x768xbf16, #tpu.memory_space<vmem>>, vector<512x768xbf16>
    %cst_8 = arith.constant dense<0.000000e+00> : vector<16x768xf32>
    %19 = tpu.matmul %17, %18, %cst_8 {dimension_numbers = #tpu.dot_dimension_numbers<[1], [0], [0], [1], [0, 0, 1, 1], [], []>} : vector<16x512xbf16>, vector<512x768xbf16>, vector<16x768xf32> -> vector<16x768xf32>
    %c0_9 = arith.constant 0 : index
    %c0_10 = arith.constant 0 : index
    %20 = vector.load %arg7[%c0_9, %c0_10] : memref<1x768xf32, #tpu.memory_space<vmem>>, vector<1x768xf32>
    %21 = vector.broadcast %20 : vector<1x768xf32> to vector<16x768xf32>
    %22 = arith.addf %19, %21 : vector<16x768xf32>
    %23 = vector.extract_strided_slice %22 {offsets = [0, 0], sizes = [16, 256], strides = [1, 1]} : vector<16x768xf32> to vector<16x256xf32>
    %cst_11 = arith.constant 5.000000e-01 : f32
    %24 = vector.broadcast %cst_11 : f32 to vector<16x256xf32>
    %25 = arith.mulf %24, %23 : vector<16x256xf32>
    %26 = math.tanh %25 : vector<16x256xf32>
    %cst_12 = arith.constant 1.000000e+00 : f32
    %27 = vector.broadcast %cst_12 : f32 to vector<16x256xf32>
    %28 = arith.addf %26, %27 : vector<16x256xf32>
    %cst_13 = arith.constant 5.000000e-01 : f32
    %29 = vector.broadcast %cst_13 : f32 to vector<16x256xf32>
    %30 = arith.mulf %29, %28 : vector<16x256xf32>
    %31 = vector.extract_strided_slice %22 {offsets = [0, 256], sizes = [16, 256], strides = [1, 1]} : vector<16x768xf32> to vector<16x256xf32>
    %32 = math.tanh %31 : vector<16x256xf32>
    %33 = vector.extract_strided_slice %22 {offsets = [0, 512], sizes = [16, 256], strides = [1, 1]} : vector<16x768xf32> to vector<16x256xf32>
    %cst_14 = arith.constant 5.000000e-01 : f32
    %34 = vector.broadcast %cst_14 : f32 to vector<16x256xf32>
    %35 = arith.mulf %34, %33 : vector<16x256xf32>
    %36 = math.tanh %35 : vector<16x256xf32>
    %cst_15 = arith.constant 1.000000e+00 : f32
    %37 = vector.broadcast %cst_15 : f32 to vector<16x256xf32>
    %38 = arith.addf %36, %37 : vector<16x256xf32>
    %cst_16 = arith.constant 5.000000e-01 : f32
    %39 = vector.broadcast %cst_16 : f32 to vector<16x256xf32>
    %40 = arith.mulf %39, %38 : vector<16x256xf32>
    %41 = arith.mulf %30, %32 : vector<16x256xf32>
    %42 = math.tanh %41 : vector<16x256xf32>
    %43 = arith.mulf %40, %42 : vector<16x256xf32>
    %44 = vector.extract_strided_slice %43 {offsets = [0, 0], sizes = [1, 256], strides = [1, 1]} : vector<16x256xf32> to vector<1x256xf32>
    %c0_17 = arith.constant 0 : index
    %c0_18 = arith.constant 0 : index
    %45 = vector.load %arg11[%c0_17, %c0_18] : memref<1x2560xf32, #tpu.memory_space<vmem>>, vector<1x256xf32>
    tpu.vector_store %arg11[%c0_17, %c0_18], %44 {strides = array<i32>} : memref<1x2560xf32, #tpu.memory_space<vmem>>, vector<1x256xf32>,
    %46 = vector.extract_strided_slice %43 {offsets = [1, 0], sizes = [1, 256], strides = [1, 1]} : vector<16x256xf32> to vector<1x256xf32>
    %c0_19 = arith.constant 0 : index
    %c256 = arith.constant 256 : index
    %47 = vector.load %arg11[%c0_19, %c256] : memref<1x2560xf32, #tpu.memory_space<vmem>>, vector<1x256xf32>
    tpu.vector_store %arg11[%c0_19, %c256], %46 {strides = array<i32>} : memref<1x2560xf32, #tpu.memory_space<vmem>>, vector<1x256xf32>,
    %48 = vector.extract_strided_slice %43 {offsets = [2, 0], sizes = [1, 256], strides = [1, 1]} : vector<16x256xf32> to vector<1x256xf32>
    %c0_20 = arith.constant 0 : index
    %c512 = arith.constant 512 : index
    %49 = vector.load %arg11[%c0_20, %c512] : memref<1x2560xf32, #tpu.memory_space<vmem>>, vector<1x256xf32>
    tpu.vector_store %arg11[%c0_20, %c512], %48 {strides = array<i32>} : memref<1x2560xf32, #tpu.memory_space<vmem>>, vector<1x256xf32>,
    %50 = vector.extract_strided_slice %43 {offsets = [3, 0], sizes = [1, 256], strides = [1, 1]} : vector<16x256xf32> to vector<1x256xf32>
    %c0_21 = arith.constant 0 : index
    %c768 = arith.constant 768 : index
    %51 = vector.load %arg11[%c0_21, %c768] : memref<1x2560xf32, #tpu.memory_space<vmem>>, vector<1x256xf32>
    tpu.vector_store %arg11[%c0_21, %c768], %50 {strides = array<i32>} : memref<1x2560xf32, #tpu.memory_space<vmem>>, vector<1x256xf32>,
    %52 = vector.extract_strided_slice %43 {offsets = [4, 0], sizes = [1, 256], strides = [1, 1]} : vector<16x256xf32> to vector<1x256xf32>
    %c0_22 = arith.constant 0 : index
    %c1024 = arith.constant 1024 : index
    %53 = vector.load %arg11[%c0_22, %c1024] : memref<1x2560xf32, #tpu.memory_space<vmem>>, vector<1x256xf32>
    tpu.vector_store %arg11[%c0_22, %c1024], %52 {strides = array<i32>} : memref<1x2560xf32, #tpu.memory_space<vmem>>, vector<1x256xf32>,
    %54 = vector.extract_strided_slice %43 {offsets = [5, 0], sizes = [1, 256], strides = [1, 1]} : vector<16x256xf32> to vector<1x256xf32>
    %c0_23 = arith.constant 0 : index
    %c1280 = arith.constant 1280 : index
    %55 = vector.load %arg11[%c0_23, %c1280] : memref<1x2560xf32, #tpu.memory_space<vmem>>, vector<1x256xf32>
    tpu.vector_store %arg11[%c0_23, %c1280], %54 {strides = array<i32>} : memref<1x2560xf32, #tpu.memory_space<vmem>>, vector<1x256xf32>,
    %56 = vector.extract_strided_slice %43 {offsets = [6, 0], sizes = [1, 256], strides = [1, 1]} : vector<16x256xf32> to vector<1x256xf32>
    %c0_24 = arith.constant 0 : index
    %c1536 = arith.constant 1536 : index
    %57 = vector.load %arg11[%c0_24, %c1536] : memref<1x2560xf32, #tpu.memory_space<vmem>>, vector<1x256xf32>
    tpu.vector_store %arg11[%c0_24, %c1536], %56 {strides = array<i32>} : memref<1x2560xf32, #tpu.memory_space<vmem>>, vector<1x256xf32>,
    %58 = vector.extract_strided_slice %43 {offsets = [7, 0], sizes = [1, 256], strides = [1, 1]} : vector<16x256xf32> to vector<1x256xf32>
    %c0_25 = arith.constant 0 : index
    %c1792 = arith.constant 1792 : index
    %59 = vector.load %arg11[%c0_25, %c1792] : memref<1x2560xf32, #tpu.memory_space<vmem>>, vector<1x256xf32>
    tpu.vector_store %arg11[%c0_25, %c1792], %58 {strides = array<i32>} : memref<1x2560xf32, #tpu.memory_space<vmem>>, vector<1x256xf32>,
    %60 = vector.extract_strided_slice %43 {offsets = [8, 0], sizes = [1, 256], strides = [1, 1]} : vector<16x256xf32> to vector<1x256xf32>
    %c0_26 = arith.constant 0 : index
    %c2048 = arith.constant 2048 : index
    %61 = vector.load %arg11[%c0_26, %c2048] : memref<1x2560xf32, #tpu.memory_space<vmem>>, vector<1x256xf32>
    tpu.vector_store %arg11[%c0_26, %c2048], %60 {strides = array<i32>} : memref<1x2560xf32, #tpu.memory_space<vmem>>, vector<1x256xf32>,
    %62 = vector.extract_strided_slice %43 {offsets = [9, 0], sizes = [1, 256], strides = [1, 1]} : vector<16x256xf32> to vector<1x256xf32>
    %c0_27 = arith.constant 0 : index
    %c2304 = arith.constant 2304 : index
    %63 = vector.load %arg11[%c0_27, %c2304] : memref<1x2560xf32, #tpu.memory_space<vmem>>, vector<1x256xf32>
    tpu.vector_store %arg11[%c0_27, %c2304], %62 {strides = array<i32>} : memref<1x2560xf32, #tpu.memory_space<vmem>>, vector<1x256xf32>,
    %c0_28 = arith.constant 0 : index
    %c0_29 = arith.constant 0 : index
    %64 = vector.load %arg11[%c0_28, %c0_29] : memref<1x2560xf32, #tpu.memory_space<vmem>>, vector<1x2560xf32>
    %65 = arith.truncf %64 : vector<1x2560xf32> to vector<1x2560xbf16>
    %c0_30 = arith.constant 0 : index
    %c0_31 = arith.constant 0 : index
    %66 = vector.load %arg8[%c0_30, %c0_31] : memref<2560x128xbf16, #tpu.memory_space<vmem>>, vector<2560x128xbf16>
    %cst_32 = arith.constant dense<0.000000e+00> : vector<1x128xf32>
    %67 = tpu.matmul %65, %66, %cst_32 {dimension_numbers = #tpu.dot_dimension_numbers<[1], [0], [0], [1], [0, 0, 1, 1], [], []>} : vector<1x2560xbf16>, vector<2560x128xbf16>, vector<1x128xf32> -> vector<1x128xf32>
    %c0_33 = arith.constant 0 : index
    %c0_34 = arith.constant 0 : index
    %68 = vector.load %arg9[%c0_33, %c0_34] : memref<1x128xf32, #tpu.memory_space<vmem>>, vector<1x128xf32>
    %69 = arith.addf %67, %68 : vector<1x128xf32>
    %cst_35 = arith.constant dense<0xFF800000> : vector<1xf32>
    %70 = vector.multi_reduction <maximumf>, %69, %cst_35 [1] : vector<1x128xf32> to vector<1xf32>
    %71 = vector.shape_cast %70 : vector<1xf32> to vector<1x1xf32>
    %72 = vector.broadcast %71 : vector<1x1xf32> to vector<1x128xf32>
    %73 = arith.subf %69, %72 : vector<1x128xf32>
    %74 = math.exp %73 : vector<1x128xf32>
    %c0_36 = arith.constant 0 : index
    %c0_37 = arith.constant 0 : index
    %c0_38 = arith.constant 0 : index
    %75 = vector.load %arg3[%c0_36, %c0_37, %c0_38] : memref<1x1x128xf32, #tpu.memory_space<vmem>>, vector<1x1x128xf32>
    %76 = vector.shape_cast %75 : vector<1x1x128xf32> to vector<1x128xf32>
    %77 = arith.mulf %74, %76 : vector<1x128xf32>
    %cst_39 = arith.constant dense<0.000000e+00> : vector<1xf32>
    %78 = vector.multi_reduction <add>, %77, %cst_39 [1] : vector<1x128xf32> to vector<1xf32>
    %79 = vector.shape_cast %78 : vector<1xf32> to vector<1x1xf32>
    %80 = tpu.reciprocal %79 {approx = true} : vector<1x1xf32> -> vector<1x1xf32>
    %81 = vector.broadcast %80 : vector<1x1xf32> to vector<1x128xf32>
    %82 = arith.mulf %77, %81 : vector<1x128xf32>
    %c0_40 = arith.constant 0 : index
    %c0_41 = arith.constant 0 : index
    %c0_42 = arith.constant 0 : index
    %83 = vector.load %arg10[%c0_40, %c0_41, %c0_42] : memref<1x1x128xf32, #tpu.memory_space<vmem>>, vector<1x1x128xf32>
    %84 = vector.shape_cast %83 : vector<1x1x128xf32> to vector<1x128xf32>
    %85 = vector.shape_cast %82 : vector<1x128xf32> to vector<1x1x128xf32>
    tpu.vector_store %arg10[%c0_40, %c0_41, %c0_42], %85 {strides = array<i32>} : memref<1x1x128xf32, #tpu.memory_space<vmem>>, vector<1x1x128xf32>,
    return
  }
  func.func @transform_0(%arg0: i32) -> i32 {
    %c0_i32 = arith.constant 0 : i32
    %c0_i32_0 = arith.constant 0 : i32
    return %c0_i32 : i32
  }
  func.func @transform_1(%arg0: i32) -> (i32, i32, i32) {
    %c0_i32 = arith.constant 0 : i32
    %c0_i32_0 = arith.constant 0 : i32
    %c0_i32_1 = arith.constant 0 : i32
    return %arg0, %c0_i32, %c0_i32_0 : i32, i32, i32
  }
  func.func @transform_2(%arg0: i32) -> (i32, i32, i32) {
    %c0_i32 = arith.constant 0 : i32
    %c0_i32_0 = arith.constant 0 : i32
    %c0_i32_1 = arith.constant 0 : i32
    return %arg0, %c0_i32, %c0_i32_0 : i32, i32, i32
  }
  func.func @transform_3(%arg0: i32) -> (i32, i32) {
    %c0_i32 = arith.constant 0 : i32
    %c0_i32_0 = arith.constant 0 : i32
    %c0_i32_1 = arith.constant 0 : i32
    return %c0_i32, %c0_i32_0 : i32, i32
  }
  func.func @transform_4(%arg0: i32) -> (i32, i32) {
    %c0_i32 = arith.constant 0 : i32
    %c0_i32_0 = arith.constant 0 : i32
    %c0_i32_1 = arith.constant 0 : i32
    return %c0_i32, %c0_i32_0 : i32, i32
  }
  func.func @transform_5(%arg0: i32) -> (i32, i32) {
    %c0_i32 = arith.constant 0 : i32
    %c0_i32_0 = arith.constant 0 : i32
    %c0_i32_1 = arith.constant 0 : i32
    return %c0_i32, %c0_i32_0 : i32, i32
  }
  func.func @transform_6(%arg0: i32) -> (i32, i32) {
    %c0_i32 = arith.constant 0 : i32
    %c0_i32_0 = arith.constant 0 : i32
    %c0_i32_1 = arith.constant 0 : i32
    return %c0_i32, %c0_i32_0 : i32, i32
  }
  func.func @transform_7(%arg0: i32) -> (i32, i32) {
    %c0_i32 = arith.constant 0 : i32
    %c0_i32_0 = arith.constant 0 : i32
    %c0_i32_1 = arith.constant 0 : i32
    return %c0_i32, %c0_i32_0 : i32, i32
  }
  func.func @transform_8(%arg0: i32) -> (i32, i32) {
    %c0_i32 = arith.constant 0 : i32
    %c0_i32_0 = arith.constant 0 : i32
    %c0_i32_1 = arith.constant 0 : i32
    return %c0_i32, %c0_i32_0 : i32, i32
  }
  func.func @transform_9(%arg0: i32) -> (i32, i32, i32) {
    %c0_i32 = arith.constant 0 : i32
    %c0_i32_0 = arith.constant 0 : i32
    %c0_i32_1 = arith.constant 0 : i32
    return %arg0, %c0_i32, %c0_i32_0 : i32, i32, i32
  }
}

</mosaic_0001>

<llo_original>
// kernel: tpu_custom_call.1
$region0: #{tpu_custom_call.1}
  #allocation0 [shape = 'u32[]', space=smem, size = 0x4, offset = 0x4, fixed_abs, tag = 'smem constant byte address 0x4 - core index']
  #allocation1 [shape = 'u32[144,128]{1,0:T(1,128)}', space=vmem, size = 0x12000, scoped, tag = 'internal scratch']
  #allocation2 [shape = 'f32[1,2560]{1,0:T(1,128)}', space=vmem, size = 0x2800, scoped, tag = 'scratch operand']
  #allocation3 [shape = 's32[1]{0:T(128)S(6)}', space=smem, size = 0x200, scoped, tag = 'scoped memory for tpu_custom_call.1']
  %s0 = inlined_call_operand.<no memory space> [shape: s32[1], index: 0, kind: input, shape index: {}]
  %s1 = inlined_call_operand.hbm [shape: f32[1,16,128], index: 1, kind: input, shape index: {}]
  %s2 = inlined_call_operand.vmem [shape: f32[1,1,128], index: 2, kind: input, shape index: {}]
  %s3 = inlined_call_operand.hbm [shape: bf16[128,512], index: 3, kind: input, shape index: {}]
  %s4 = inlined_call_operand.vmem [shape: f32[1,512], index: 4, kind: input, shape index: {}]
  %s5 = inlined_call_operand.hbm [shape: bf16[512,768], index: 5, kind: input, shape index: {}]
  %s6 = inlined_call_operand.vmem [shape: f32[1,768], index: 6, kind: input, shape index: {}]
  %s7 = inlined_call_operand.hbm [shape: bf16[2560,128], index: 7, kind: input, shape index: {}]
  %s8 = inlined_call_operand.vmem [shape: f32[1,128], index: 8, kind: input, shape index: {}]
  %s9 = inlined_call_operand.hbm [shape: f32[1,1,128], index: 9, kind: output, shape index: {}]
  %s10 = sld [smem:[#allocation0]]
  $region62: #{tpu_custom_call.1} parent=0
    _
  %s12 = ssub.s32 1, %s10
  %s13 = scalar_select 0, %s12, %s10
  %14 = sst [smem:[#allocation3]] %s0
  $region1: #{tpu_custom_call.1} parent=0
    #allocation4 [shape = 'u8[8192]{0}', space=vmem, size = 0x2000, scoped, tag = 'input window, operand 1, single buffered']
    #allocation5 [shape = 's32[1]{0}', space=sflag, size = 0x4, scoped, tag = 'scoped memory for tpu_custom_call.1']
    #allocation6 [shape = 's32[1]{0}', space=sflag, size = 0x4, scoped, tag = 'scoped memory for tpu_custom_call.1']
    #allocation7 [shape = 'u8[131072]{0}', space=vmem, size = 0x20000, scoped, tag = 'input window, operand 3, single buffered']
    #allocation8 [shape = 's32[1]{0}', space=sflag, size = 0x4, scoped, tag = 'scoped memory for tpu_custom_call.1']
    #allocation9 [shape = 'u8[786432]{0}', space=vmem, size = 0xc0000, scoped, tag = 'input window, operand 5, single buffered']
    #allocation10 [shape = 'u8[655360]{0}', space=vmem, size = 0xa0000, scoped, tag = 'input window, operand 7, single buffered']
    #allocation11 [shape = 's32[1]{0}', space=sflag, size = 0x4, scoped, tag = 'scoped memory for tpu_custom_call.1']
    #allocation12 [shape = 'u8[512]{0}', space=vmem, size = 0x400, scoped, tag = 'output window, operand 0, single buffered']
    %15 = vsyncpa [#allocation5], 0
    %16 = vsyncpa [#allocation8], 0
    %17 = vsyncpa [#allocation11], 0
    %18 = vsyncpa [#allocation6], 0
    // Predicated region
    $region2: #{tpu_custom_call.1} parent=1 // pred_check
      _
    $region3: #{tpu_custom_call.1} parent=1 // pred_check_branch
      %20 = sbr.rel (0) target = $region5
    $region4: #{tpu_custom_call.1} parent=1 // pred_region
      _
    $region5: #{tpu_custom_call.1} parent=1 // pred_fallthru
      _
    // Predicated region
    $region6: #{tpu_custom_call.1} parent=1 // pred_check
      _
    $region7: #{tpu_custom_call.1} parent=1 // pred_check_branch
      %22 = sbr.rel (0) target = $region9
    $region8: #{tpu_custom_call.1} parent=1 // pred_region
      %s24 = ssub.s32 256, 256
      %25 = vsyncadd [#allocation5], %s24
      %s26 = sshll.u32 [#allocation4], 4
      %s27 = int_to_ptr.vmem [resolvable:$true] %s26
      %32 = dma.hbm_to_vmem [thread:$0]  %s1, 256, %s27, [#allocation5], 128, 128, 8
    $region9: #{tpu_custom_call.1} parent=1 // pred_fallthru
      _
    // Predicated region
    $region10: #{tpu_custom_call.1} parent=1 // pred_check
      _
    $region11: #{tpu_custom_call.1} parent=1 // pred_check_branch
      %34 = sbr.rel (0) target = $region13
    $region12: #{tpu_custom_call.1} parent=1 // pred_region
      _
    $region13: #{tpu_custom_call.1} parent=1 // pred_fallthru
      _
    // Predicated region
    $region14: #{tpu_custom_call.1} parent=1 // pred_check
      _
    $region15: #{tpu_custom_call.1} parent=1 // pred_check_branch
      %36 = sbr.rel (0) target = $region17
    $region16: #{tpu_custom_call.1} parent=1 // pred_region
      %s38 = ssub.s32 4096, 4096
      %39 = vsyncadd [#allocation8], %s38
      %s40 = sshll.u32 [#allocation7], 4
      %s41 = int_to_ptr.vmem [resolvable:$true] %s40
      %46 = dma.hbm_to_vmem [thread:$0]  %s3, 4096, %s41, [#allocation8], 256, 256, 16
    $region17: #{tpu_custom_call.1} parent=1 // pred_fallthru
      _
    // Predicated region
    $region18: #{tpu_custom_call.1} parent=1 // pred_check
      _
    $region19: #{tpu_custom_call.1} parent=1 // pred_check_branch
      %48 = sbr.rel (0) target = $region21
    $region20: #{tpu_custom_call.1} parent=1 // pred_region
      _
    $region21: #{tpu_custom_call.1} parent=1 // pred_fallthru
      _
    // Predicated region
    $region22: #{tpu_custom_call.1} parent=1 // pred_check
      _
    $region23: #{tpu_custom_call.1} parent=1 // pred_check_branch
      %50 = sbr.rel (0) target = $region25
    $region24: #{tpu_custom_call.1} parent=1 // pred_region
      %s52 = ssub.s32 24576, 24576
      %53 = vsyncadd [#allocation8], %s52
      %s54 = sshll.u32 [#allocation9], 4
      %s55 = int_to_ptr.vmem [resolvable:$true] %s54
      %60 = dma.hbm_to_vmem [thread:$0]  %s5, 24576, %s55, [#allocation8], 384, 384, 24
    $region25: #{tpu_custom_call.1} parent=1 // pred_fallthru
      _
    // Predicated region
    $region26: #{tpu_custom_call.1} parent=1 // pred_check
      _
    $region27: #{tpu_custom_call.1} parent=1 // pred_check_branch
      %62 = sbr.rel (0) target = $region29
    $region28: #{tpu_custom_call.1} parent=1 // pred_region
      _
    $region29: #{tpu_custom_call.1} parent=1 // pred_fallthru
      _
    // Predicated region
    $region30: #{tpu_custom_call.1} parent=1 // pred_check
      _
    $region31: #{tpu_custom_call.1} parent=1 // pred_check_branch
      %64 = sbr.rel (0) target = $region33
    $region32: #{tpu_custom_call.1} parent=1 // pred_region
      %s66 = ssub.s32 20480, 20480
      %67 = vsyncadd [#allocation11], %s66
      %s68 = sshll.u32 [#allocation10], 4
      %s69 = int_to_ptr.vmem [resolvable:$true] %s68
      %74 = dma.hbm_to_vmem [thread:$0]  %s7, 20480, %s69, [#allocation11], 64, 64, 4
    $region33: #{tpu_custom_call.1} parent=1 // pred_fallthru
      _
    // Predicated region
    $region34: #{tpu_custom_call.1} parent=1 // pred_check
      _
    $region35: #{tpu_custom_call.1} parent=1 // pred_check_branch
      %76 = sbr.rel (0) target = $region37
    $region36: #{tpu_custom_call.1} parent=1 // pred_region
      _
    $region37: #{tpu_custom_call.1} parent=1 // pred_fallthru
      _
    // Predicated region
    $region38: #{tpu_custom_call.1} parent=1 // pred_check
      _
    $region39: #{tpu_custom_call.1} parent=1 // pred_check_branch
      %78 = sbr.rel (0) target = $region41
    $region40: #{tpu_custom_call.1} parent=1 // pred_region
      %79 = dma.done [#allocation5], 256
    $region41: #{tpu_custom_call.1} parent=1 // pred_fallthru
      _
    // Predicated region
    $region42: #{tpu_custom_call.1} parent=1 // pred_check
      _
    $region43: #{tpu_custom_call.1} parent=1 // pred_check_branch
      %81 = sbr.rel (0) target = $region45
    $region44: #{tpu_custom_call.1} parent=1 // pred_region
      %82 = dma.done [#allocation8], 4096
    $region45: #{tpu_custom_call.1} parent=1 // pred_fallthru
      _
    // Predicated region
    $region46: #{tpu_custom_call.1} parent=1 // pred_check
      _
    $region47: #{tpu_custom_call.1} parent=1 // pred_check_branch
      %84 = sbr.rel (0) target = $region49
    $region48: #{tpu_custom_call.1} parent=1 // pred_region
      %85 = dma.done [#allocation8], 24576
    $region49: #{tpu_custom_call.1} parent=1 // pred_fallthru
      _
    // Predicated region
    $region50: #{tpu_custom_call.1} parent=1 // pred_check
      _
    $region51: #{tpu_custom_call.1} parent=1 // pred_check_branch
      %87 = sbr.rel (0) target = $region53
    $region52: #{tpu_custom_call.1} parent=1 // pred_region
      %88 = dma.done [#allocation11], 20480
    $region53: #{tpu_custom_call.1} parent=1 // pred_fallthru
      _
    %s90 = sld [smem:[#allocation3]]
    %v91 = vlaneseq
    %v92 = vshrl.u32 %v91, 7
    %v93 = vadd.s32 %v92, 8
    %v94 = vstv %s90
    %vm95 = vcmp.lt.s32.totalorder %v92, %v94
    %vm96 = vcmp.lt.s32.totalorder %v93, %v94
    %v97 = vsel %vm95, 1, 0
    %v98 = vsel %vm96, 1, 0
    %v99 = vcvt.s32.f32 %v97
    %v100 = vcvt.s32.f32 %v98
    %v101 = vld [vmem:[#allocation4] sm:$0xff]
    %v102 = vld [vmem:[#allocation4 + $0x8] sm:$0xff]
    %v103 = vpack.c.bf16 %v102, %v101
    %v104 = vld [vmem:[#allocation7] sm:$0xff]
    %v105 = vld [vmem:[#allocation7 + $0x8] sm:$0xff]
    %v106 = vld [vmem:[#allocation7 + $0x10] sm:$0xff]
    %v107 = vld [vmem:[#allocation7 + $0x18] sm:$0xff]
    %v108 = vld [vmem:[#allocation7 + $0x20] sm:$0xff]
    %v109 = vld [vmem:[#allocation7 + $0x28] sm:$0xff]
    %v110 = vld [vmem:[#allocation7 + $0x30] sm:$0xff]
    %v111 = vld [vmem:[#allocation7 + $0x38] sm:$0xff]
    %v112 = vld [vmem:[#allocation7 + $0x40] sm:$0xff]
    %v113 = vld [vmem:[#allocation7 + $0x48] sm:$0xff]
    %v114 = vld [vmem:[#allocation7 + $0x50] sm:$0xff]
    %v115 = vld [vmem:[#allocation7 + $0x58] sm:$0xff]
    %v116 = vld [vmem:[#allocation7 + $0x60] sm:$0xff]
    %v117 = vld [vmem:[#allocation7 + $0x68] sm:$0xff]
    %v118 = vld [vmem:[#allocation7 + $0x70] sm:$0xff]
    %v119 = vld [vmem:[#allocation7 + $0x78] sm:$0xff]
    %v120 = vld [vmem:[#allocation7 + $0x80] sm:$0xff]
    %v121 = vld [vmem:[#allocation7 + $0x88] sm:$0xff]
    %v122 = vld [vmem:[#allocation7 + $0x90] sm:$0xff]
    %v123 = vld [vmem:[#allocation7 + $0x98] sm:$0xff]
    %v124 = vld [vmem:[#allocation7 + $0xa0] sm:$0xff]
    %v125 = vld [vmem:[#allocation7 + $0xa8] sm:$0xff]
    %v126 = vld [vmem:[#allocation7 + $0xb0] sm:$0xff]
    %v127 = vld [vmem:[#allocation7 + $0xb8] sm:$0xff]
    %v128 = vld [vmem:[#allocation7 + $0xc0] sm:$0xff]
    %v129 = vld [vmem:[#allocation7 + $0xc8] sm:$0xff]
    %v130 = vld [vmem:[#allocation7 + $0xd0] sm:$0xff]
    %v131 = vld [vmem:[#allocation7 + $0xd8] sm:$0xff]
    %v132 = vld [vmem:[#allocation7 + $0xe0] sm:$0xff]
    %v133 = vld [vmem:[#allocation7 + $0xe8] sm:$0xff]
    %v134 = vld [vmem:[#allocation7 + $0xf0] sm:$0xff]
    %v135 = vld [vmem:[#allocation7 + $0xf8] sm:$0xff]
    %v136 = vld [vmem:[%s4] sm:$0xf]
    %v138 = vlaneseq
    %v139 = vshrl.u32 %v138, 7
    %v140 = vsub.s32 0, %v139
    %v141 = vrot.slane %v136, %v140
    %v142 = vlaneseq
    %v143 = vshrl.u32 %v142, 7
    %v144 = vsub.s32 1, %v143
    %v145 = vrot.slane %v136, %v144
    %v146 = vlaneseq
    %v147 = vshrl.u32 %v146, 7
    %v148 = vsub.s32 2, %v147
    %v149 = vrot.slane %v136, %v148
    %v150 = vlaneseq
    %v151 = vshrl.u32 %v150, 7
    %v152 = vsub.s32 3, %v151
    %v153 = vrot.slane %v136, %v152
    %v190 = vunpack.c.l.b16 %v104
    %v191 = vunpack.c.h.b16 %v104
    %v192 = vunpack.c.l.b16 %v105
    %v193 = vunpack.c.h.b16 %v105
    %v194 = vunpack.c.l.b16 %v106
    %v195 = vunpack.c.h.b16 %v106
    %v196 = vunpack.c.l.b16 %v107
    %v197 = vunpack.c.h.b16 %v107
    %v198 = vunpack.c.l.b16 %v108
    %v199 = vunpack.c.h.b16 %v108
    %v200 = vunpack.c.l.b16 %v109
    %v201 = vunpack.c.h.b16 %v109
    %v202 = vunpack.c.l.b16 %v110
    %v203 = vunpack.c.h.b16 %v110
    %v204 = vunpack.c.l.b16 %v111
    %v205 = vunpack.c.h.b16 %v111
    %v206 = vunpack.c.l.b16 %v112
    %v207 = vunpack.c.h.b16 %v112
    %v208 = vunpack.c.l.b16 %v113
    %v209 = vunpack.c.h.b16 %v113
    %v210 = vunpack.c.l.b16 %v114
    %v211 = vunpack.c.h.b16 %v114
    %v212 = vunpack.c.l.b16 %v115
    %v213 = vunpack.c.h.b16 %v115
    %v214 = vunpack.c.l.b16 %v116
    %v215 = vunpack.c.h.b16 %v116
    %v216 = vunpack.c.l.b16 %v117
    %v217 = vunpack.c.h.b16 %v117
    %v218 = vunpack.c.l.b16 %v118
    %v219 = vunpack.c.h.b16 %v118
    %v220 = vunpack.c.l.b16 %v119
    %v221 = vunpack.c.h.b16 %v119
    %v222 = vunpack.c.l.b16 %v120
    %v223 = vunpack.c.h.b16 %v120
    %v224 = vunpack.c.l.b16 %v121
    %v225 = vunpack.c.h.b16 %v121
    %v226 = vunpack.c.l.b16 %v122
    %v227 = vunpack.c.h.b16 %v122
    %v228 = vunpack.c.l.b16 %v123
    %v229 = vunpack.c.h.b16 %v123
    %v230 = vunpack.c.l.b16 %v124
    %v231 = vunpack.c.h.b16 %v124
    %v232 = vunpack.c.l.b16 %v125
    %v233 = vunpack.c.h.b16 %v125
    %v234 = vunpack.c.l.b16 %v126
    %v235 = vunpack.c.h.b16 %v126
    %v236 = vunpack.c.l.b16 %v127
    %v237 = vunpack.c.h.b16 %v127
    %v238 = vunpack.c.l.b16 %v128
    %v239 = vunpack.c.h.b16 %v128
    %v240 = vunpack.c.l.b16 %v129
    %v241 = vunpack.c.h.b16 %v129
    %v242 = vunpack.c.l.b16 %v130
    %v243 = vunpack.c.h.b16 %v130
    %v244 = vunpack.c.l.b16 %v131
    %v245 = vunpack.c.h.b16 %v131
    %v246 = vunpack.c.l.b16 %v132
    %v247 = vunpack.c.h.b16 %v132
    %v248 = vunpack.c.l.b16 %v133
    %v249 = vunpack.c.h.b16 %v133
    %v250 = vunpack.c.l.b16 %v134
    %v251 = vunpack.c.h.b16 %v134
    %v252 = vunpack.c.l.b16 %v135
    %v253 = vunpack.c.h.b16 %v135
    %v254 = vpack.c.b16 %v194, %v190
    %v255 = vpack.c.b16 %v195, %v191
    %v256 = vpack.c.b16 %v196, %v192
    %v257 = vpack.c.b16 %v197, %v193
    %v258 = vpack.c.b16 %v202, %v198
    %v259 = vpack.c.b16 %v203, %v199
    %v260 = vpack.c.b16 %v204, %v200
    %v261 = vpack.c.b16 %v205, %v201
    %v262 = vpack.c.b16 %v210, %v206
    %v263 = vpack.c.b16 %v211, %v207
    %v264 = vpack.c.b16 %v212, %v208
    %v265 = vpack.c.b16 %v213, %v209
    %v266 = vpack.c.b16 %v218, %v214
    %v267 = vpack.c.b16 %v219, %v215
    %v268 = vpack.c.b16 %v220, %v216
    %v269 = vpack.c.b16 %v221, %v217
    %v270 = vpack.c.b16 %v226, %v222
    %v271 = vpack.c.b16 %v227, %v223
    %v272 = vpack.c.b16 %v228, %v224
    %v273 = vpack.c.b16 %v229, %v225
    %v274 = vpack.c.b16 %v234, %v230
    %v275 = vpack.c.b16 %v235, %v231
    %v276 = vpack.c.b16 %v236, %v232
    %v277 = vpack.c.b16 %v237, %v233
    %v278 = vpack.c.b16 %v242, %v238
    %v279 = vpack.c.b16 %v243, %v239
    %v280 = vpack.c.b16 %v244, %v240
    %v281 = vpack.c.b16 %v245, %v241
    %v282 = vpack.c.b16 %v250, %v246
    %v283 = vpack.c.b16 %v251, %v247
    %v284 = vpack.c.b16 %v252, %v248
    %v285 = vpack.c.b16 %v253, %v249
    %318 = vmatprep.subr.bf16.mxu0 %v255
    %319 = vmatpush1.bf16.msra.mxu0 %v254
    %320 = vmatprep.subr.bf16.mxu0 %v259
    %321 = vmatpush1.bf16.msra.mxu0 %v258
    %322 = vmatprep.subr.bf16.mxu0 %v263
    %323 = vmatpush1.bf16.msra.mxu0 %v262
    %324 = vmatprep.subr.bf16.mxu0 %v267
    %325 = vmatpush1.bf16.msra.mxu0 %v266
    %326 = vmatprep.subr.bf16.mxu0 %v271
    %327 = vmatpush1.bf16.msra.mxu0 %v270
    %328 = vmatprep.subr.bf16.mxu0 %v275
    %329 = vmatpush1.bf16.msra.mxu0 %v274
    %330 = vmatprep.subr.bf16.mxu0 %v279
    %331 = vmatpush1.bf16.msra.mxu0 %v278
    %332 = vmatprep.subr.bf16.mxu0 %v283
    %333 = vmatpush1.bf16.msra.mxu0 %v282
    %334 = vmatprep.subr.bf16.mxu0 0
    %335 = vmatpush1.bf16.msra.mxu0 0
    %336 = vmatprep.subr.bf16.mxu0 0
    %337 = vmatpush1.bf16.msra.mxu0 0
    %338 = vmatprep.subr.bf16.mxu0 0
    %339 = vmatpush1.bf16.msra.mxu0 0
    %340 = vmatprep.subr.bf16.mxu0 0
    %341 = vmatpush1.bf16.msra.mxu0 0
    %342 = vmatprep.subr.bf16.mxu0 0
    %343 = vmatpush1.bf16.msra.mxu0 0
    %344 = vmatprep.subr.bf16.mxu0 0
    %345 = vmatpush1.bf16.msra.mxu0 0
    %346 = vmatprep.subr.bf16.mxu0 0
    %347 = vmatpush1.bf16.msra.mxu0 0
    %348 = vmatprep.subr.bf16.mxu0 0
    %349 = vmatpush1.bf16.msra.mxu0 0
    %350 = vmatprep.mubr.bf16.mxu0 0
    %351 = vmatmul.mubr.bf16.gmra.mrb[0].mxu0 %v103
    %v352 = vpop.f32.mrb[0].mxu0
    %v353 = vadd.f32 %v141, %v352
    %v354 = vpop.f32.mrb[0].mxu0
    %v355 = vadd.f32 %v145, %v354
    %v356 = vpop.f32.mrb[0].mxu0
    %v357 = vadd.f32 %v141, %v356
    %v358 = vpop.f32.mrb[0].mxu0
    %v359 = vadd.f32 %v145, %v358
    %360 = vdwg.mxu0
    %361 = vmatprep.subr.bf16.mxu0 %v257
    %362 = vmatpush1.bf16.msra.mxu0 %v256
    %363 = vmatprep.subr.bf16.mxu0 %v261
    %364 = vmatpush1.bf16.msra.mxu0 %v260
    %365 = vmatprep.subr.bf16.mxu0 %v265
    %366 = vmatpush1.bf16.msra.mxu0 %v264
    %367 = vmatprep.subr.bf16.mxu0 %v269
    %368 = vmatpush1.bf16.msra.mxu0 %v268
    %369 = vmatprep.subr.bf16.mxu0 %v273
    %370 = vmatpush1.bf16.msra.mxu0 %v272
    %371 = vmatprep.subr.bf16.mxu0 %v277
    %372 = vmatpush1.bf16.msra.mxu0 %v276
    %373 = vmatprep.subr.bf16.mxu0 %v281
    %374 = vmatpush1.bf16.msra.mxu0 %v280
    %375 = vmatprep.subr.bf16.mxu0 %v285
    %376 = vmatpush1.bf16.msra.mxu0 %v284
    %377 = vmatprep.subr.bf16.mxu0 0
    %378 = vmatpush1.bf16.msra.mxu0 0
    %379 = vmatprep.subr.bf16.mxu0 0
    %380 = vmatpush1.bf16.msra.mxu0 0
    %381 = vmatprep.subr.bf16.mxu0 0
    %382 = vmatpush1.bf16.msra.mxu0 0
    %383 = vmatprep.subr.bf16.mxu0 0
    %384 = vmatpush1.bf16.msra.mxu0 0
    %385 = vmatprep.subr.bf16.mxu0 0
    %386 = vmatpush1.bf16.msra.mxu0 0
    %387 = vmatprep.subr.bf16.mxu0 0
    %388 = vmatpush1.bf16.msra.mxu0 0
    %389 = vmatprep.subr.bf16.mxu0 0
    %390 = vmatpush1.bf16.msra.mxu0 0
    %391 = vmatprep.subr.bf16.mxu0 0
    %392 = vmatpush1.bf16.msra.mxu0 0
    %393 = vmatprep.mubr.bf16.mxu0 0
    %394 = vmatmul.mubr.bf16.gmra.mrb[0].mxu0 %v103
    %v395 = vpop.f32.mrb[0].mxu0
    %v396 = vadd.f32 %v149, %v395
    %v397 = vpop.f32.mrb[0].mxu0
    %v398 = vadd.f32 %v153, %v397
    %v399 = vpop.f32.mrb[0].mxu0
    %v400 = vadd.f32 %v149, %v399
    %v401 = vpop.f32.mrb[0].mxu0
    %v402 = vadd.f32 %v153, %v401
    %403 = vdwg.mxu0
    %v404 = vmul.f32 %v353, %v99
    %v405 = vmul.f32 %v355, %v99
    %v406 = vmul.f32 %v396, %v99
    %v407 = vmul.f32 %v398, %v99
    %v408 = vmul.f32 %v357, %v100
    %v409 = vmul.f32 %v359, %v100
    %v410 = vmul.f32 %v400, %v100
    %v411 = vmul.f32 %v402, %v100
    %v412 = vpack.c.bf16 %v408, %v404
    %v413 = vpack.c.bf16 %v409, %v405
    %v414 = vpack.c.bf16 %v410, %v406
    %v415 = vpack.c.bf16 %v411, %v407
    %v416 = vld [vmem:[#allocation9] sm:$0xff]
    %v417 = vld [vmem:[#allocation9 + $0x8] sm:$0xff]
    %v418 = vld [vmem:[#allocation9 + $0x10] sm:$0xff]
    %v419 = vld [vmem:[#allocation9 + $0x18] sm:$0xff]
    %v420 = vld [vmem:[#allocation9 + $0x20] sm:$0xff]
    %v421 = vld [vmem:[#allocation9 + $0x28] sm:$0xff]
    %v422 = vld [vmem:[#allocation9 + $0x30] sm:$0xff]
    %v423 = vld [vmem:[#allocation9 + $0x38] sm:$0xff]
    %v424 = vld [vmem:[#allocation9 + $0x40] sm:$0xff]
    %v425 = vld [vmem:[#allocation9 + $0x48] sm:$0xff]
    %v426 = vld [vmem:[#allocation9 + $0x50] sm:$0xff]
    %v427 = vld [vmem:[#allocation9 + $0x58] sm:$0xff]
    %v428 = vld [vmem:[#allocation9 + $0x60] sm:$0xff]
    %v429 = vld [vmem:[#allocation9 + $0x68] sm:$0xff]
    %v430 = vld [vmem:[#allocation9 + $0x70] sm:$0xff]
    %v431 = vld [vmem:[#allocation9 + $0x78] sm:$0xff]
    %v432 = vld [vmem:[#allocation9 + $0x80] sm:$0xff]
    %v433 = vld [vmem:[#allocation9 + $0x88] sm:$0xff]
    %v434 = vld [vmem:[#allocation9 + $0x90] sm:$0xff]
    %v435 = vld [vmem:[#allocation9 + $0x98] sm:$0xff]
    %v436 = vld [vmem:[#allocation9 + $0xa0] sm:$0xff]
    %v437 = vld [vmem:[#allocation9 + $0xa8] sm:$0xff]
    %v438 = vld [vmem:[#allocation9 + $0xb0] sm:$0xff]
    %v439 = vld [vmem:[#allocation9 + $0xb8] sm:$0xff]
    %v440 = vld [vmem:[#allocation9 + $0xc0] sm:$0xff]
    %v441 = vld [vmem:[#allocation9 + $0xc8] sm:$0xff]
    %v442 = vld [vmem:[#allocation9 + $0xd0] sm:$0xff]
    %v443 = vld [vmem:[#allocation9 + $0xd8] sm:$0xff]
    %v444 = vld [vmem:[#allocation9 + $0xe0] sm:$0xff]
    %v445 = vld [vmem:[#allocation9 + $0xe8] sm:$0xff]
    %v446 = vld [vmem:[#allocation9 + $0xf0] sm:$0xff]
    %v447 = vld [vmem:[#allocation9 + $0xf8] sm:$0xff]
    %v448 = vld [vmem:[#allocation9 + $0x100] sm:$0xff]
    %v449 = vld [vmem:[#allocation9 + $0x108] sm:$0xff]
    %v450 = vld [vmem:[#allocation9 + $0x110] sm:$0xff]
    %v451 = vld [vmem:[#allocation9 + $0x118] sm:$0xff]
    %v452 = vld [vmem:[#allocation9 + $0x120] sm:$0xff]
    %v453 = vld [vmem:[#allocation9 + $0x128] sm:$0xff]
    %v454 = vld [vmem:[#allocation9 + $0x130] sm:$0xff]
    %v455 = vld [vmem:[#allocation9 + $0x138] sm:$0xff]
    %v456 = vld [vmem:[#allocation9 + $0x140] sm:$0xff]
    %v457 = vld [vmem:[#allocation9 + $0x148] sm:$0xff]
    %v458 = vld [vmem:[#allocation9 + $0x150] sm:$0xff]
    %v459 = vld [vmem:[#allocation9 + $0x158] sm:$0xff]
    %v460 = vld [vmem:[#allocation9 + $0x160] sm:$0xff]
    %v461 = vld [vmem:[#allocation9 + $0x168] sm:$0xff]
    %v462 = vld [vmem:[#allocation9 + $0x170] sm:$0xff]
    %v463 = vld [vmem:[#allocation9 + $0x178] sm:$0xff]
    %v464 = vld [vmem:[#allocation9 + $0x180] sm:$0xff]
    %v465 = vld [vmem:[#allocation9 + $0x188] sm:$0xff]
    %v466 = vld [vmem:[#allocation9 + $0x190] sm:$0xff]
    %v467 = vld [vmem:[#allocation9 + $0x198] sm:$0xff]
    %v468 = vld [vmem:[#allocation9 + $0x1a0] sm:$0xff]
    %v469 = vld [vmem:[#allocation9 + $0x1a8] sm:$0xff]
    %v470 = vld [vmem:[#allocation9 + $0x1b0] sm:$0xff]
    %v471 = vld [vmem:[#allocation9 + $0x1b8] sm:$0xff]
    %v472 = vld [vmem:[#allocation9 + $0x1c0] sm:$0xff]
    %v473 = vld [vmem:[#allocation9 + $0x1c8] sm:$0xff]
    %v474 = vld [vmem:[#allocation9 + $0x1d0] sm:$0xff]
    %v475 = vld [vmem:[#allocation9 + $0x1d8] sm:$0xff]
    %v476 = vld [vmem:[#allocation9 + $0x1e0] sm:$0xff]
    %v477 = vld [vmem:[#allocation9 + $0x1e8] sm:$0xff]
    %v478 = vld [vmem:[#allocation9 + $0x1f0] sm:$0xff]
    %v479 = vld [vmem:[#allocation9 + $0x1f8] sm:$0xff]
    %v480 = vld [vmem:[#allocation9 + $0x200] sm:$0xff]
    %v481 = vld [vmem:[#allocation9 + $0x208] sm:$0xff]
    %v482 = vld [vmem:[#allocation9 + $0x210] sm:$0xff]
    %v483 = vld [vmem:[#allocation9 + $0x218] sm:$0xff]
    %v484 = vld [vmem:[#allocation9 + $0x220] sm:$0xff]
    %v485 = vld [vmem:[#allocation9 + $0x228] sm:$0xff]
    %v486 = vld [vmem:[#allocation9 + $0x230] sm:$0xff]
    %v487 = vld [vmem:[#allocation9 + $0x238] sm:$0xff]
    %v488 = vld [vmem:[#allocation9 + $0x240] sm:$0xff]
    %v489 = vld [vmem:[#allocation9 + $0x248] sm:$0xff]
    %v490 = vld [vmem:[#allocation9 + $0x250] sm:$0xff]
    %v491 = vld [vmem:[#allocation9 + $0x258] sm:$0xff]
    %v492 = vld [vmem:[#allocation9 + $0x260] sm:$0xff]
    %v493 = vld [vmem:[#allocation9 + $0x268] sm:$0xff]
    %v494 = vld [vmem:[#allocation9 + $0x270] sm:$0xff]
    %v495 = vld [vmem:[#allocation9 + $0x278] sm:$0xff]
    %v496 = vld [vmem:[#allocation9 + $0x280] sm:$0xff]
    %v497 = vld [vmem:[#allocation9 + $0x288] sm:$0xff]
    %v498 = vld [vmem:[#allocation9 + $0x290] sm:$0xff]
    %v499 = vld [vmem:[#allocation9 + $0x298] sm:$0xff]
    %v500 = vld [vmem:[#allocation9 + $0x2a0] sm:$0xff]
    %v501 = vld [vmem:[#allocation9 + $0x2a8] sm:$0xff]
    %v502 = vld [vmem:[#allocation9 + $0x2b0] sm:$0xff]
    %v503 = vld [vmem:[#allocation9 + $0x2b8] sm:$0xff]
    %v504 = vld [vmem:[#allocation9 + $0x2c0] sm:$0xff]
    %v505 = vld [vmem:[#allocation9 + $0x2c8] sm:$0xff]
    %v506 = vld [vmem:[#allocation9 + $0x2d0] sm:$0xff]
    %v507 = vld [vmem:[#allocation9 + $0x2d8] sm:$0xff]
    %v508 = vld [vmem:[#allocation9 + $0x2e0] sm:$0xff]
    %v509 = vld [vmem:[#allocation9 + $0x2e8] sm:$0xff]
    %v510 = vld [vmem:[#allocation9 + $0x2f0] sm:$0xff]
    %v511 = vld [vmem:[#allocation9 + $0x2f8] sm:$0xff]
    %v512 = vld [vmem:[#allocation9 + $0x300] sm:$0xff]
    %v513 = vld [vmem:[#allocation9 + $0x308] sm:$0xff]
    %v514 = vld [vmem:[#allocation9 + $0x310] sm:$0xff]
    %v515 = vld [vmem:[#allocation9 + $0x318] sm:$0xff]
    %v516 = vld [vmem:[#allocation9 + $0x320] sm:$0xff]
    %v517 = vld [vmem:[#allocation9 + $0x328] sm:$0xff]
    %v518 = vld [vmem:[#allocation9 + $0x330] sm:$0xff]
    %v519 = vld [vmem:[#allocation9 + $0x338] sm:$0xff]
    %v520 = vld [vmem:[#allocation9 + $0x340] sm:$0xff]
    %v521 = vld [vmem:[#allocation9 + $0x348] sm:$0xff]
    %v522 = vld [vmem:[#allocation9 + $0x350] sm:$0xff]
    %v523 = vld [vmem:[#allocation9 + $0x358] sm:$0xff]
    %v524 = vld [vmem:[#allocation9 + $0x360] sm:$0xff]
    %v525 = vld [vmem:[#allocation9 + $0x368] sm:$0xff]
    %v526 = vld [vmem:[#allocation9 + $0x370] sm:$0xff]
    %v527 = vld [vmem:[#allocation9 + $0x378] sm:$0xff]
    %v528 = vld [vmem:[#allocation9 + $0x380] sm:$0xff]
    %v529 = vld [vmem:[#allocation9 + $0x388] sm:$0xff]
    %v530 = vld [vmem:[#allocation9 + $0x390] sm:$0xff]
    %v531 = vld [vmem:[#allocation9 + $0x398] sm:$0xff]
    %v532 = vld [vmem:[#allocation9 + $0x3a0] sm:$0xff]
    %v533 = vld [vmem:[#allocation9 + $0x3a8] sm:$0xff]
    %v534 = vld [vmem:[#allocation9 + $0x3b0] sm:$0xff]
    %v535 = vld [vmem:[#allocation9 + $0x3b8] sm:$0xff]
    %v536 = vld [vmem:[#allocation9 + $0x3c0] sm:$0xff]
    %v537 = vld [vmem:[#allocation9 + $0x3c8] sm:$0xff]
    %v538 = vld [vmem:[#allocation9 + $0x3d0] sm:$0xff]
    %v539 = vld [vmem:[#allocation9 + $0x3d8] sm:$0xff]
    %v540 = vld [vmem:[#allocation9 + $0x3e0] sm:$0xff]
    %v541 = vld [vmem:[#allocation9 + $0x3e8] sm:$0xff]
    %v542 = vld [vmem:[#allocation9 + $0x3f0] sm:$0xff]
    %v543 = vld [vmem:[#allocation9 + $0x3f8] sm:$0xff]
    %v544 = vld [vmem:[#allocation9 + $0x400] sm:$0xff]
    %v545 = vld [vmem:[#allocation9 + $0x408] sm:$0xff]
    %v546 = vld [vmem:[#allocation9 + $0x410] sm:$0xff]
    %v547 = vld [vmem:[#allocation9 + $0x418] sm:$0xff]
    %v548 = vld [vmem:[#allocation9 + $0x420] sm:$0xff]
    %v549 = vld [vmem:[#allocation9 + $0x428] sm:$0xff]
    %v550 = vld [vmem:[#allocation9 + $0x430] sm:$0xff]
    %v551 = vld [vmem:[#allocation9 + $0x438] sm:$0xff]
    %v552 = vld [vmem:[#allocation9 + $0x440] sm:$0xff]
    %v553 = vld [vmem:[#allocation9 + $0x448] sm:$0xff]
    %v554 = vld [vmem:[#allocation9 + $0x450] sm:$0xff]
    %v555 = vld [vmem:[#allocation9 + $0x458] sm:$0xff]
    %v556 = vld [vmem:[#allocation9 + $0x460] sm:$0xff]
    %v557 = vld [vmem:[#allocation9 + $0x468] sm:$0xff]
    %v558 = vld [vmem:[#allocation9 + $0x470] sm:$0xff]
    %v559 = vld [vmem:[#allocation9 + $0x478] sm:$0xff]
    %v560 = vld [vmem:[#allocation9 + $0x480] sm:$0xff]
    %v561 = vld [vmem:[#allocation9 + $0x488] sm:$0xff]
    %v562 = vld [vmem:[#allocation9 + $0x490] sm:$0xff]
    %v563 = vld [vmem:[#allocation9 + $0x498] sm:$0xff]
    %v564 = vld [vmem:[#allocation9 + $0x4a0] sm:$0xff]
    %v565 = vld [vmem:[#allocation9 + $0x4a8] sm:$0xff]
    %v566 = vld [vmem:[#allocation9 + $0x4b0] sm:$0xff]
    %v567 = vld [vmem:[#allocation9 + $0x4b8] sm:$0xff]
    %v568 = vld [vmem:[#allocation9 + $0x4c0] sm:$0xff]
    %v569 = vld [vmem:[#allocation9 + $0x4c8] sm:$0xff]
    %v570 = vld [vmem:[#allocation9 + $0x4d0] sm:$0xff]
    %v571 = vld [vmem:[#allocation9 + $0x4d8] sm:$0xff]
    %v572 = vld [vmem:[#allocation9 + $0x4e0] sm:$0xff]
    %v573 = vld [vmem:[#allocation9 + $0x4e8] sm:$0xff]
    %v574 = vld [vmem:[#allocation9 + $0x4f0] sm:$0xff]
    %v575 = vld [vmem:[#allocation9 + $0x4f8] sm:$0xff]
    %v576 = vld [vmem:[#allocation9 + $0x500] sm:$0xff]
    %v577 = vld [vmem:[#allocation9 + $0x508] sm:$0xff]
    %v578 = vld [vmem:[#allocation9 + $0x510] sm:$0xff]
    %v579 = vld [vmem:[#allocation9 + $0x518] sm:$0xff]
    %v580 = vld [vmem:[#allocation9 + $0x520] sm:$0xff]
    %v581 = vld [vmem:[#allocation9 + $0x528] sm:$0xff]
    %v582 = vld [vmem:[#allocation9 + $0x530] sm:$0xff]
    %v583 = vld [vmem:[#allocation9 + $0x538] sm:$0xff]
    %v584 = vld [vmem:[#allocation9 + $0x540] sm:$0xff]
    %v585 = vld [vmem:[#allocation9 + $0x548] sm:$0xff]
    %v586 = vld [vmem:[#allocation9 + $0x550] sm:$0xff]
    %v587 = vld [vmem:[#allocation9 + $0x558] sm:$0xff]
    %v588 = vld [vmem:[#allocation9 + $0x560] sm:$0xff]
    %v589 = vld [vmem:[#allocation9 + $0x568] sm:$0xff]
    %v590 = vld [vmem:[#allocation9 + $0x570] sm:$0xff]
    %v591 = vld [vmem:[#allocation9 + $0x578] sm:$0xff]
    %v592 = vld [vmem:[#allocation9 + $0x580] sm:$0xff]
    %v593 = vld [vmem:[#allocation9 + $0x588] sm:$0xff]
    %v594 = vld [vmem:[#allocation9 + $0x590] sm:$0xff]
    %v595 = vld [vmem:[#allocation9 + $0x598] sm:$0xff]
    %v596 = vld [vmem:[#allocation9 + $0x5a0] sm:$0xff]
    %v597 = vld [vmem:[#allocation9 + $0x5a8] sm:$0xff]
    %v598 = vld [vmem:[#allocation9 + $0x5b0] sm:$0xff]
    %v599 = vld [vmem:[#allocation9 + $0x5b8] sm:$0xff]
    %v600 = vld [vmem:[#allocation9 + $0x5c0] sm:$0xff]
    %v601 = vld [vmem:[#allocation9 + $0x5c8] sm:$0xff]
    %v602 = vld [vmem:[#allocation9 + $0x5d0] sm:$0xff]
    %v603 = vld [vmem:[#allocation9 + $0x5d8] sm:$0xff]
    %v604 = vld [vmem:[#allocation9 + $0x5e0] sm:$0xff]
    %v605 = vld [vmem:[#allocation9 + $0x5e8] sm:$0xff]
    %v606 = vld [vmem:[#allocation9 + $0x5f0] sm:$0xff]
    %v607 = vld [vmem:[#allocation9 + $0x5f8] sm:$0xff]
    %v608 = vld [vmem:[%s6] sm:$0x3f]
    %v610 = vlaneseq
    %v611 = vshrl.u32 %v610, 7
    %v612 = vsub.s32 0, %v611
    %v613 = vrot.slane %v608, %v612
    %v614 = vlaneseq
    %v615 = vshrl.u32 %v614, 7
    %v616 = vsub.s32 1, %v615
    %v617 = vrot.slane %v608, %v616
    %v618 = vlaneseq
    %v619 = vshrl.u32 %v618, 7
    %v620 = vsub.s32 2, %v619
    %v621 = vrot.slane %v608, %v620
    %v622 = vlaneseq
    %v623 = vshrl.u32 %v622, 7
    %v624 = vsub.s32 3, %v623
    %v625 = vrot.slane %v608, %v624
    %v626 = vlaneseq
    %v627 = vshrl.u32 %v626, 7
    %v628 = vsub.s32 4, %v627
    %v629 = vrot.slane %v608, %v628
    %v630 = vlaneseq
    %v631 = vshrl.u32 %v630, 7
    %v632 = vsub.s32 5, %v631
    %v633 = vrot.slane %v608, %v632
    %v832 = vunpack.c.l.b16 %v416
    %v833 = vunpack.c.h.b16 %v416
    %v834 = vunpack.c.l.b16 %v417
    %v835 = vunpack.c.h.b16 %v417
    %v836 = vunpack.c.l.b16 %v418
    %v837 = vunpack.c.h.b16 %v418
    %v838 = vunpack.c.l.b16 %v419
    %v839 = vunpack.c.h.b16 %v419
    %v840 = vunpack.c.l.b16 %v420
    %v841 = vunpack.c.h.b16 %v420
    %v842 = vunpack.c.l.b16 %v421
    %v843 = vunpack.c.h.b16 %v421
    %v844 = vunpack.c.l.b16 %v422
    %v845 = vunpack.c.h.b16 %v422
    %v846 = vunpack.c.l.b16 %v423
    %v847 = vunpack.c.h.b16 %v423
    %v848 = vunpack.c.l.b16 %v424
    %v849 = vunpack.c.h.b16 %v424
    %v850 = vunpack.c.l.b16 %v425
    %v851 = vunpack.c.h.b16 %v425
    %v852 = vunpack.c.l.b16 %v426
    %v853 = vunpack.c.h.b16 %v426
    %v854 = vunpack.c.l.b16 %v427
    %v855 = vunpack.c.h.b16 %v427
    %v856 = vunpack.c.l.b16 %v428
    %v857 = vunpack.c.h.b16 %v428
    %v858 = vunpack.c.l.b16 %v429
    %v859 = vunpack.c.h.b16 %v429
    %v860 = vunpack.c.l.b16 %v430
    %v861 = vunpack.c.h.b16 %v430
    %v862 = vunpack.c.l.b16 %v431
    %v863 = vunpack.c.h.b16 %v431
    %v864 = vunpack.c.l.b16 %v432
    %v865 = vunpack.c.h.b16 %v432
    %v866 = vunpack.c.l.b16 %v433
    %v867 = vunpack.c.h.b16 %v433
    %v868 = vunpack.c.l.b16 %v434
    %v869 = vunpack.c.h.b16 %v434
    %v870 = vunpack.c.l.b16 %v435
    %v871 = vunpack.c.h.b16 %v435
    %v872 = vunpack.c.l.b16 %v436
    %v873 = vunpack.c.h.b16 %v436
    %v874 = vunpack.c.l.b16 %v437
    %v875 = vunpack.c.h.b16 %v437
    %v876 = vunpack.c.l.b16 %v438
    %v877 = vunpack.c.h.b16 %v438
    %v878 = vunpack.c.l.b16 %v439
    %v879 = vunpack.c.h.b16 %v439
    %v880 = vunpack.c.l.b16 %v440
    %v881 = vunpack.c.h.b16 %v440
    %v882 = vunpack.c.l.b16 %v441
    %v883 = vunpack.c.h.b16 %v441
    %v884 = vunpack.c.l.b16 %v442
    %v885 = vunpack.c.h.b16 %v442
    %v886 = vunpack.c.l.b16 %v443
    %v887 = vunpack.c.h.b16 %v443
    %v888 = vunpack.c.l.b16 %v444
    %v889 = vunpack.c.h.b16 %v444
    %v890 = vunpack.c.l.b16 %v445
    %v891 = vunpack.c.h.b16 %v445
    %v892 = vunpack.c.l.b16 %v446
    %v893 = vunpack.c.h.b16 %v446
    %v894 = vunpack.c.l.b16 %v447
    %v895 = vunpack.c.h.b16 %v447
    %v896 = vunpack.c.l.b16 %v448
    %v897 = vunpack.c.h.b16 %v448
    %v898 = vunpack.c.l.b16 %v449
    %v899 = vunpack.c.h.b16 %v449
    %v900 = vunpack.c.l.b16 %v450
    %v901 = vunpack.c.h.b16 %v450
    %v902 = vunpack.c.l.b16 %v451
    %v903 = vunpack.c.h.b16 %v451
    %v904 = vunpack.c.l.b16 %v452
    %v905 = vunpack.c.h.b16 %v452
    %v906 = vunpack.c.l.b16 %v453
    %v907 = vunpack.c.h.b16 %v453
    %v908 = vunpack.c.l.b16 %v454
    %v909 = vunpack.c.h.b16 %v454
    %v910 = vunpack.c.l.b16 %v455
    %v911 = vunpack.c.h.b16 %v455
    %v912 = vunpack.c.l.b16 %v456
    %v913 = vunpack.c.h.b16 %v456
    %v914 = vunpack.c.l.b16 %v457
    %v915 = vunpack.c.h.b16 %v457
    %v916 = vunpack.c.l.b16 %v458
    %v917 = vunpack.c.h.b16 %v458
    %v918 = vunpack.c.l.b16 %v459
    %v919 = vunpack.c.h.b16 %v459
    %v920 = vunpack.c.l.b16 %v460
    %v921 = vunpack.c.h.b16 %v460
    %v922 = vunpack.c.l.b16 %v461
    %v923 = vunpack.c.h.b16 %v461
    %v924 = vunpack.c.l.b16 %v462
    %v925 = vunpack.c.h.b16 %v462
    %v926 = vunpack.c.l.b16 %v463
    %v927 = vunpack.c.h.b16 %v463
    %v928 = vunpack.c.l.b16 %v464
    %v929 = vunpack.c.h.b16 %v464
    %v930 = vunpack.c.l.b16 %v465
    %v931 = vunpack.c.h.b16 %v465
    %v932 = vunpack.c.l.b16 %v466
    %v933 = vunpack.c.h.b16 %v466
    %v934 = vunpack.c.l.b16 %v467
    %v935 = vunpack.c.h.b16 %v467
    %v936 = vunpack.c.l.b16 %v468
    %v937 = vunpack.c.h.b16 %v468
    %v938 = vunpack.c.l.b16 %v469
    %v939 = vunpack.c.h.b16 %v469
    %v940 = vunpack.c.l.b16 %v470
    %v941 = vunpack.c.h.b16 %v470
    %v942 = vunpack.c.l.b16 %v471
    %v943 = vunpack.c.h.b16 %v471
    %v944 = vunpack.c.l.b16 %v472
    %v945 = vunpack.c.h.b16 %v472
    %v946 = vunpack.c.l.b16 %v473
    %v947 = vunpack.c.h.b16 %v473
    %v948 = vunpack.c.l.b16 %v474
    %v949 = vunpack.c.h.b16 %v474
    %v950 = vunpack.c.l.b16 %v475
    %v951 = vunpack.c.h.b16 %v475
    %v952 = vunpack.c.l.b16 %v476
    %v953 = vunpack.c.h.b16 %v476
    %v954 = vunpack.c.l.b16 %v477
    %v955 = vunpack.c.h.b16 %v477
    %v956 = vunpack.c.l.b16 %v478
    %v957 = vunpack.c.h.b16 %v478
    %v958 = vunpack.c.l.b16 %v479
    %v959 = vunpack.c.h.b16 %v479
    %v960 = vunpack.c.l.b16 %v480
    %v961 = vunpack.c.h.b16 %v480
    %v962 = vunpack.c.l.b16 %v481
    %v963 = vunpack.c.h.b16 %v481
    %v964 = vunpack.c.l.b16 %v482
    %v965 = vunpack.c.h.b16 %v482
    %v966 = vunpack.c.l.b16 %v483
    %v967 = vunpack.c.h.b16 %v483
    %v968 = vunpack.c.l.b16 %v484
    %v969 = vunpack.c.h.b16 %v484
    %v970 = vunpack.c.l.b16 %v485
    %v971 = vunpack.c.h.b16 %v485
    %v972 = vunpack.c.l.b16 %v486
    %v973 = vunpack.c.h.b16 %v486
    %v974 = vunpack.c.l.b16 %v487
    %v975 = vunpack.c.h.b16 %v487
    %v976 = vunpack.c.l.b16 %v488
    %v977 = vunpack.c.h.b16 %v488
    %v978 = vunpack.c.l.b16 %v489
    %v979 = vunpack.c.h.b16 %v489
    %v980 = vunpack.c.l.b16 %v490
    %v981 = vunpack.c.h.b16 %v490
    %v982 = vunpack.c.l.b16 %v491
    %v983 = vunpack.c.h.b16 %v491
    %v984 = vunpack.c.l.b16 %v492
    %v985 = vunpack.c.h.b16 %v492
    %v986 = vunpack.c.l.b16 %v493
    %v987 = vunpack.c.h.b16 %v493
    %v988 = vunpack.c.l.b16 %v494
    %v989 = vunpack.c.h.b16 %v494
    %v990 = vunpack.c.l.b16 %v495
    %v991 = vunpack.c.h.b16 %v495
    %v992 = vunpack.c.l.b16 %v496
    %v993 = vunpack.c.h.b16 %v496
    %v994 = vunpack.c.l.b16 %v497
    %v995 = vunpack.c.h.b16 %v497
    %v996 = vunpack.c.l.b16 %v498
    %v997 = vunpack.c.h.b16 %v498
    %v998 = vunpack.c.l.b16 %v499
    %v999 = vunpack.c.h.b16 %v499
    %v1000 = vunpack.c.l.b16 %v500
    %v1001 = vunpack.c.h.b16 %v500
    %v1002 = vunpack.c.l.b16 %v501
    %v1003 = vunpack.c.h.b16 %v501
    %v1004 = vunpack.c.l.b16 %v502
    %v1005 = vunpack.c.h.b16 %v502
    %v1006 = vunpack.c.l.b16 %v503
    %v1007 = vunpack.c.h.b16 %v503
    %v1008 = vunpack.c.l.b16 %v504
    %v1009 = vunpack.c.h.b16 %v504
    %v1010 = vunpack.c.l.b16 %v505
    %v1011 = vunpack.c.h.b16 %v505
    %v1012 = vunpack.c.l.b16 %v506
    %v1013 = vunpack.c.h.b16 %v506
    %v1014 = vunpack.c.l.b16 %v507
    %v1015 = vunpack.c.h.b16 %v507
    %v1016 = vunpack.c.l.b16 %v508
    %v1017 = vunpack.c.h.b16 %v508
    %v1018 = vunpack.c.l.b16 %v509
    %v1019 = vunpack.c.h.b16 %v509
    %v1020 = vunpack.c.l.b16 %v510
    %v1021 = vunpack.c.h.b16 %v510
    %v1022 = vunpack.c.l.b16 %v511
    %v1023 = vunpack.c.h.b16 %v511
    %v1024 = vunpack.c.l.b16 %v512
    %v1025 = vunpack.c.h.b16 %v512
    %v1026 = vunpack.c.l.b16 %v513
    %v1027 = vunpack.c.h.b16 %v513
    %v1028 = vunpack.c.l.b16 %v514
    %v1029 = vunpack.c.h.b16 %v514
    %v1030 = vunpack.c.l.b16 %v515
    %v1031 = vunpack.c.h.b16 %v515
    %v1032 = vunpack.c.l.b16 %v516
    %v1033 = vunpack.c.h.b16 %v516
    %v1034 = vunpack.c.l.b16 %v517
    %v1035 = vunpack.c.h.b16 %v517
    %v1036 = vunpack.c.l.b16 %v518
    %v1037 = vunpack.c.h.b16 %v518
    %v1038 = vunpack.c.l.b16 %v519
    %v1039 = vunpack.c.h.b16 %v519
    %v1040 = vunpack.c.l.b16 %v520
    %v1041 = vunpack.c.h.b16 %v520
    %v1042 = vunpack.c.l.b16 %v521
    %v1043 = vunpack.c.h.b16 %v521
    %v1044 = vunpack.c.l.b16 %v522
    %v1045 = vunpack.c.h.b16 %v522
    %v1046 = vunpack.c.l.b16 %v523
    %v1047 = vunpack.c.h.b16 %v523
    %v1048 = vunpack.c.l.b16 %v524
    %v1049 = vunpack.c.h.b16 %v524
    %v1050 = vunpack.c.l.b16 %v525
    %v1051 = vunpack.c.h.b16 %v525
    %v1052 = vunpack.c.l.b16 %v526
    %v1053 = vunpack.c.h.b16 %v526
    %v1054 = vunpack.c.l.b16 %v527
    %v1055 = vunpack.c.h.b16 %v527
    %v1056 = vunpack.c.l.b16 %v528
    %v1057 = vunpack.c.h.b16 %v528
    %v1058 = vunpack.c.l.b16 %v529
    %v1059 = vunpack.c.h.b16 %v529
    %v1060 = vunpack.c.l.b16 %v530
    %v1061 = vunpack.c.h.b16 %v530
    %v1062 = vunpack.c.l.b16 %v531
    %v1063 = vunpack.c.h.b16 %v531
    %v1064 = vunpack.c.l.b16 %v532
    %v1065 = vunpack.c.h.b16 %v532
    %v1066 = vunpack.c.l.b16 %v533
    %v1067 = vunpack.c.h.b16 %v533
    %v1068 = vunpack.c.l.b16 %v534
    %v1069 = vunpack.c.h.b16 %v534
    %v1070 = vunpack.c.l.b16 %v535
    %v1071 = vunpack.c.h.b16 %v535
    %v1072 = vunpack.c.l.b16 %v536
    %v1073 = vunpack.c.h.b16 %v536
    %v1074 = vunpack.c.l.b16 %v537
    %v1075 = vunpack.c.h.b16 %v537
    %v1076 = vunpack.c.l.b16 %v538
    %v1077 = vunpack.c.h.b16 %v538
    %v1078 = vunpack.c.l.b16 %v539
    %v1079 = vunpack.c.h.b16 %v539
    %v1080 = vunpack.c.l.b16 %v540
    %v1081 = vunpack.c.h.b16 %v540
    %v1082 = vunpack.c.l.b16 %v541
    %v1083 = vunpack.c.h.b16 %v541
    %v1084 = vunpack.c.l.b16 %v542
    %v1085 = vunpack.c.h.b16 %v542
    %v1086 = vunpack.c.l.b16 %v543
    %v1087 = vunpack.c.h.b16 %v543
    %v1088 = vunpack.c.l.b16 %v544
    %v1089 = vunpack.c.h.b16 %v544
    %v1090 = vunpack.c.l.b16 %v545
    %v1091 = vunpack.c.h.b16 %v545
    %v1092 = vunpack.c.l.b16 %v546
    %v1093 = vunpack.c.h.b16 %v546
    %v1094 = vunpack.c.l.b16 %v547
    %v1095 = vunpack.c.h.b16 %v547
    %v1096 = vunpack.c.l.b16 %v548
    %v1097 = vunpack.c.h.b16 %v548
    %v1098 = vunpack.c.l.b16 %v549
    %v1099 = vunpack.c.h.b16 %v549
    %v1100 = vunpack.c.l.b16 %v550
    %v1101 = vunpack.c.h.b16 %v550
    %v1102 = vunpack.c.l.b16 %v551
    %v1103 = vunpack.c.h.b16 %v551
    %v1104 = vunpack.c.l.b16 %v552
    %v1105 = vunpack.c.h.b16 %v552
    %v1106 = vunpack.c.l.b16 %v553
    %v1107 = vunpack.c.h.b16 %v553
    %v1108 = vunpack.c.l.b16 %v554
    %v1109 = vunpack.c.h.b16 %v554
    %v1110 = vunpack.c.l.b16 %v555
    %v1111 = vunpack.c.h.b16 %v555
    %v1112 = vunpack.c.l.b16 %v556
    %v1113 = vunpack.c.h.b16 %v556
    %v1114 = vunpack.c.l.b16 %v557
    %v1115 = vunpack.c.h.b16 %v557
    %v1116 = vunpack.c.l.b16 %v558
    %v1117 = vunpack.c.h.b16 %v558
    %v1118 = vunpack.c.l.b16 %v559
    %v1119 = vunpack.c.h.b16 %v559
    %v1120 = vunpack.c.l.b16 %v560
    %v1121 = vunpack.c.h.b16 %v560
    %v1122 = vunpack.c.l.b16 %v561
    %v1123 = vunpack.c.h.b16 %v561
    %v1124 = vunpack.c.l.b16 %v562
    %v1125 = vunpack.c.h.b16 %v562
    %v1126 = vunpack.c.l.b16 %v563
    %v1127 = vunpack.c.h.b16 %v563
    %v1128 = vunpack.c.l.b16 %v564
    %v1129 = vunpack.c.h.b16 %v564
    %v1130 = vunpack.c.l.b16 %v565
    %v1131 = vunpack.c.h.b16 %v565
    %v1132 = vunpack.c.l.b16 %v566
    %v1133 = vunpack.c.h.b16 %v566
    %v1134 = vunpack.c.l.b16 %v567
    %v1135 = vunpack.c.h.b16 %v567
    %v1136 = vunpack.c.l.b16 %v568
    %v1137 = vunpack.c.h.b16 %v568
    %v1138 = vunpack.c.l.b16 %v569
    %v1139 = vunpack.c.h.b16 %v569
    %v1140 = vunpack.c.l.b16 %v570
    %v1141 = vunpack.c.h.b16 %v570
    %v1142 = vunpack.c.l.b16 %v571
    %v1143 = vunpack.c.h.b16 %v571
    %v1144 = vunpack.c.l.b16 %v572
    %v1145 = vunpack.c.h.b16 %v572
    %v1146 = vunpack.c.l.b16 %v573
    %v1147 = vunpack.c.h.b16 %v573
    %v1148 = vunpack.c.l.b16 %v574
    %v1149 = vunpack.c.h.b16 %v574
    %v1150 = vunpack.c.l.b16 %v575
    %v1151 = vunpack.c.h.b16 %v575
    %v1152 = vunpack.c.l.b16 %v576
    %v1153 = vunpack.c.h.b16 %v576
    %v1154 = vunpack.c.l.b16 %v577
    %v1155 = vunpack.c.h.b16 %v577
    %v1156 = vunpack.c.l.b16 %v578
    %v1157 = vunpack.c.h.b16 %v578
    %v1158 = vunpack.c.l.b16 %v579
    %v1159 = vunpack.c.h.b16 %v579
    %v1160 = vunpack.c.l.b16 %v580
    %v1161 = vunpack.c.h.b16 %v580
    %v1162 = vunpack.c.l.b16 %v581
    %v1163 = vunpack.c.h.b16 %v581
    %v1164 = vunpack.c.l.b16 %v582
    %v1165 = vunpack.c.h.b16 %v582
    %v1166 = vunpack.c.l.b16 %v583
    %v1167 = vunpack.c.h.b16 %v583
    %v1168 = vunpack.c.l.b16 %v584
    %v1169 = vunpack.c.h.b16 %v584
    %v1170 = vunpack.c.l.b16 %v585
    %v1171 = vunpack.c.h.b16 %v585
    %v1172 = vunpack.c.l.b16 %v586
    %v1173 = vunpack.c.h.b16 %v586
    %v1174 = vunpack.c.l.b16 %v587
    %v1175 = vunpack.c.h.b16 %v587
    %v1176 = vunpack.c.l.b16 %v588
    %v1177 = vunpack.c.h.b16 %v588
    %v1178 = vunpack.c.l.b16 %v589
    %v1179 = vunpack.c.h.b16 %v589
    %v1180 = vunpack.c.l.b16 %v590
    %v1181 = vunpack.c.h.b16 %v590
    %v1182 = vunpack.c.l.b16 %v591
    %v1183 = vunpack.c.h.b16 %v591
    %v1184 = vunpack.c.l.b16 %v592
    %v1185 = vunpack.c.h.b16 %v592
    %v1186 = vunpack.c.l.b16 %v593
    %v1187 = vunpack.c.h.b16 %v593
    %v1188 = vunpack.c.l.b16 %v594
    %v1189 = vunpack.c.h.b16 %v594
    %v1190 = vunpack.c.l.b16 %v595
    %v1191 = vunpack.c.h.b16 %v595
    %v1192 = vunpack.c.l.b16 %v596
    %v1193 = vunpack.c.h.b16 %v596
    %v1194 = vunpack.c.l.b16 %v597
    %v1195 = vunpack.c.h.b16 %v597
    %v1196 = vunpack.c.l.b16 %v598
    %v1197 = vunpack.c.h.b16 %v598
    %v1198 = vunpack.c.l.b16 %v599
    %v1199 = vunpack.c.h.b16 %v599
    %v1200 = vunpack.c.l.b16 %v600
    %v1201 = vunpack.c.h.b16 %v600
    %v1202 = vunpack.c.l.b16 %v601
    %v1203 = vunpack.c.h.b16 %v601
    %v1204 = vunpack.c.l.b16 %v602
    %v1205 = vunpack.c.h.b16 %v602
    %v1206 = vunpack.c.l.b16 %v603
    %v1207 = vunpack.c.h.b16 %v603
    %v1208 = vunpack.c.l.b16 %v604
    %v1209 = vunpack.c.h.b16 %v604
    %v1210 = vunpack.c.l.b16 %v605
    %v1211 = vunpack.c.h.b16 %v605
    %v1212 = vunpack.c.l.b16 %v606
    %v1213 = vunpack.c.h.b16 %v606
    %v1214 = vunpack.c.l.b16 %v607
    %v1215 = vunpack.c.h.b16 %v607
    %v1216 = vpack.c.b16 %v838, %v832
    %v1217 = vpack.c.b16 %v839, %v833
    %v1218 = vpack.c.b16 %v840, %v834
    %v1219 = vpack.c.b16 %v841, %v835
    %v1220 = vpack.c.b16 %v842, %v836
    %v1221 = vpack.c.b16 %v843, %v837
    %v1222 = vpack.c.b16 %v850, %v844
    %v1223 = vpack.c.b16 %v851, %v845
    %v1224 = vpack.c.b16 %v852, %v846
    %v1225 = vpack.c.b16 %v853, %v847
    %v1226 = vpack.c.b16 %v854, %v848
    %v1227 = vpack.c.b16 %v855, %v849
    %v1228 = vpack.c.b16 %v862, %v856
    %v1229 = vpack.c.b16 %v863, %v857
    %v1230 = vpack.c.b16 %v864, %v858
    %v1231 = vpack.c.b16 %v865, %v859
    %v1232 = vpack.c.b16 %v866, %v860
    %v1233 = vpack.c.b16 %v867, %v861
    %v1234 = vpack.c.b16 %v874, %v868
    %v1235 = vpack.c.b16 %v875, %v869
    %v1236 = vpack.c.b16 %v876, %v870
    %v1237 = vpack.c.b16 %v877, %v871
    %v1238 = vpack.c.b16 %v878, %v872
    %v1239 = vpack.c.b16 %v879, %v873
    %v1240 = vpack.c.b16 %v886, %v880
    %v1241 = vpack.c.b16 %v887, %v881
    %v1242 = vpack.c.b16 %v888, %v882
    %v1243 = vpack.c.b16 %v889, %v883
    %v1244 = vpack.c.b16 %v890, %v884
    %v1245 = vpack.c.b16 %v891, %v885
    %v1246 = vpack.c.b16 %v898, %v892
    %v1247 = vpack.c.b16 %v899, %v893
    %v1248 = vpack.c.b16 %v900, %v894
    %v1249 = vpack.c.b16 %v901, %v895
    %v1250 = vpack.c.b16 %v902, %v896
    %v1251 = vpack.c.b16 %v903, %v897
    %v1252 = vpack.c.b16 %v910, %v904
    %v1253 = vpack.c.b16 %v911, %v905
    %v1254 = vpack.c.b16 %v912, %v906
    %v1255 = vpack.c.b16 %v913, %v907
    %v1256 = vpack.c.b16 %v914, %v908
    %v1257 = vpack.c.b16 %v915, %v909
    %v1258 = vpack.c.b16 %v922, %v916
    %v1259 = vpack.c.b16 %v923, %v917
    %v1260 = vpack.c.b16 %v924, %v918
    %v1261 = vpack.c.b16 %v925, %v919
    %v1262 = vpack.c.b16 %v926, %v920
    %v1263 = vpack.c.b16 %v927, %v921
    %v1264 = vpack.c.b16 %v934, %v928
    %v1265 = vpack.c.b16 %v935, %v929
    %v1266 = vpack.c.b16 %v936, %v930
    %v1267 = vpack.c.b16 %v937, %v931
    %v1268 = vpack.c.b16 %v938, %v932
    %v1269 = vpack.c.b16 %v939, %v933
    %v1270 = vpack.c.b16 %v946, %v940
    %v1271 = vpack.c.b16 %v947, %v941
    %v1272 = vpack.c.b16 %v948, %v942
    %v1273 = vpack.c.b16 %v949, %v943
    %v1274 = vpack.c.b16 %v950, %v944
    %v1275 = vpack.c.b16 %v951, %v945
    %v1276 = vpack.c.b16 %v958, %v952
    %v1277 = vpack.c.b16 %v959, %v953
    %v1278 = vpack.c.b16 %v960, %v954
    %v1279 = vpack.c.b16 %v961, %v955
    %v1280 = vpack.c.b16 %v962, %v956
    %v1281 = vpack.c.b16 %v963, %v957
    %v1282 = vpack.c.b16 %v970, %v964
    %v1283 = vpack.c.b16 %v971, %v965
    %v1284 = vpack.c.b16 %v972, %v966
    %v1285 = vpack.c.b16 %v973, %v967
    %v1286 = vpack.c.b16 %v974, %v968
    %v1287 = vpack.c.b16 %v975, %v969
    %v1288 = vpack.c.b16 %v982, %v976
    %v1289 = vpack.c.b16 %v983, %v977
    %v1290 = vpack.c.b16 %v984, %v978
    %v1291 = vpack.c.b16 %v985, %v979
    %v1292 = vpack.c.b16 %v986, %v980
    %v1293 = vpack.c.b16 %v987, %v981
    %v1294 = vpack.c.b16 %v994, %v988
    %v1295 = vpack.c.b16 %v995, %v989
    %v1296 = vpack.c.b16 %v996, %v990
    %v1297 = vpack.c.b16 %v997, %v991
    %v1298 = vpack.c.b16 %v998, %v992
    %v1299 = vpack.c.b16 %v999, %v993
    %v1300 = vpack.c.b16 %v1006, %v1000
    %v1301 = vpack.c.b16 %v1007, %v1001
    %v1302 = vpack.c.b16 %v1008, %v1002
    %v1303 = vpack.c.b16 %v1009, %v1003
    %v1304 = vpack.c.b16 %v1010, %v1004
    %v1305 = vpack.c.b16 %v1011, %v1005
    %v1306 = vpack.c.b16 %v1018, %v1012
    %v1307 = vpack.c.b16 %v1019, %v1013
    %v1308 = vpack.c.b16 %v1020, %v1014
    %v1309 = vpack.c.b16 %v1021, %v1015
    %v1310 = vpack.c.b16 %v1022, %v1016
    %v1311 = vpack.c.b16 %v1023, %v1017
    %v1312 = vpack.c.b16 %v1030, %v1024
    %v1313 = vpack.c.b16 %v1031, %v1025
    %v1314 = vpack.c.b16 %v1032, %v1026
    %v1315 = vpack.c.b16 %v1033, %v1027
    %v1316 = vpack.c.b16 %v1034, %v1028
    %v1317 = vpack.c.b16 %v1035, %v1029
    %v1318 = vpack.c.b16 %v1042, %v1036
    %v1319 = vpack.c.b16 %v1043, %v1037
    %v1320 = vpack.c.b16 %v1044, %v1038
    %v1321 = vpack.c.b16 %v1045, %v1039
    %v1322 = vpack.c.b16 %v1046, %v1040
    %v1323 = vpack.c.b16 %v1047, %v1041
    %v1324 = vpack.c.b16 %v1054, %v1048
    %v1325 = vpack.c.b16 %v1055, %v1049
    %v1326 = vpack.c.b16 %v1056, %v1050
    %v1327 = vpack.c.b16 %v1057, %v1051
    %v1328 = vpack.c.b16 %v1058, %v1052
    %v1329 = vpack.c.b16 %v1059, %v1053
    %v1330 = vpack.c.b16 %v1066, %v1060
    %v1331 = vpack.c.b16 %v1067, %v1061
    %v1332 = vpack.c.b16 %v1068, %v1062
    %v1333 = vpack.c.b16 %v1069, %v1063
    %v1334 = vpack.c.b16 %v1070, %v1064
    %v1335 = vpack.c.b16 %v1071, %v1065
    %v1336 = vpack.c.b16 %v1078, %v1072
    %v1337 = vpack.c.b16 %v1079, %v1073
    %v1338 = vpack.c.b16 %v1080, %v1074
    %v1339 = vpack.c.b16 %v1081, %v1075
    %v1340 = vpack.c.b16 %v1082, %v1076
    %v1341 = vpack.c.b16 %v1083, %v1077
    %v1342 = vpack.c.b16 %v1090, %v1084
    %v1343 = vpack.c.b16 %v1091, %v1085
    %v1344 = vpack.c.b16 %v1092, %v1086
    %v1345 = vpack.c.b16 %v1093, %v1087
    %v1346 = vpack.c.b16 %v1094, %v1088
    %v1347 = vpack.c.b16 %v1095, %v1089
    %v1348 = vpack.c.b16 %v1102, %v1096
    %v1349 = vpack.c.b16 %v1103, %v1097
    %v1350 = vpack.c.b16 %v1104, %v1098
    %v1351 = vpack.c.b16 %v1105, %v1099
    %v1352 = vpack.c.b16 %v1106, %v1100
    %v1353 = vpack.c.b16 %v1107, %v1101
    %v1354 = vpack.c.b16 %v1114, %v1108
    %v1355 = vpack.c.b16 %v1115, %v1109
    %v1356 = vpack.c.b16 %v1116, %v1110
    %v1357 = vpack.c.b16 %v1117, %v1111
    %v1358 = vpack.c.b16 %v1118, %v1112
    %v1359 = vpack.c.b16 %v1119, %v1113
    %v1360 = vpack.c.b16 %v1126, %v1120
    %v1361 = vpack.c.b16 %v1127, %v1121
    %v1362 = vpack.c.b16 %v1128, %v1122
    %v1363 = vpack.c.b16 %v1129, %v1123
    %v1364 = vpack.c.b16 %v1130, %v1124
    %v1365 = vpack.c.b16 %v1131, %v1125
    %v1366 = vpack.c.b16 %v1138, %v1132
    %v1367 = vpack.c.b16 %v1139, %v1133
    %v1368 = vpack.c.b16 %v1140, %v1134
    %v1369 = vpack.c.b16 %v1141, %v1135
    %v1370 = vpack.c.b16 %v1142, %v1136
    %v1371 = vpack.c.b16 %v1143, %v1137
    %v1372 = vpack.c.b16 %v1150, %v1144
    %v1373 = vpack.c.b16 %v1151, %v1145
    %v1374 = vpack.c.b16 %v1152, %v1146
    %v1375 = vpack.c.b16 %v1153, %v1147
    %v1376 = vpack.c.b16 %v1154, %v1148
    %v1377 = vpack.c.b16 %v1155, %v1149
    %v1378 = vpack.c.b16 %v1162, %v1156
    %v1379 = vpack.c.b16 %v1163, %v1157
    %v1380 = vpack.c.b16 %v1164, %v1158
    %v1381 = vpack.c.b16 %v1165, %v1159
    %v1382 = vpack.c.b16 %v1166, %v1160
    %v1383 = vpack.c.b16 %v1167, %v1161
    %v1384 = vpack.c.b16 %v1174, %v1168
    %v1385 = vpack.c.b16 %v1175, %v1169
    %v1386 = vpack.c.b16 %v1176, %v1170
    %v1387 = vpack.c.b16 %v1177, %v1171
    %v1388 = vpack.c.b16 %v1178, %v1172
    %v1389 = vpack.c.b16 %v1179, %v1173
    %v1390 = vpack.c.b16 %v1186, %v1180
    %v1391 = vpack.c.b16 %v1187, %v1181
    %v1392 = vpack.c.b16 %v1188, %v1182
    %v1393 = vpack.c.b16 %v1189, %v1183
    %v1394 = vpack.c.b16 %v1190, %v1184
    %v1395 = vpack.c.b16 %v1191, %v1185
    %v1396 = vpack.c.b16 %v1198, %v1192
    %v1397 = vpack.c.b16 %v1199, %v1193
    %v1398 = vpack.c.b16 %v1200, %v1194
    %v1399 = vpack.c.b16 %v1201, %v1195
    %v1400 = vpack.c.b16 %v1202, %v1196
    %v1401 = vpack.c.b16 %v1203, %v1197
    %v1402 = vpack.c.b16 %v1210, %v1204
    %v1403 = vpack.c.b16 %v1211, %v1205
    %v1404 = vpack.c.b16 %v1212, %v1206
    %v1405 = vpack.c.b16 %v1213, %v1207
    %v1406 = vpack.c.b16 %v1214, %v1208
    %v1407 = vpack.c.b16 %v1215, %v1209
    %1600 = vmatprep.subr.bf16.mxu0 %v1217
    %1601 = vmatpush1.bf16.msra.mxu0 %v1216
    %1602 = vmatprep.subr.bf16.mxu0 %v1223
    %1603 = vmatpush1.bf16.msra.mxu0 %v1222
    %1604 = vmatprep.subr.bf16.mxu0 %v1229
    %1605 = vmatpush1.bf16.msra.mxu0 %v1228
    %1606 = vmatprep.subr.bf16.mxu0 %v1235
    %1607 = vmatpush1.bf16.msra.mxu0 %v1234
    %1608 = vmatprep.subr.bf16.mxu0 %v1241
    %1609 = vmatpush1.bf16.msra.mxu0 %v1240
    %1610 = vmatprep.subr.bf16.mxu0 %v1247
    %1611 = vmatpush1.bf16.msra.mxu0 %v1246
    %1612 = vmatprep.subr.bf16.mxu0 %v1253
    %1613 = vmatpush1.bf16.msra.mxu0 %v1252
    %1614 = vmatprep.subr.bf16.mxu0 %v1259
    %1615 = vmatpush1.bf16.msra.mxu0 %v1258
    %1616 = vmatprep.subr.bf16.mxu0 %v1265
    %1617 = vmatpush1.bf16.msra.mxu0 %v1264
    %1618 = vmatprep.subr.bf16.mxu0 %v1271
    %1619 = vmatpush1.bf16.msra.mxu0 %v1270
    %1620 = vmatprep.subr.bf16.mxu0 %v1277
    %1621 = vmatpush1.bf16.msra.mxu0 %v1276
    %1622 = vmatprep.subr.bf16.mxu0 %v1283
    %1623 = vmatpush1.bf16.msra.mxu0 %v1282
    %1624 = vmatprep.subr.bf16.mxu0 %v1289
    %1625 = vmatpush1.bf16.msra.mxu0 %v1288
    %1626 = vmatprep.subr.bf16.mxu0 %v1295
    %1627 = vmatpush1.bf16.msra.mxu0 %v1294
    %1628 = vmatprep.subr.bf16.mxu0 %v1301
    %1629 = vmatpush1.bf16.msra.mxu0 %v1300
    %1630 = vmatprep.subr.bf16.mxu0 %v1307
    %1631 = vmatpush1.bf16.msra.mxu0 %v1306
    %1632 = vmatprep.mubr.bf16.mxu0 %v413
    %1633 = vmatmul.mubr.bf16.gmra.mrb[0].mxu0 %v412
    %v1634 = vpop.f32.mrb[0].mxu0
    %v1635 = vadd.f32 %v613, %v1634
    %v1636 = vpop.f32.mrb[0].mxu0
    %v1637 = vadd.f32 %v617, %v1636
    %v1638 = vpop.f32.mrb[0].mxu0
    %v1639 = vadd.f32 %v613, %v1638
    %v1640 = vpop.f32.mrb[0].mxu0
    %v1641 = vadd.f32 %v617, %v1640
    %1642 = vdwg.mxu0
    %1643 = vmatprep.subr.bf16.mxu0 %v1313
    %1644 = vmatpush1.bf16.msra.mxu0 %v1312
    %1645 = vmatprep.subr.bf16.mxu0 %v1319
    %1646 = vmatpush1.bf16.msra.mxu0 %v1318
    %1647 = vmatprep.subr.bf16.mxu0 %v1325
    %1648 = vmatpush1.bf16.msra.mxu0 %v1324
    %1649 = vmatprep.subr.bf16.mxu0 %v1331
    %1650 = vmatpush1.bf16.msra.mxu0 %v1330
    %1651 = vmatprep.subr.bf16.mxu0 %v1337
    %1652 = vmatpush1.bf16.msra.mxu0 %v1336
    %1653 = vmatprep.subr.bf16.mxu0 %v1343
    %1654 = vmatpush1.bf16.msra.mxu0 %v1342
    %1655 = vmatprep.subr.bf16.mxu0 %v1349
    %1656 = vmatpush1.bf16.msra.mxu0 %v1348
    %1657 = vmatprep.subr.bf16.mxu0 %v1355
    %1658 = vmatpush1.bf16.msra.mxu0 %v1354
    %1659 = vmatprep.subr.bf16.mxu0 %v1361
    %1660 = vmatpush1.bf16.msra.mxu0 %v1360
    %1661 = vmatprep.subr.bf16.mxu0 %v1367
    %1662 = vmatpush1.bf16.msra.mxu0 %v1366
    %1663 = vmatprep.subr.bf16.mxu0 %v1373
    %1664 = vmatpush1.bf16.msra.mxu0 %v1372
    %1665 = vmatprep.subr.bf16.mxu0 %v1379
    %1666 = vmatpush1.bf16.msra.mxu0 %v1378
    %1667 = vmatprep.subr.bf16.mxu0 %v1385
    %1668 = vmatpush1.bf16.msra.mxu0 %v1384
    %1669 = vmatprep.subr.bf16.mxu0 %v1391
    %1670 = vmatpush1.bf16.msra.mxu0 %v1390
    %1671 = vmatprep.subr.bf16.mxu0 %v1397
    %1672 = vmatpush1.bf16.msra.mxu0 %v1396
    %1673 = vmatprep.subr.bf16.mxu0 %v1403
    %1674 = vmatpush1.bf16.msra.mxu0 %v1402
    %1675 = vmatprep.mubr.bf16.mxu0 %v415
    %1676 = vmatmul.mubr.bf16.gmra.mrb[0].mxu0 %v414
    %v1677 = vpop.f32.mrb[0].mxu0
    %v1678 = vadd.f32 %v1635, %v1677
    %v1679 = vpop.f32.mrb[0].mxu0
    %v1680 = vadd.f32 %v1637, %v1679
    %v1681 = vpop.f32.mrb[0].mxu0
    %v1682 = vadd.f32 %v1639, %v1681
    %v1683 = vpop.f32.mrb[0].mxu0
    %v1684 = vadd.f32 %v1641, %v1683
    %1685 = vdwg.mxu0
    %1686 = vmatprep.subr.bf16.mxu0 %v1219
    %1687 = vmatpush1.bf16.msra.mxu0 %v1218
    %1688 = vmatprep.subr.bf16.mxu0 %v1225
    %1689 = vmatpush1.bf16.msra.mxu0 %v1224
    %1690 = vmatprep.subr.bf16.mxu0 %v1231
    %1691 = vmatpush1.bf16.msra.mxu0 %v1230
    %1692 = vmatprep.subr.bf16.mxu0 %v1237
    %1693 = vmatpush1.bf16.msra.mxu0 %v1236
    %1694 = vmatprep.subr.bf16.mxu0 %v1243
    %1695 = vmatpush1.bf16.msra.mxu0 %v1242
    %1696 = vmatprep.subr.bf16.mxu0 %v1249
    %1697 = vmatpush1.bf16.msra.mxu0 %v1248
    %1698 = vmatprep.subr.bf16.mxu0 %v1255
    %1699 = vmatpush1.bf16.msra.mxu0 %v1254
    %1700 = vmatprep.subr.bf16.mxu0 %v1261
    %1701 = vmatpush1.bf16.msra.mxu0 %v1260
    %1702 = vmatprep.subr.bf16.mxu0 %v1267
    %1703 = vmatpush1.bf16.msra.mxu0 %v1266
    %1704 = vmatprep.subr.bf16.mxu0 %v1273
    %1705 = vmatpush1.bf16.msra.mxu0 %v1272
    %1706 = vmatprep.subr.bf16.mxu0 %v1279
    %1707 = vmatpush1.bf16.msra.mxu0 %v1278
    %1708 = vmatprep.subr.bf16.mxu0 %v1285
    %1709 = vmatpush1.bf16.msra.mxu0 %v1284
    %1710 = vmatprep.subr.bf16.mxu0 %v1291
    %1711 = vmatpush1.bf16.msra.mxu0 %v1290
    %1712 = vmatprep.subr.bf16.mxu0 %v1297
    %1713 = vmatpush1.bf16.msra.mxu0 %v1296
    %1714 = vmatprep.subr.bf16.mxu0 %v1303
    %1715 = vmatpush1.bf16.msra.mxu0 %v1302
    %1716 = vmatprep.subr.bf16.mxu0 %v1309
    %1717 = vmatpush1.bf16.msra.mxu0 %v1308
    %1718 = vmatprep.mubr.bf16.mxu0 %v413
    %1719 = vmatmul.mubr.bf16.gmra.mrb[0].mxu0 %v412
    %v1720 = vpop.f32.mrb[0].mxu0
    %v1721 = vadd.f32 %v621, %v1720
    %v1722 = vpop.f32.mrb[0].mxu0
    %v1723 = vadd.f32 %v625, %v1722
    %v1724 = vpop.f32.mrb[0].mxu0
    %v1725 = vadd.f32 %v621, %v1724
    %v1726 = vpop.f32.mrb[0].mxu0
    %v1727 = vadd.f32 %v625, %v1726
    %1728 = vdwg.mxu0
    %1729 = vmatprep.subr.bf16.mxu0 %v1315
    %1730 = vmatpush1.bf16.msra.mxu0 %v1314
    %1731 = vmatprep.subr.bf16.mxu0 %v1321
    %1732 = vmatpush1.bf16.msra.mxu0 %v1320
    %1733 = vmatprep.subr.bf16.mxu0 %v1327
    %1734 = vmatpush1.bf16.msra.mxu0 %v1326
    %1735 = vmatprep.subr.bf16.mxu0 %v1333
    %1736 = vmatpush1.bf16.msra.mxu0 %v1332
    %1737 = vmatprep.subr.bf16.mxu0 %v1339
    %1738 = vmatpush1.bf16.msra.mxu0 %v1338
    %1739 = vmatprep.subr.bf16.mxu0 %v1345
    %1740 = vmatpush1.bf16.msra.mxu0 %v1344
    %1741 = vmatprep.subr.bf16.mxu0 %v1351
    %1742 = vmatpush1.bf16.msra.mxu0 %v1350
    %1743 = vmatprep.subr.bf16.mxu0 %v1357
    %1744 = vmatpush1.bf16.msra.mxu0 %v1356
    %1745 = vmatprep.subr.bf16.mxu0 %v1363
    %1746 = vmatpush1.bf16.msra.mxu0 %v1362
    %1747 = vmatprep.subr.bf16.mxu0 %v1369
    %1748 = vmatpush1.bf16.msra.mxu0 %v1368
    %1749 = vmatprep.subr.bf16.mxu0 %v1375
    %1750 = vmatpush1.bf16.msra.mxu0 %v1374
    %1751 = vmatprep.subr.bf16.mxu0 %v1381
    %1752 = vmatpush1.bf16.msra.mxu0 %v1380
    %1753 = vmatprep.subr.bf16.mxu0 %v1387
    %1754 = vmatpush1.bf16.msra.mxu0 %v1386
    %1755 = vmatprep.subr.bf16.mxu0 %v1393
    %1756 = vmatpush1.bf16.msra.mxu0 %v1392
    %1757 = vmatprep.subr.bf16.mxu0 %v1399
    %1758 = vmatpush1.bf16.msra.mxu0 %v1398
    %1759 = vmatprep.subr.bf16.mxu0 %v1405
    %1760 = vmatpush1.bf16.msra.mxu0 %v1404
    %1761 = vmatprep.mubr.bf16.mxu0 %v415
    %1762 = vmatmul.mubr.bf16.gmra.mrb[0].mxu0 %v414
    %v1763 = vpop.f32.mrb[0].mxu0
    %v1764 = vadd.f32 %v1721, %v1763
    %v1765 = vpop.f32.mrb[0].mxu0
    %v1766 = vadd.f32 %v1723, %v1765
    %v1767 = vpop.f32.mrb[0].mxu0
    %v1768 = vadd.f32 %v1725, %v1767
    %v1769 = vpop.f32.mrb[0].mxu0
    %v1770 = vadd.f32 %v1727, %v1769
    %1771 = vdwg.mxu0
    %1772 = vmatprep.subr.bf16.mxu0 %v1221
    %1773 = vmatpush1.bf16.msra.mxu0 %v1220
    %1774 = vmatprep.subr.bf16.mxu0 %v1227
    %1775 = vmatpush1.bf16.msra.mxu0 %v1226
    %1776 = vmatprep.subr.bf16.mxu0 %v1233
    %1777 = vmatpush1.bf16.msra.mxu0 %v1232
    %1778 = vmatprep.subr.bf16.mxu0 %v1239
    %1779 = vmatpush1.bf16.msra.mxu0 %v1238
    %1780 = vmatprep.subr.bf16.mxu0 %v1245
    %1781 = vmatpush1.bf16.msra.mxu0 %v1244
    %1782 = vmatprep.subr.bf16.mxu0 %v1251
    %1783 = vmatpush1.bf16.msra.mxu0 %v1250
    %1784 = vmatprep.subr.bf16.mxu0 %v1257
    %1785 = vmatpush1.bf16.msra.mxu0 %v1256
    %1786 = vmatprep.subr.bf16.mxu0 %v1263
    %1787 = vmatpush1.bf16.msra.mxu0 %v1262
    %1788 = vmatprep.subr.bf16.mxu0 %v1269
    %1789 = vmatpush1.bf16.msra.mxu0 %v1268
    %1790 = vmatprep.subr.bf16.mxu0 %v1275
    %1791 = vmatpush1.bf16.msra.mxu0 %v1274
    %1792 = vmatprep.subr.bf16.mxu0 %v1281
    %1793 = vmatpush1.bf16.msra.mxu0 %v1280
    %1794 = vmatprep.subr.bf16.mxu0 %v1287
    %1795 = vmatpush1.bf16.msra.mxu0 %v1286
    %1796 = vmatprep.subr.bf16.mxu0 %v1293
    %1797 = vmatpush1.bf16.msra.mxu0 %v1292
    %1798 = vmatprep.subr.bf16.mxu0 %v1299
    %1799 = vmatpush1.bf16.msra.mxu0 %v1298
    %1800 = vmatprep.subr.bf16.mxu0 %v1305
    %1801 = vmatpush1.bf16.msra.mxu0 %v1304
    %1802 = vmatprep.subr.bf16.mxu0 %v1311
    %1803 = vmatpush1.bf16.msra.mxu0 %v1310
    %1804 = vmatprep.mubr.bf16.mxu0 %v413
    %1805 = vmatmul.mubr.bf16.gmra.mrb[0].mxu0 %v412
    %v1806 = vpop.f32.mrb[0].mxu0
    %v1807 = vadd.f32 %v629, %v1806
    %v1808 = vpop.f32.mrb[0].mxu0
    %v1809 = vadd.f32 %v633, %v1808
    %v1810 = vpop.f32.mrb[0].mxu0
    %v1811 = vadd.f32 %v629, %v1810
    %v1812 = vpop.f32.mrb[0].mxu0
    %v1813 = vadd.f32 %v633, %v1812
    %1814 = vdwg.mxu0
    %1815 = vmatprep.subr.bf16.mxu0 %v1317
    %1816 = vmatpush1.bf16.msra.mxu0 %v1316
    %1817 = vmatprep.subr.bf16.mxu0 %v1323
    %1818 = vmatpush1.bf16.msra.mxu0 %v1322
    %1819 = vmatprep.subr.bf16.mxu0 %v1329
    %1820 = vmatpush1.bf16.msra.mxu0 %v1328
    %1821 = vmatprep.subr.bf16.mxu0 %v1335
    %1822 = vmatpush1.bf16.msra.mxu0 %v1334
    %1823 = vmatprep.subr.bf16.mxu0 %v1341
    %1824 = vmatpush1.bf16.msra.mxu0 %v1340
    %1825 = vmatprep.subr.bf16.mxu0 %v1347
    %1826 = vmatpush1.bf16.msra.mxu0 %v1346
    %1827 = vmatprep.subr.bf16.mxu0 %v1353
    %1828 = vmatpush1.bf16.msra.mxu0 %v1352
    %1829 = vmatprep.subr.bf16.mxu0 %v1359
    %1830 = vmatpush1.bf16.msra.mxu0 %v1358
    %1831 = vmatprep.subr.bf16.mxu0 %v1365
    %1832 = vmatpush1.bf16.msra.mxu0 %v1364
    %1833 = vmatprep.subr.bf16.mxu0 %v1371
    %1834 = vmatpush1.bf16.msra.mxu0 %v1370
    %1835 = vmatprep.subr.bf16.mxu0 %v1377
    %1836 = vmatpush1.bf16.msra.mxu0 %v1376
    %1837 = vmatprep.subr.bf16.mxu0 %v1383
    %1838 = vmatpush1.bf16.msra.mxu0 %v1382
    %1839 = vmatprep.subr.bf16.mxu0 %v1389
    %1840 = vmatpush1.bf16.msra.mxu0 %v1388
    %1841 = vmatprep.subr.bf16.mxu0 %v1395
    %1842 = vmatpush1.bf16.msra.mxu0 %v1394
    %1843 = vmatprep.subr.bf16.mxu0 %v1401
    %1844 = vmatpush1.bf16.msra.mxu0 %v1400
    %1845 = vmatprep.subr.bf16.mxu0 %v1407
    %1846 = vmatpush1.bf16.msra.mxu0 %v1406
    %1847 = vmatprep.mubr.bf16.mxu0 %v415
    %1848 = vmatmul.mubr.bf16.gmra.mrb[0].mxu0 %v414
    %v1849 = vpop.f32.mrb[0].mxu0
    %v1850 = vadd.f32 %v1807, %v1849
    %v1851 = vpop.f32.mrb[0].mxu0
    %v1852 = vadd.f32 %v1809, %v1851
    %v1853 = vpop.f32.mrb[0].mxu0
    %v1854 = vadd.f32 %v1811, %v1853
    %v1855 = vpop.f32.mrb[0].mxu0
    %v1856 = vadd.f32 %v1813, %v1855
    %1857 = vdwg.mxu0
    %v1858 = vmul.f32 %v1678, 0.5
    %v1859 = vmul.f32 %v1680, 0.5
    %v1860 = vmul.f32 %v1682, 0.5
    %v1861 = vmul.f32 %v1684, 0.5
    %v1862 = vtanh.pop %v1858
    %v1863 = vtanh.pop %v1859
    %v1864 = vtanh.pop %v1860
    %v1865 = vtanh.pop %v1861
    %v1866 = vadd.f32 %v1862, 1.0
    %v1867 = vadd.f32 %v1863, 1.0
    %v1868 = vadd.f32 %v1864, 1.0
    %v1869 = vadd.f32 %v1865, 1.0
    %v1870 = vmul.f32 %v1866, 0.5
    %v1871 = vmul.f32 %v1867, 0.5
    %v1872 = vmul.f32 %v1868, 0.5
    %v1873 = vmul.f32 %v1869, 0.5
    %v1874 = vtanh.pop %v1764
    %v1875 = vtanh.pop %v1766
    %v1876 = vtanh.pop %v1768
    %v1877 = vtanh.pop %v1770
    %v1878 = vmul.f32 %v1850, 0.5
    %v1879 = vmul.f32 %v1852, 0.5
    %v1880 = vmul.f32 %v1854, 0.5
    %v1881 = vmul.f32 %v1856, 0.5
    %v1882 = vtanh.pop %v1878
    %v1883 = vtanh.pop %v1879
    %v1884 = vtanh.pop %v1880
    %v1885 = vtanh.pop %v1881
    %v1886 = vadd.f32 %v1882, 1.0
    %v1887 = vadd.f32 %v1883, 1.0
    %v1888 = vadd.f32 %v1884, 1.0
    %v1889 = vadd.f32 %v1885, 1.0
    %v1890 = vmul.f32 %v1886, 0.5
    %v1891 = vmul.f32 %v1887, 0.5
    %v1892 = vmul.f32 %v1888, 0.5
    %v1893 = vmul.f32 %v1889, 0.5
    %v1894 = vmul.f32 %v1870, %v1874
    %v1895 = vmul.f32 %v1871, %v1875
    %v1896 = vmul.f32 %v1872, %v1876
    %v1897 = vmul.f32 %v1873, %v1877
    %v1898 = vtanh.pop %v1894
    %v1899 = vtanh.pop %v1895
    %v1900 = vtanh.pop %v1896
    %v1901 = vtanh.pop %v1897
    %v1902 = vmul.f32 %v1890, %v1898
    %v1903 = vmul.f32 %v1891, %v1899
    %v1904 = vmul.f32 %v1892, %v1900
    %v1905 = vmul.f32 %v1893, %v1901
    %v1908 = vcombine.low %v1902, %v1903
    %v1910 = vunpack.c.l.s4 1966171168
    %v1911 = vunpack.c.0.s8 %v1910
    %v1912 = vlaneseq
    %v1913 = vshrl.u32 %v1912, 7
    %v1914 = vsub.s32 %v1911, %v1913
    %v1915 = vrot.slane %v1908, %v1914
    %v1917 = vunpack.c.l.s4 1966171168
    %v1918 = vunpack.c.0.s8 %v1917
    %v1919 = vlaneseq
    %v1920 = vshrl.u32 %v1919, 7
    %v1921 = vsub.s32 %v1918, %v1920
    %v1922 = vrot.slane %v1915, %v1921
    %v1924 = vlaneseq
    %vm1925 = vcmp.ge.s32.totalorder %v1924, 0
    %vm1926 = vcmp.lt.s32.totalorder %v1924, 256
    %vm1927 = vmand %vm1925, %vm1926
    %1928 = vst.msk [vmem:[#allocation2] sm:$0x3] %vm1927, %v1922
    %v1929 = vcombine.high %v1915, %v1915
    %v1931 = vunpack.c.l.s4 1966171168
    %v1932 = vunpack.c.0.s8 %v1931
    %v1933 = vlaneseq
    %v1934 = vshrl.u32 %v1933, 7
    %v1935 = vsub.s32 %v1932, %v1934
    %v1936 = vrot.slane %v1929, %v1935
    %1938 = vst.msk [vmem:[#allocation2 + $0x2] sm:$0x3] %vm1927, %v1936
    %v1939 = vcombine.high %v1922, %v1922
    %1941 = vst.msk [vmem:[#allocation2 + $0x4] sm:$0x3] %vm1927, %v1939
    %v1942 = vcombine.high %v1936, %v1936
    %1944 = vst.msk [vmem:[#allocation2 + $0x6] sm:$0x3] %vm1927, %v1942
    %v1945 = vcombine.high %v1902, %v1903
    %v1947 = vunpack.c.l.s4 1966171168
    %v1948 = vunpack.c.0.s8 %v1947
    %v1949 = vlaneseq
    %v1950 = vshrl.u32 %v1949, 7
    %v1951 = vsub.s32 %v1948, %v1950
    %v1952 = vrot.slane %v1945, %v1951
    %v1954 = vunpack.c.l.s4 1966171168
    %v1955 = vunpack.c.0.s8 %v1954
    %v1956 = vlaneseq
    %v1957 = vshrl.u32 %v1956, 7
    %v1958 = vsub.s32 %v1955, %v1957
    %v1959 = vrot.slane %v1952, %v1958
    %1961 = vst.msk [vmem:[#allocation2 + $0x8] sm:$0x3] %vm1927, %v1959
    %v1962 = vcombine.high %v1952, %v1952
    %v1964 = vunpack.c.l.s4 1966171168
    %v1965 = vunpack.c.0.s8 %v1964
    %v1966 = vlaneseq
    %v1967 = vshrl.u32 %v1966, 7
    %v1968 = vsub.s32 %v1965, %v1967
    %v1969 = vrot.slane %v1962, %v1968
    %1971 = vst.msk [vmem:[#allocation2 + $0xa] sm:$0x3] %vm1927, %v1969
    %v1972 = vcombine.high %v1959, %v1959
    %1974 = vst.msk [vmem:[#allocation2 + $0xc] sm:$0x3] %vm1927, %v1972
    %v1975 = vcombine.high %v1969, %v1969
    %1977 = vst.msk [vmem:[#allocation2 + $0xe] sm:$0x3] %vm1927, %v1975
    %v1980 = vcombine.low %v1904, %v1905
    %v1982 = vunpack.c.l.s4 1966171168
    %v1983 = vunpack.c.0.s8 %v1982
    %v1984 = vlaneseq
    %v1985 = vshrl.u32 %v1984, 7
    %v1986 = vsub.s32 %v1983, %v1985
    %v1987 = vrot.slane %v1980, %v1986
    %v1989 = vunpack.c.l.s4 1966171168
    %v1990 = vunpack.c.0.s8 %v1989
    %v1991 = vlaneseq
    %v1992 = vshrl.u32 %v1991, 7
    %v1993 = vsub.s32 %v1990, %v1992
    %v1994 = vrot.slane %v1987, %v1993
    %1996 = vst.msk [vmem:[#allocation2 + $0x10] sm:$0x3] %vm1927, %v1994
    %v1997 = vcombine.high %v1987, %v1987
    %v1999 = vunpack.c.l.s4 1966171168
    %v2000 = vunpack.c.0.s8 %v1999
    %v2001 = vlaneseq
    %v2002 = vshrl.u32 %v2001, 7
    %v2003 = vsub.s32 %v2000, %v2002
    %v2004 = vrot.slane %v1997, %v2003
    %2006 = vst.msk [vmem:[#allocation2 + $0x12] sm:$0x3] %vm1927, %v2004
    %v2007 = vld [vmem:[#allocation2] sm:$0xff]
    %v2008 = vld [vmem:[#allocation2 + $0x8] sm:$0xff]
    %v2009 = vld [vmem:[#allocation2 + $0x10] sm:$0xf]
    %v2013 = vlaneseq
    %v2014 = vshrl.u32 %v2013, 7
    %v2015 = vsub.s32 0, %v2014
    %v2016 = vrot.slane %v2007, %v2015
    %v2017 = vlaneseq
    %v2018 = vshrl.u32 %v2017, 7
    %v2019 = vsub.s32 1, %v2018
    %v2020 = vrot.slane %v2007, %v2019
    %v2021 = vlaneseq
    %v2022 = vshrl.u32 %v2021, 7
    %v2023 = vsub.s32 2, %v2022
    %v2024 = vrot.slane %v2007, %v2023
    %v2025 = vlaneseq
    %v2026 = vshrl.u32 %v2025, 7
    %v2027 = vsub.s32 3, %v2026
    %v2028 = vrot.slane %v2007, %v2027
    %v2029 = vlaneseq
    %v2030 = vshrl.u32 %v2029, 7
    %v2031 = vsub.s32 4, %v2030
    %v2032 = vrot.slane %v2007, %v2031
    %v2033 = vlaneseq
    %v2034 = vshrl.u32 %v2033, 7
    %v2035 = vsub.s32 5, %v2034
    %v2036 = vrot.slane %v2007, %v2035
    %v2037 = vlaneseq
    %v2038 = vshrl.u32 %v2037, 7
    %v2039 = vsub.s32 6, %v2038
    %v2040 = vrot.slane %v2007, %v2039
    %v2041 = vlaneseq
    %v2042 = vshrl.u32 %v2041, 7
    %v2043 = vsub.s32 7, %v2042
    %v2044 = vrot.slane %v2007, %v2043
    %v2045 = vlaneseq
    %v2046 = vshrl.u32 %v2045, 7
    %v2047 = vsub.s32 0, %v2046
    %v2048 = vrot.slane %v2008, %v2047
    %v2049 = vlaneseq
    %v2050 = vshrl.u32 %v2049, 7
    %v2051 = vsub.s32 1, %v2050
    %v2052 = vrot.slane %v2008, %v2051
    %v2053 = vlaneseq
    %v2054 = vshrl.u32 %v2053, 7
    %v2055 = vsub.s32 2, %v2054
    %v2056 = vrot.slane %v2008, %v2055
    %v2057 = vlaneseq
    %v2058 = vshrl.u32 %v2057, 7
    %v2059 = vsub.s32 3, %v2058
    %v2060 = vrot.slane %v2008, %v2059
    %v2061 = vlaneseq
    %v2062 = vshrl.u32 %v2061, 7
    %v2063 = vsub.s32 4, %v2062
    %v2064 = vrot.slane %v2008, %v2063
    %v2065 = vlaneseq
    %v2066 = vshrl.u32 %v2065, 7
    %v2067 = vsub.s32 5, %v2066
    %v2068 = vrot.slane %v2008, %v2067
    %v2069 = vlaneseq
    %v2070 = vshrl.u32 %v2069, 7
    %v2071 = vsub.s32 6, %v2070
    %v2072 = vrot.slane %v2008, %v2071
    %v2073 = vlaneseq
    %v2074 = vshrl.u32 %v2073, 7
    %v2075 = vsub.s32 7, %v2074
    %v2076 = vrot.slane %v2008, %v2075
    %v2077 = vlaneseq
    %v2078 = vshrl.u32 %v2077, 7
    %v2079 = vsub.s32 0, %v2078
    %v2080 = vrot.slane %v2009, %v2079
    %v2081 = vlaneseq
    %v2082 = vshrl.u32 %v2081, 7
    %v2083 = vsub.s32 1, %v2082
    %v2084 = vrot.slane %v2009, %v2083
    %v2085 = vlaneseq
    %v2086 = vshrl.u32 %v2085, 7
    %v2087 = vsub.s32 2, %v2086
    %v2088 = vrot.slane %v2009, %v2087
    %v2089 = vlaneseq
    %v2090 = vshrl.u32 %v2089, 7
    %v2091 = vsub.s32 3, %v2090
    %v2092 = vrot.slane %v2009, %v2091
    %v2113 = vpack.c.bf16 %v2016, %v2016
    %v2114 = vpack.c.bf16 %v2020, %v2020
    %v2115 = vpack.c.bf16 %v2024, %v2024
    %v2116 = vpack.c.bf16 %v2028, %v2028
    %v2117 = vpack.c.bf16 %v2032, %v2032
    %v2118 = vpack.c.bf16 %v2036, %v2036
    %v2119 = vpack.c.bf16 %v2040, %v2040
    %v2120 = vpack.c.bf16 %v2044, %v2044
    %v2121 = vpack.c.bf16 %v2048, %v2048
    %v2122 = vpack.c.bf16 %v2052, %v2052
    %v2123 = vpack.c.bf16 %v2056, %v2056
    %v2124 = vpack.c.bf16 %v2060, %v2060
    %v2125 = vpack.c.bf16 %v2064, %v2064
    %v2126 = vpack.c.bf16 %v2068, %v2068
    %v2127 = vpack.c.bf16 %v2072, %v2072
    %v2128 = vpack.c.bf16 %v2076, %v2076
    %v2129 = vpack.c.bf16 %v2080, %v2080
    %v2130 = vpack.c.bf16 %v2084, %v2084
    %v2131 = vpack.c.bf16 %v2088, %v2088
    %v2132 = vpack.c.bf16 %v2092, %v2092
    %v2133 = vld [vmem:[#allocation10] sm:$0xf]
    %v2134 = vld [vmem:[#allocation10 + $0x4] sm:$0xf]
    %v2135 = vld [vmem:[#allocation10 + $0x8] sm:$0xf]
    %v2136 = vld [vmem:[#allocation10 + $0xc] sm:$0xf]
    %v2137 = vld [vmem:[#allocation10 + $0x10] sm:$0xf]
    %v2138 = vld [vmem:[#allocation10 + $0x14] sm:$0xf]
    %v2139 = vld [vmem:[#allocation10 + $0x18] sm:$0xf]
    %v2140 = vld [vmem:[#allocation10 + $0x1c] sm:$0xf]
    %v2141 = vld [vmem:[#allocation10 + $0x20] sm:$0xf]
    %v2142 = vld [vmem:[#allocation10 + $0x24] sm:$0xf]
    %v2143 = vld [vmem:[#allocation10 + $0x28] sm:$0xf]
    %v2144 = vld [vmem:[#allocation10 + $0x2c] sm:$0xf]
    %v2145 = vld [vmem:[#allocation10 + $0x30] sm:$0xf]
    %v2146 = vld [vmem:[#allocation10 + $0x34] sm:$0xf]
    %v2147 = vld [vmem:[#allocation10 + $0x38] sm:$0xf]
    %v2148 = vld [vmem:[#allocation10 + $0x3c] sm:$0xf]
    %v2149 = vld [vmem:[#allocation10 + $0x40] sm:$0xf]
    %v2150 = vld [vmem:[#allocation10 + $0x44] sm:$0xf]
    %v2151 = vld [vmem:[#allocation10 + $0x48] sm:$0xf]
    %v2152 = vld [vmem:[#allocation10 + $0x4c] sm:$0xf]
    %v2153 = vld [vmem:[#allocation10 + $0x50] sm:$0xf]
    %v2154 = vld [vmem:[#allocation10 + $0x54] sm:$0xf]
    %v2155 = vld [vmem:[#allocation10 + $0x58] sm:$0xf]
    %v2156 = vld [vmem:[#allocation10 + $0x5c] sm:$0xf]
    %v2157 = vld [vmem:[#allocation10 + $0x60] sm:$0xf]
    %v2158 = vld [vmem:[#allocation10 + $0x64] sm:$0xf]
    %v2159 = vld [vmem:[#allocation10 + $0x68] sm:$0xf]
    %v2160 = vld [vmem:[#allocation10 + $0x6c] sm:$0xf]
    %v2161 = vld [vmem:[#allocation10 + $0x70] sm:$0xf]
    %v2162 = vld [vmem:[#allocation10 + $0x74] sm:$0xf]
    %v2163 = vld [vmem:[#allocation10 + $0x78] sm:$0xf]
    %v2164 = vld [vmem:[#allocation10 + $0x7c] sm:$0xf]
    %v2165 = vld [vmem:[#allocation10 + $0x80] sm:$0xf]
    %v2166 = vld [vmem:[#allocation10 + $0x84] sm:$0xf]
    %v2167 = vld [vmem:[#allocation10 + $0x88] sm:$0xf]
    %v2168 = vld [vmem:[#allocation10 + $0x8c] sm:$0xf]
    %v2169 = vld [vmem:[#allocation10 + $0x90] sm:$0xf]
    %v2170 = vld [vmem:[#allocation10 + $0x94] sm:$0xf]
    %v2171 = vld [vmem:[#allocation10 + $0x98] sm:$0xf]
    %v2172 = vld [vmem:[#allocation10 + $0x9c] sm:$0xf]
    %v2173 = vld [vmem:[#allocation10 + $0xa0] sm:$0xf]
    %v2174 = vld [vmem:[#allocation10 + $0xa4] sm:$0xf]
    %v2175 = vld [vmem:[#allocation10 + $0xa8] sm:$0xf]
    %v2176 = vld [vmem:[#allocation10 + $0xac] sm:$0xf]
    %v2177 = vld [vmem:[#allocation10 + $0xb0] sm:$0xf]
    %v2178 = vld [vmem:[#allocation10 + $0xb4] sm:$0xf]
    %v2179 = vld [vmem:[#allocation10 + $0xb8] sm:$0xf]
    %v2180 = vld [vmem:[#allocation10 + $0xbc] sm:$0xf]
    %v2181 = vld [vmem:[#allocation10 + $0xc0] sm:$0xf]
    %v2182 = vld [vmem:[#allocation10 + $0xc4] sm:$0xf]
    %v2183 = vld [vmem:[#allocation10 + $0xc8] sm:$0xf]
    %v2184 = vld [vmem:[#allocation10 + $0xcc] sm:$0xf]
    %v2185 = vld [vmem:[#allocation10 + $0xd0] sm:$0xf]
    %v2186 = vld [vmem:[#allocation10 + $0xd4] sm:$0xf]
    %v2187 = vld [vmem:[#allocation10 + $0xd8] sm:$0xf]
    %v2188 = vld [vmem:[#allocation10 + $0xdc] sm:$0xf]
    %v2189 = vld [vmem:[#allocation10 + $0xe0] sm:$0xf]
    %v2190 = vld [vmem:[#allocation10 + $0xe4] sm:$0xf]
    %v2191 = vld [vmem:[#allocation10 + $0xe8] sm:$0xf]
    %v2192 = vld [vmem:[#allocation10 + $0xec] sm:$0xf]
    %v2193 = vld [vmem:[#allocation10 + $0xf0] sm:$0xf]
    %v2194 = vld [vmem:[#allocation10 + $0xf4] sm:$0xf]
    %v2195 = vld [vmem:[#allocation10 + $0xf8] sm:$0xf]
    %v2196 = vld [vmem:[#allocation10 + $0xfc] sm:$0xf]
    %v2197 = vld [vmem:[#allocation10 + $0x100] sm:$0xf]
    %v2198 = vld [vmem:[#allocation10 + $0x104] sm:$0xf]
    %v2199 = vld [vmem:[#allocation10 + $0x108] sm:$0xf]
    %v2200 = vld [vmem:[#allocation10 + $0x10c] sm:$0xf]
    %v2201 = vld [vmem:[#allocation10 + $0x110] sm:$0xf]
    %v2202 = vld [vmem:[#allocation10 + $0x114] sm:$0xf]
    %v2203 = vld [vmem:[#allocation10 + $0x118] sm:$0xf]
    %v2204 = vld [vmem:[#allocation10 + $0x11c] sm:$0xf]
    %v2205 = vld [vmem:[#allocation10 + $0x120] sm:$0xf]
    %v2206 = vld [vmem:[#allocation10 + $0x124] sm:$0xf]
    %v2207 = vld [vmem:[#allocation10 + $0x128] sm:$0xf]
    %v2208 = vld [vmem:[#allocation10 + $0x12c] sm:$0xf]
    %v2209 = vld [vmem:[#allocation10 + $0x130] sm:$0xf]
    %v2210 = vld [vmem:[#allocation10 + $0x134] sm:$0xf]
    %v2211 = vld [vmem:[#allocation10 + $0x138] sm:$0xf]
    %v2212 = vld [vmem:[#allocation10 + $0x13c] sm:$0xf]
    %v2213 = vld [vmem:[#allocation10 + $0x140] sm:$0xf]
    %v2214 = vld [vmem:[#allocation10 + $0x144] sm:$0xf]
    %v2215 = vld [vmem:[#allocation10 + $0x148] sm:$0xf]
    %v2216 = vld [vmem:[#allocation10 + $0x14c] sm:$0xf]
    %v2217 = vld [vmem:[#allocation10 + $0x150] sm:$0xf]
    %v2218 = vld [vmem:[#allocation10 + $0x154] sm:$0xf]
    %v2219 = vld [vmem:[#allocation10 + $0x158] sm:$0xf]
    %v2220 = vld [vmem:[#allocation10 + $0x15c] sm:$0xf]
    %v2221 = vld [vmem:[#allocation10 + $0x160] sm:$0xf]
    %v2222 = vld [vmem:[#allocation10 + $0x164] sm:$0xf]
    %v2223 = vld [vmem:[#allocation10 + $0x168] sm:$0xf]
    %v2224 = vld [vmem:[#allocation10 + $0x16c] sm:$0xf]
    %v2225 = vld [vmem:[#allocation10 + $0x170] sm:$0xf]
    %v2226 = vld [vmem:[#allocation10 + $0x174] sm:$0xf]
    %v2227 = vld [vmem:[#allocation10 + $0x178] sm:$0xf]
    %v2228 = vld [vmem:[#allocation10 + $0x17c] sm:$0xf]
    %v2229 = vld [vmem:[#allocation10 + $0x180] sm:$0xf]
    %v2230 = vld [vmem:[#allocation10 + $0x184] sm:$0xf]
    %v2231 = vld [vmem:[#allocation10 + $0x188] sm:$0xf]
    %v2232 = vld [vmem:[#allocation10 + $0x18c] sm:$0xf]
    %v2233 = vld [vmem:[#allocation10 + $0x190] sm:$0xf]
    %v2234 = vld [vmem:[#allocation10 + $0x194] sm:$0xf]
    %v2235 = vld [vmem:[#allocation10 + $0x198] sm:$0xf]
    %v2236 = vld [vmem:[#allocation10 + $0x19c] sm:$0xf]
    %v2237 = vld [vmem:[#allocation10 + $0x1a0] sm:$0xf]
    %v2238 = vld [vmem:[#allocation10 + $0x1a4] sm:$0xf]
    %v2239 = vld [vmem:[#allocation10 + $0x1a8] sm:$0xf]
    %v2240 = vld [vmem:[#allocation10 + $0x1ac] sm:$0xf]
    %v2241 = vld [vmem:[#allocation10 + $0x1b0] sm:$0xf]
    %v2242 = vld [vmem:[#allocation10 + $0x1b4] sm:$0xf]
    %v2243 = vld [vmem:[#allocation10 + $0x1b8] sm:$0xf]
    %v2244 = vld [vmem:[#allocation10 + $0x1bc] sm:$0xf]
    %v2245 = vld [vmem:[#allocation10 + $0x1c0] sm:$0xf]
    %v2246 = vld [vmem:[#allocation10 + $0x1c4] sm:$0xf]
    %v2247 = vld [vmem:[#allocation10 + $0x1c8] sm:$0xf]
    %v2248 = vld [vmem:[#allocation10 + $0x1cc] sm:$0xf]
    %v2249 = vld [vmem:[#allocation10 + $0x1d0] sm:$0xf]
    %v2250 = vld [vmem:[#allocation10 + $0x1d4] sm:$0xf]
    %v2251 = vld [vmem:[#allocation10 + $0x1d8] sm:$0xf]
    %v2252 = vld [vmem:[#allocation10 + $0x1dc] sm:$0xf]
    %v2253 = vld [vmem:[#allocation10 + $0x1e0] sm:$0xf]
    %v2254 = vld [vmem:[#allocation10 + $0x1e4] sm:$0xf]
    %v2255 = vld [vmem:[#allocation10 + $0x1e8] sm:$0xf]
    %v2256 = vld [vmem:[#allocation10 + $0x1ec] sm:$0xf]
    %v2257 = vld [vmem:[#allocation10 + $0x1f0] sm:$0xf]
    %v2258 = vld [vmem:[#allocation10 + $0x1f4] sm:$0xf]
    %v2259 = vld [vmem:[#allocation10 + $0x1f8] sm:$0xf]
    %v2260 = vld [vmem:[#allocation10 + $0x1fc] sm:$0xf]
    %v2261 = vld [vmem:[#allocation10 + $0x200] sm:$0xf]
    %v2262 = vld [vmem:[#allocation10 + $0x204] sm:$0xf]
    %v2263 = vld [vmem:[#allocation10 + $0x208] sm:$0xf]
    %v2264 = vld [vmem:[#allocation10 + $0x20c] sm:$0xf]
    %v2265 = vld [vmem:[#allocation10 + $0x210] sm:$0xf]
    %v2266 = vld [vmem:[#allocation10 + $0x214] sm:$0xf]
    %v2267 = vld [vmem:[#allocation10 + $0x218] sm:$0xf]
    %v2268 = vld [vmem:[#allocation10 + $0x21c] sm:$0xf]
    %v2269 = vld [vmem:[#allocation10 + $0x220] sm:$0xf]
    %v2270 = vld [vmem:[#allocation10 + $0x224] sm:$0xf]
    %v2271 = vld [vmem:[#allocation10 + $0x228] sm:$0xf]
    %v2272 = vld [vmem:[#allocation10 + $0x22c] sm:$0xf]
    %v2273 = vld [vmem:[#allocation10 + $0x230] sm:$0xf]
    %v2274 = vld [vmem:[#allocation10 + $0x234] sm:$0xf]
    %v2275 = vld [vmem:[#allocation10 + $0x238] sm:$0xf]
    %v2276 = vld [vmem:[#allocation10 + $0x23c] sm:$0xf]
    %v2277 = vld [vmem:[#allocation10 + $0x240] sm:$0xf]
    %v2278 = vld [vmem:[#allocation10 + $0x244] sm:$0xf]
    %v2279 = vld [vmem:[#allocation10 + $0x248] sm:$0xf]
    %v2280 = vld [vmem:[#allocation10 + $0x24c] sm:$0xf]
    %v2281 = vld [vmem:[#allocation10 + $0x250] sm:$0xf]
    %v2282 = vld [vmem:[#allocation10 + $0x254] sm:$0xf]
    %v2283 = vld [vmem:[#allocation10 + $0x258] sm:$0xf]
    %v2284 = vld [vmem:[#allocation10 + $0x25c] sm:$0xf]
    %v2285 = vld [vmem:[#allocation10 + $0x260] sm:$0xf]
    %v2286 = vld [vmem:[#allocation10 + $0x264] sm:$0xf]
    %v2287 = vld [vmem:[#allocation10 + $0x268] sm:$0xf]
    %v2288 = vld [vmem:[#allocation10 + $0x26c] sm:$0xf]
    %v2289 = vld [vmem:[#allocation10 + $0x270] sm:$0xf]
    %v2290 = vld [vmem:[#allocation10 + $0x274] sm:$0xf]
    %v2291 = vld [vmem:[#allocation10 + $0x278] sm:$0xf]
    %v2292 = vld [vmem:[#allocation10 + $0x27c] sm:$0xf]
    %v2293 = vld [vmem:[#allocation10 + $0x280] sm:$0xf]
    %v2294 = vld [vmem:[#allocation10 + $0x284] sm:$0xf]
    %v2295 = vld [vmem:[#allocation10 + $0x288] sm:$0xf]
    %v2296 = vld [vmem:[#allocation10 + $0x28c] sm:$0xf]
    %v2297 = vld [vmem:[#allocation10 + $0x290] sm:$0xf]
    %v2298 = vld [vmem:[#allocation10 + $0x294] sm:$0xf]
    %v2299 = vld [vmem:[#allocation10 + $0x298] sm:$0xf]
    %v2300 = vld [vmem:[#allocation10 + $0x29c] sm:$0xf]
    %v2301 = vld [vmem:[#allocation10 + $0x2a0] sm:$0xf]
    %v2302 = vld [vmem:[#allocation10 + $0x2a4] sm:$0xf]
    %v2303 = vld [vmem:[#allocation10 + $0x2a8] sm:$0xf]
    %v2304 = vld [vmem:[#allocation10 + $0x2ac] sm:$0xf]
    %v2305 = vld [vmem:[#allocation10 + $0x2b0] sm:$0xf]
    %v2306 = vld [vmem:[#allocation10 + $0x2b4] sm:$0xf]
    %v2307 = vld [vmem:[#allocation10 + $0x2b8] sm:$0xf]
    %v2308 = vld [vmem:[#allocation10 + $0x2bc] sm:$0xf]
    %v2309 = vld [vmem:[#allocation10 + $0x2c0] sm:$0xf]
    %v2310 = vld [vmem:[#allocation10 + $0x2c4] sm:$0xf]
    %v2311 = vld [vmem:[#allocation10 + $0x2c8] sm:$0xf]
    %v2312 = vld [vmem:[#allocation10 + $0x2cc] sm:$0xf]
    %v2313 = vld [vmem:[#allocation10 + $0x2d0] sm:$0xf]
    %v2314 = vld [vmem:[#allocation10 + $0x2d4] sm:$0xf]
    %v2315 = vld [vmem:[#allocation10 + $0x2d8] sm:$0xf]
    %v2316 = vld [vmem:[#allocation10 + $0x2dc] sm:$0xf]
    %v2317 = vld [vmem:[#allocation10 + $0x2e0] sm:$0xf]
    %v2318 = vld [vmem:[#allocation10 + $0x2e4] sm:$0xf]
    %v2319 = vld [vmem:[#allocation10 + $0x2e8] sm:$0xf]
    %v2320 = vld [vmem:[#allocation10 + $0x2ec] sm:$0xf]
    %v2321 = vld [vmem:[#allocation10 + $0x2f0] sm:$0xf]
    %v2322 = vld [vmem:[#allocation10 + $0x2f4] sm:$0xf]
    %v2323 = vld [vmem:[#allocation10 + $0x2f8] sm:$0xf]
    %v2324 = vld [vmem:[#allocation10 + $0x2fc] sm:$0xf]
    %v2325 = vld [vmem:[#allocation10 + $0x300] sm:$0xf]
    %v2326 = vld [vmem:[#allocation10 + $0x304] sm:$0xf]
    %v2327 = vld [vmem:[#allocation10 + $0x308] sm:$0xf]
    %v2328 = vld [vmem:[#allocation10 + $0x30c] sm:$0xf]
    %v2329 = vld [vmem:[#allocation10 + $0x310] sm:$0xf]
    %v2330 = vld [vmem:[#allocation10 + $0x314] sm:$0xf]
    %v2331 = vld [vmem:[#allocation10 + $0x318] sm:$0xf]
    %v2332 = vld [vmem:[#allocation10 + $0x31c] sm:$0xf]
    %v2333 = vld [vmem:[#allocation10 + $0x320] sm:$0xf]
    %v2334 = vld [vmem:[#allocation10 + $0x324] sm:$0xf]
    %v2335 = vld [vmem:[#allocation10 + $0x328] sm:$0xf]
    %v2336 = vld [vmem:[#allocation10 + $0x32c] sm:$0xf]
    %v2337 = vld [vmem:[#allocation10 + $0x330] sm:$0xf]
    %v2338 = vld [vmem:[#allocation10 + $0x334] sm:$0xf]
    %v2339 = vld [vmem:[#allocation10 + $0x338] sm:$0xf]
    %v2340 = vld [vmem:[#allocation10 + $0x33c] sm:$0xf]
    %v2341 = vld [vmem:[#allocation10 + $0x340] sm:$0xf]
    %v2342 = vld [vmem:[#allocation10 + $0x344] sm:$0xf]
    %v2343 = vld [vmem:[#allocation10 + $0x348] sm:$0xf]
    %v2344 = vld [vmem:[#allocation10 + $0x34c] sm:$0xf]
    %v2345 = vld [vmem:[#allocation10 + $0x350] sm:$0xf]
    %v2346 = vld [vmem:[#allocation10 + $0x354] sm:$0xf]
    %v2347 = vld [vmem:[#allocation10 + $0x358] sm:$0xf]
    %v2348 = vld [vmem:[#allocation10 + $0x35c] sm:$0xf]
    %v2349 = vld [vmem:[#allocation10 + $0x360] sm:$0xf]
    %v2350 = vld [vmem:[#allocation10 + $0x364] sm:$0xf]
    %v2351 = vld [vmem:[#allocation10 + $0x368] sm:$0xf]
    %v2352 = vld [vmem:[#allocation10 + $0x36c] sm:$0xf]
    %v2353 = vld [vmem:[#allocation10 + $0x370] sm:$0xf]
    %v2354 = vld [vmem:[#allocation10 + $0x374] sm:$0xf]
    %v2355 = vld [vmem:[#allocation10 + $0x378] sm:$0xf]
    %v2356 = vld [vmem:[#allocation10 + $0x37c] sm:$0xf]
    %v2357 = vld [vmem:[#allocation10 + $0x380] sm:$0xf]
    %v2358 = vld [vmem:[#allocation10 + $0x384] sm:$0xf]
    %v2359 = vld [vmem:[#allocation10 + $0x388] sm:$0xf]
    %v2360 = vld [vmem:[#allocation10 + $0x38c] sm:$0xf]
    %v2361 = vld [vmem:[#allocation10 + $0x390] sm:$0xf]
    %v2362 = vld [vmem:[#allocation10 + $0x394] sm:$0xf]
    %v2363 = vld [vmem:[#allocation10 + $0x398] sm:$0xf]
    %v2364 = vld [vmem:[#allocation10 + $0x39c] sm:$0xf]
    %v2365 = vld [vmem:[#allocation10 + $0x3a0] sm:$0xf]
    %v2366 = vld [vmem:[#allocation10 + $0x3a4] sm:$0xf]
    %v2367 = vld [vmem:[#allocation10 + $0x3a8] sm:$0xf]
    %v2368 = vld [vmem:[#allocation10 + $0x3ac] sm:$0xf]
    %v2369 = vld [vmem:[#allocation10 + $0x3b0] sm:$0xf]
    %v2370 = vld [vmem:[#allocation10 + $0x3b4] sm:$0xf]
    %v2371 = vld [vmem:[#allocation10 + $0x3b8] sm:$0xf]
    %v2372 = vld [vmem:[#allocation10 + $0x3bc] sm:$0xf]
    %v2373 = vld [vmem:[#allocation10 + $0x3c0] sm:$0xf]
    %v2374 = vld [vmem:[#allocation10 + $0x3c4] sm:$0xf]
    %v2375 = vld [vmem:[#allocation10 + $0x3c8] sm:$0xf]
    %v2376 = vld [vmem:[#allocation10 + $0x3cc] sm:$0xf]
    %v2377 = vld [vmem:[#allocation10 + $0x3d0] sm:$0xf]
    %v2378 = vld [vmem:[#allocation10 + $0x3d4] sm:$0xf]
    %v2379 = vld [vmem:[#allocation10 + $0x3d8] sm:$0xf]
    %v2380 = vld [vmem:[#allocation10 + $0x3dc] sm:$0xf]
    %v2381 = vld [vmem:[#allocation10 + $0x3e0] sm:$0xf]
    %v2382 = vld [vmem:[#allocation10 + $0x3e4] sm:$0xf]
    %v2383 = vld [vmem:[#allocation10 + $0x3e8] sm:$0xf]
    %v2384 = vld [vmem:[#allocation10 + $0x3ec] sm:$0xf]
    %v2385 = vld [vmem:[#allocation10 + $0x3f0] sm:$0xf]
    %v2386 = vld [vmem:[#allocation10 + $0x3f4] sm:$0xf]
    %v2387 = vld [vmem:[#allocation10 + $0x3f8] sm:$0xf]
    %v2388 = vld [vmem:[#allocation10 + $0x3fc] sm:$0xf]
    %v2389 = vld [vmem:[#allocation10 + $0x400] sm:$0xf]
    %v2390 = vld [vmem:[#allocation10 + $0x404] sm:$0xf]
    %v2391 = vld [vmem:[#allocation10 + $0x408] sm:$0xf]
    %v2392 = vld [vmem:[#allocation10 + $0x40c] sm:$0xf]
    %v2393 = vld [vmem:[#allocation10 + $0x410] sm:$0xf]
    %v2394 = vld [vmem:[#allocation10 + $0x414] sm:$0xf]
    %v2395 = vld [vmem:[#allocation10 + $0x418] sm:$0xf]
    %v2396 = vld [vmem:[#allocation10 + $0x41c] sm:$0xf]
    %v2397 = vld [vmem:[#allocation10 + $0x420] sm:$0xf]
    %v2398 = vld [vmem:[#allocation10 + $0x424] sm:$0xf]
    %v2399 = vld [vmem:[#allocation10 + $0x428] sm:$0xf]
    %v2400 = vld [vmem:[#allocation10 + $0x42c] sm:$0xf]
    %v2401 = vld [vmem:[#allocation10 + $0x430] sm:$0xf]
    %v2402 = vld [vmem:[#allocation10 + $0x434] sm:$0xf]
    %v2403 = vld [vmem:[#allocation10 + $0x438] sm:$0xf]
    %v2404 = vld [vmem:[#allocation10 + $0x43c] sm:$0xf]
    %v2405 = vld [vmem:[#allocation10 + $0x440] sm:$0xf]
    %v2406 = vld [vmem:[#allocation10 + $0x444] sm:$0xf]
    %v2407 = vld [vmem:[#allocation10 + $0x448] sm:$0xf]
    %v2408 = vld [vmem:[#allocation10 + $0x44c] sm:$0xf]
    %v2409 = vld [vmem:[#allocation10 + $0x450] sm:$0xf]
    %v2410 = vld [vmem:[#allocation10 + $0x454] sm:$0xf]
    %v2411 = vld [vmem:[#allocation10 + $0x458] sm:$0xf]
    %v2412 = vld [vmem:[#allocation10 + $0x45c] sm:$0xf]
    %v2413 = vld [vmem:[#allocation10 + $0x460] sm:$0xf]
    %v2414 = vld [vmem:[#allocation10 + $0x464] sm:$0xf]
    %v2415 = vld [vmem:[#allocation10 + $0x468] sm:$0xf]
    %v2416 = vld [vmem:[#allocation10 + $0x46c] sm:$0xf]
    %v2417 = vld [vmem:[#allocation10 + $0x470] sm:$0xf]
    %v2418 = vld [vmem:[#allocation10 + $0x474] sm:$0xf]
    %v2419 = vld [vmem:[#allocation10 + $0x478] sm:$0xf]
    %v2420 = vld [vmem:[#allocation10 + $0x47c] sm:$0xf]
    %v2421 = vld [vmem:[#allocation10 + $0x480] sm:$0xf]
    %v2422 = vld [vmem:[#allocation10 + $0x484] sm:$0xf]
    %v2423 = vld [vmem:[#allocation10 + $0x488] sm:$0xf]
    %v2424 = vld [vmem:[#allocation10 + $0x48c] sm:$0xf]
    %v2425 = vld [vmem:[#allocation10 + $0x490] sm:$0xf]
    %v2426 = vld [vmem:[#allocation10 + $0x494] sm:$0xf]
    %v2427 = vld [vmem:[#allocation10 + $0x498] sm:$0xf]
    %v2428 = vld [vmem:[#allocation10 + $0x49c] sm:$0xf]
    %v2429 = vld [vmem:[#allocation10 + $0x4a0] sm:$0xf]
    %v2430 = vld [vmem:[#allocation10 + $0x4a4] sm:$0xf]
    %v2431 = vld [vmem:[#allocation10 + $0x4a8] sm:$0xf]
    %v2432 = vld [vmem:[#allocation10 + $0x4ac] sm:$0xf]
    %v2433 = vld [vmem:[#allocation10 + $0x4b0] sm:$0xf]
    %v2434 = vld [vmem:[#allocation10 + $0x4b4] sm:$0xf]
    %v2435 = vld [vmem:[#allocation10 + $0x4b8] sm:$0xf]
    %v2436 = vld [vmem:[#allocation10 + $0x4bc] sm:$0xf]
    %v2437 = vld [vmem:[#allocation10 + $0x4c0] sm:$0xf]
    %v2438 = vld [vmem:[#allocation10 + $0x4c4] sm:$0xf]
    %v2439 = vld [vmem:[#allocation10 + $0x4c8] sm:$0xf]
    %v2440 = vld [vmem:[#allocation10 + $0x4cc] sm:$0xf]
    %v2441 = vld [vmem:[#allocation10 + $0x4d0] sm:$0xf]
    %v2442 = vld [vmem:[#allocation10 + $0x4d4] sm:$0xf]
    %v2443 = vld [vmem:[#allocation10 + $0x4d8] sm:$0xf]
    %v2444 = vld [vmem:[#allocation10 + $0x4dc] sm:$0xf]
    %v2445 = vld [vmem:[#allocation10 + $0x4e0] sm:$0xf]
    %v2446 = vld [vmem:[#allocation10 + $0x4e4] sm:$0xf]
    %v2447 = vld [vmem:[#allocation10 + $0x4e8] sm:$0xf]
    %v2448 = vld [vmem:[#allocation10 + $0x4ec] sm:$0xf]
    %v2449 = vld [vmem:[#allocation10 + $0x4f0] sm:$0xf]
    %v2450 = vld [vmem:[#allocation10 + $0x4f4] sm:$0xf]
    %v2451 = vld [vmem:[#allocation10 + $0x4f8] sm:$0xf]
    %v2452 = vld [vmem:[#allocation10 + $0x4fc] sm:$0xf]
    %v2453 = vld [vmem:[%s8] sm:$0x1]
    %v2774 = vunpack.c.l.b16 %v2133
    %v2775 = vunpack.c.l.b16 %v2134
    %v2776 = vunpack.c.l.b16 %v2135
    %v2777 = vunpack.c.l.b16 %v2136
    %v2778 = vunpack.c.l.b16 %v2137
    %v2779 = vunpack.c.l.b16 %v2138
    %v2780 = vunpack.c.l.b16 %v2139
    %v2781 = vunpack.c.l.b16 %v2140
    %v2782 = vunpack.c.l.b16 %v2141
    %v2783 = vunpack.c.l.b16 %v2142
    %v2784 = vunpack.c.l.b16 %v2143
    %v2785 = vunpack.c.l.b16 %v2144
    %v2786 = vunpack.c.l.b16 %v2145
    %v2787 = vunpack.c.l.b16 %v2146
    %v2788 = vunpack.c.l.b16 %v2147
    %v2789 = vunpack.c.l.b16 %v2148
    %v2790 = vunpack.c.l.b16 %v2149
    %v2791 = vunpack.c.l.b16 %v2150
    %v2792 = vunpack.c.l.b16 %v2151
    %v2793 = vunpack.c.l.b16 %v2152
    %v2794 = vunpack.c.l.b16 %v2153
    %v2795 = vunpack.c.l.b16 %v2154
    %v2796 = vunpack.c.l.b16 %v2155
    %v2797 = vunpack.c.l.b16 %v2156
    %v2798 = vunpack.c.l.b16 %v2157
    %v2799 = vunpack.c.l.b16 %v2158
    %v2800 = vunpack.c.l.b16 %v2159
    %v2801 = vunpack.c.l.b16 %v2160
    %v2802 = vunpack.c.l.b16 %v2161
    %v2803 = vunpack.c.l.b16 %v2162
    %v2804 = vunpack.c.l.b16 %v2163
    %v2805 = vunpack.c.l.b16 %v2164
    %v2806 = vunpack.c.l.b16 %v2165
    %v2807 = vunpack.c.l.b16 %v2166
    %v2808 = vunpack.c.l.b16 %v2167
    %v2809 = vunpack.c.l.b16 %v2168
    %v2810 = vunpack.c.l.b16 %v2169
    %v2811 = vunpack.c.l.b16 %v2170
    %v2812 = vunpack.c.l.b16 %v2171
    %v2813 = vunpack.c.l.b16 %v2172
    %v2814 = vunpack.c.l.b16 %v2173
    %v2815 = vunpack.c.l.b16 %v2174
    %v2816 = vunpack.c.l.b16 %v2175
    %v2817 = vunpack.c.l.b16 %v2176
    %v2818 = vunpack.c.l.b16 %v2177
    %v2819 = vunpack.c.l.b16 %v2178
    %v2820 = vunpack.c.l.b16 %v2179
    %v2821 = vunpack.c.l.b16 %v2180
    %v2822 = vunpack.c.l.b16 %v2181
    %v2823 = vunpack.c.l.b16 %v2182
    %v2824 = vunpack.c.l.b16 %v2183
    %v2825 = vunpack.c.l.b16 %v2184
    %v2826 = vunpack.c.l.b16 %v2185
    %v2827 = vunpack.c.l.b16 %v2186
    %v2828 = vunpack.c.l.b16 %v2187
    %v2829 = vunpack.c.l.b16 %v2188
    %v2830 = vunpack.c.l.b16 %v2189
    %v2831 = vunpack.c.l.b16 %v2190
    %v2832 = vunpack.c.l.b16 %v2191
    %v2833 = vunpack.c.l.b16 %v2192
    %v2834 = vunpack.c.l.b16 %v2193
    %v2835 = vunpack.c.l.b16 %v2194
    %v2836 = vunpack.c.l.b16 %v2195
    %v2837 = vunpack.c.l.b16 %v2196
    %v2838 = vunpack.c.l.b16 %v2197
    %v2839 = vunpack.c.l.b16 %v2198
    %v2840 = vunpack.c.l.b16 %v2199
    %v2841 = vunpack.c.l.b16 %v2200
    %v2842 = vunpack.c.l.b16 %v2201
    %v2843 = vunpack.c.l.b16 %v2202
    %v2844 = vunpack.c.l.b16 %v2203
    %v2845 = vunpack.c.l.b16 %v2204
    %v2846 = vunpack.c.l.b16 %v2205
    %v2847 = vunpack.c.l.b16 %v2206
    %v2848 = vunpack.c.l.b16 %v2207
    %v2849 = vunpack.c.l.b16 %v2208
    %v2850 = vunpack.c.l.b16 %v2209
    %v2851 = vunpack.c.l.b16 %v2210
    %v2852 = vunpack.c.l.b16 %v2211
    %v2853 = vunpack.c.l.b16 %v2212
    %v2854 = vunpack.c.l.b16 %v2213
    %v2855 = vunpack.c.l.b16 %v2214
    %v2856 = vunpack.c.l.b16 %v2215
    %v2857 = vunpack.c.l.b16 %v2216
    %v2858 = vunpack.c.l.b16 %v2217
    %v2859 = vunpack.c.l.b16 %v2218
    %v2860 = vunpack.c.l.b16 %v2219
    %v2861 = vunpack.c.l.b16 %v2220
    %v2862 = vunpack.c.l.b16 %v2221
    %v2863 = vunpack.c.l.b16 %v2222
    %v2864 = vunpack.c.l.b16 %v2223
    %v2865 = vunpack.c.l.b16 %v2224
    %v2866 = vunpack.c.l.b16 %v2225
    %v2867 = vunpack.c.l.b16 %v2226
    %v2868 = vunpack.c.l.b16 %v2227
    %v2869 = vunpack.c.l.b16 %v2228
    %v2870 = vunpack.c.l.b16 %v2229
    %v2871 = vunpack.c.l.b16 %v2230
    %v2872 = vunpack.c.l.b16 %v2231
    %v2873 = vunpack.c.l.b16 %v2232
    %v2874 = vunpack.c.l.b16 %v2233
    %v2875 = vunpack.c.l.b16 %v2234
    %v2876 = vunpack.c.l.b16 %v2235
    %v2877 = vunpack.c.l.b16 %v2236
    %v2878 = vunpack.c.l.b16 %v2237
    %v2879 = vunpack.c.l.b16 %v2238
    %v2880 = vunpack.c.l.b16 %v2239
    %v2881 = vunpack.c.l.b16 %v2240
    %v2882 = vunpack.c.l.b16 %v2241
    %v2883 = vunpack.c.l.b16 %v2242
    %v2884 = vunpack.c.l.b16 %v2243
    %v2885 = vunpack.c.l.b16 %v2244
    %v2886 = vunpack.c.l.b16 %v2245
    %v2887 = vunpack.c.l.b16 %v2246
    %v2888 = vunpack.c.l.b16 %v2247
    %v2889 = vunpack.c.l.b16 %v2248
    %v2890 = vunpack.c.l.b16 %v2249
    %v2891 = vunpack.c.l.b16 %v2250
    %v2892 = vunpack.c.l.b16 %v2251
    %v2893 = vunpack.c.l.b16 %v2252
    %v2894 = vunpack.c.l.b16 %v2253
    %v2895 = vunpack.c.l.b16 %v2254
    %v2896 = vunpack.c.l.b16 %v2255
    %v2897 = vunpack.c.l.b16 %v2256
    %v2898 = vunpack.c.l.b16 %v2257
    %v2899 = vunpack.c.l.b16 %v2258
    %v2900 = vunpack.c.l.b16 %v2259
    %v2901 = vunpack.c.l.b16 %v2260
    %v2902 = vunpack.c.l.b16 %v2261
    %v2903 = vunpack.c.l.b16 %v2262
    %v2904 = vunpack.c.l.b16 %v2263
    %v2905 = vunpack.c.l.b16 %v2264
    %v2906 = vunpack.c.l.b16 %v2265
    %v2907 = vunpack.c.l.b16 %v2266
    %v2908 = vunpack.c.l.b16 %v2267
    %v2909 = vunpack.c.l.b16 %v2268
    %v2910 = vunpack.c.l.b16 %v2269
    %v2911 = vunpack.c.l.b16 %v2270
    %v2912 = vunpack.c.l.b16 %v2271
    %v2913 = vunpack.c.l.b16 %v2272
    %v2914 = vunpack.c.l.b16 %v2273
    %v2915 = vunpack.c.l.b16 %v2274
    %v2916 = vunpack.c.l.b16 %v2275
    %v2917 = vunpack.c.l.b16 %v2276
    %v2918 = vunpack.c.l.b16 %v2277
    %v2919 = vunpack.c.l.b16 %v2278
    %v2920 = vunpack.c.l.b16 %v2279
    %v2921 = vunpack.c.l.b16 %v2280
    %v2922 = vunpack.c.l.b16 %v2281
    %v2923 = vunpack.c.l.b16 %v2282
    %v2924 = vunpack.c.l.b16 %v2283
    %v2925 = vunpack.c.l.b16 %v2284
    %v2926 = vunpack.c.l.b16 %v2285
    %v2927 = vunpack.c.l.b16 %v2286
    %v2928 = vunpack.c.l.b16 %v2287
    %v2929 = vunpack.c.l.b16 %v2288
    %v2930 = vunpack.c.l.b16 %v2289
    %v2931 = vunpack.c.l.b16 %v2290
    %v2932 = vunpack.c.l.b16 %v2291
    %v2933 = vunpack.c.l.b16 %v2292
    %v2934 = vunpack.c.l.b16 %v2293
    %v2935 = vunpack.c.l.b16 %v2294
    %v2936 = vunpack.c.l.b16 %v2295
    %v2937 = vunpack.c.l.b16 %v2296
    %v2938 = vunpack.c.l.b16 %v2297
    %v2939 = vunpack.c.l.b16 %v2298
    %v2940 = vunpack.c.l.b16 %v2299
    %v2941 = vunpack.c.l.b16 %v2300
    %v2942 = vunpack.c.l.b16 %v2301
    %v2943 = vunpack.c.l.b16 %v2302
    %v2944 = vunpack.c.l.b16 %v2303
    %v2945 = vunpack.c.l.b16 %v2304
    %v2946 = vunpack.c.l.b16 %v2305
    %v2947 = vunpack.c.l.b16 %v2306
    %v2948 = vunpack.c.l.b16 %v2307
    %v2949 = vunpack.c.l.b16 %v2308
    %v2950 = vunpack.c.l.b16 %v2309
    %v2951 = vunpack.c.l.b16 %v2310
    %v2952 = vunpack.c.l.b16 %v2311
    %v2953 = vunpack.c.l.b16 %v2312
    %v2954 = vunpack.c.l.b16 %v2313
    %v2955 = vunpack.c.l.b16 %v2314
    %v2956 = vunpack.c.l.b16 %v2315
    %v2957 = vunpack.c.l.b16 %v2316
    %v2958 = vunpack.c.l.b16 %v2317
    %v2959 = vunpack.c.l.b16 %v2318
    %v2960 = vunpack.c.l.b16 %v2319
    %v2961 = vunpack.c.l.b16 %v2320
    %v2962 = vunpack.c.l.b16 %v2321
    %v2963 = vunpack.c.l.b16 %v2322
    %v2964 = vunpack.c.l.b16 %v2323
    %v2965 = vunpack.c.l.b16 %v2324
    %v2966 = vunpack.c.l.b16 %v2325
    %v2967 = vunpack.c.l.b16 %v2326
    %v2968 = vunpack.c.l.b16 %v2327
    %v2969 = vunpack.c.l.b16 %v2328
    %v2970 = vunpack.c.l.b16 %v2329
    %v2971 = vunpack.c.l.b16 %v2330
    %v2972 = vunpack.c.l.b16 %v2331
    %v2973 = vunpack.c.l.b16 %v2332
    %v2974 = vunpack.c.l.b16 %v2333
    %v2975 = vunpack.c.l.b16 %v2334
    %v2976 = vunpack.c.l.b16 %v2335
    %v2977 = vunpack.c.l.b16 %v2336
    %v2978 = vunpack.c.l.b16 %v2337
    %v2979 = vunpack.c.l.b16 %v2338
    %v2980 = vunpack.c.l.b16 %v2339
    %v2981 = vunpack.c.l.b16 %v2340
    %v2982 = vunpack.c.l.b16 %v2341
    %v2983 = vunpack.c.l.b16 %v2342
    %v2984 = vunpack.c.l.b16 %v2343
    %v2985 = vunpack.c.l.b16 %v2344
    %v2986 = vunpack.c.l.b16 %v2345
    %v2987 = vunpack.c.l.b16 %v2346
    %v2988 = vunpack.c.l.b16 %v2347
    %v2989 = vunpack.c.l.b16 %v2348
    %v2990 = vunpack.c.l.b16 %v2349
    %v2991 = vunpack.c.l.b16 %v2350
    %v2992 = vunpack.c.l.b16 %v2351
    %v2993 = vunpack.c.l.b16 %v2352
    %v2994 = vunpack.c.l.b16 %v2353
    %v2995 = vunpack.c.l.b16 %v2354
    %v2996 = vunpack.c.l.b16 %v2355
    %v2997 = vunpack.c.l.b16 %v2356
    %v2998 = vunpack.c.l.b16 %v2357
    %v2999 = vunpack.c.l.b16 %v2358
    %v3000 = vunpack.c.l.b16 %v2359
    %v3001 = vunpack.c.l.b16 %v2360
    %v3002 = vunpack.c.l.b16 %v2361
    %v3003 = vunpack.c.l.b16 %v2362
    %v3004 = vunpack.c.l.b16 %v2363
    %v3005 = vunpack.c.l.b16 %v2364
    %v3006 = vunpack.c.l.b16 %v2365
    %v3007 = vunpack.c.l.b16 %v2366
    %v3008 = vunpack.c.l.b16 %v2367
    %v3009 = vunpack.c.l.b16 %v2368
    %v3010 = vunpack.c.l.b16 %v2369
    %v3011 = vunpack.c.l.b16 %v2370
    %v3012 = vunpack.c.l.b16 %v2371
    %v3013 = vunpack.c.l.b16 %v2372
    %v3014 = vunpack.c.l.b16 %v2373
    %v3015 = vunpack.c.l.b16 %v2374
    %v3016 = vunpack.c.l.b16 %v2375
    %v3017 = vunpack.c.l.b16 %v2376
    %v3018 = vunpack.c.l.b16 %v2377
    %v3019 = vunpack.c.l.b16 %v2378
    %v3020 = vunpack.c.l.b16 %v2379
    %v3021 = vunpack.c.l.b16 %v2380
    %v3022 = vunpack.c.l.b16 %v2381
    %v3023 = vunpack.c.l.b16 %v2382
    %v3024 = vunpack.c.l.b16 %v2383
    %v3025 = vunpack.c.l.b16 %v2384
    %v3026 = vunpack.c.l.b16 %v2385
    %v3027 = vunpack.c.l.b16 %v2386
    %v3028 = vunpack.c.l.b16 %v2387
    %v3029 = vunpack.c.l.b16 %v2388
    %v3030 = vunpack.c.l.b16 %v2389
    %v3031 = vunpack.c.l.b16 %v2390
    %v3032 = vunpack.c.l.b16 %v2391
    %v3033 = vunpack.c.l.b16 %v2392
    %v3034 = vunpack.c.l.b16 %v2393
    %v3035 = vunpack.c.l.b16 %v2394
    %v3036 = vunpack.c.l.b16 %v2395
    %v3037 = vunpack.c.l.b16 %v2396
    %v3038 = vunpack.c.l.b16 %v2397
    %v3039 = vunpack.c.l.b16 %v2398
    %v3040 = vunpack.c.l.b16 %v2399
    %v3041 = vunpack.c.l.b16 %v2400
    %v3042 = vunpack.c.l.b16 %v2401
    %v3043 = vunpack.c.l.b16 %v2402
    %v3044 = vunpack.c.l.b16 %v2403
    %v3045 = vunpack.c.l.b16 %v2404
    %v3046 = vunpack.c.l.b16 %v2405
    %v3047 = vunpack.c.l.b16 %v2406
    %v3048 = vunpack.c.l.b16 %v2407
    %v3049 = vunpack.c.l.b16 %v2408
    %v3050 = vunpack.c.l.b16 %v2409
    %v3051 = vunpack.c.l.b16 %v2410
    %v3052 = vunpack.c.l.b16 %v2411
    %v3053 = vunpack.c.l.b16 %v2412
    %v3054 = vunpack.c.l.b16 %v2413
    %v3055 = vunpack.c.l.b16 %v2414
    %v3056 = vunpack.c.l.b16 %v2415
    %v3057 = vunpack.c.l.b16 %v2416
    %v3058 = vunpack.c.l.b16 %v2417
    %v3059 = vunpack.c.l.b16 %v2418
    %v3060 = vunpack.c.l.b16 %v2419
    %v3061 = vunpack.c.l.b16 %v2420
    %v3062 = vunpack.c.l.b16 %v2421
    %v3063 = vunpack.c.l.b16 %v2422
    %v3064 = vunpack.c.l.b16 %v2423
    %v3065 = vunpack.c.l.b16 %v2424
    %v3066 = vunpack.c.l.b16 %v2425
    %v3067 = vunpack.c.l.b16 %v2426
    %v3068 = vunpack.c.l.b16 %v2427
    %v3069 = vunpack.c.l.b16 %v2428
    %v3070 = vunpack.c.l.b16 %v2429
    %v3071 = vunpack.c.l.b16 %v2430
    %v3072 = vunpack.c.l.b16 %v2431
    %v3073 = vunpack.c.l.b16 %v2432
    %v3074 = vunpack.c.l.b16 %v2433
    %v3075 = vunpack.c.l.b16 %v2434
    %v3076 = vunpack.c.l.b16 %v2435
    %v3077 = vunpack.c.l.b16 %v2436
    %v3078 = vunpack.c.l.b16 %v2437
    %v3079 = vunpack.c.l.b16 %v2438
    %v3080 = vunpack.c.l.b16 %v2439
    %v3081 = vunpack.c.l.b16 %v2440
    %v3082 = vunpack.c.l.b16 %v2441
    %v3083 = vunpack.c.l.b16 %v2442
    %v3084 = vunpack.c.l.b16 %v2443
    %v3085 = vunpack.c.l.b16 %v2444
    %v3086 = vunpack.c.l.b16 %v2445
    %v3087 = vunpack.c.l.b16 %v2446
    %v3088 = vunpack.c.l.b16 %v2447
    %v3089 = vunpack.c.l.b16 %v2448
    %v3090 = vunpack.c.l.b16 %v2449
    %v3091 = vunpack.c.l.b16 %v2450
    %v3092 = vunpack.c.l.b16 %v2451
    %v3093 = vunpack.c.l.b16 %v2452
    %v3094 = vpack.c.b16 %v2775, %v2774
    %v3095 = vpack.c.b16 %v2777, %v2776
    %v3096 = vpack.c.b16 %v2779, %v2778
    %v3097 = vpack.c.b16 %v2781, %v2780
    %v3098 = vpack.c.b16 %v2783, %v2782
    %v3099 = vpack.c.b16 %v2785, %v2784
    %v3100 = vpack.c.b16 %v2787, %v2786
    %v3101 = vpack.c.b16 %v2789, %v2788
    %v3102 = vpack.c.b16 %v2791, %v2790
    %v3103 = vpack.c.b16 %v2793, %v2792
    %v3104 = vpack.c.b16 %v2795, %v2794
    %v3105 = vpack.c.b16 %v2797, %v2796
    %v3106 = vpack.c.b16 %v2799, %v2798
    %v3107 = vpack.c.b16 %v2801, %v2800
    %v3108 = vpack.c.b16 %v2803, %v2802
    %v3109 = vpack.c.b16 %v2805, %v2804
    %v3110 = vpack.c.b16 %v2807, %v2806
    %v3111 = vpack.c.b16 %v2809, %v2808
    %v3112 = vpack.c.b16 %v2811, %v2810
    %v3113 = vpack.c.b16 %v2813, %v2812
    %v3114 = vpack.c.b16 %v2815, %v2814
    %v3115 = vpack.c.b16 %v2817, %v2816
    %v3116 = vpack.c.b16 %v2819, %v2818
    %v3117 = vpack.c.b16 %v2821, %v2820
    %v3118 = vpack.c.b16 %v2823, %v2822
    %v3119 = vpack.c.b16 %v2825, %v2824
    %v3120 = vpack.c.b16 %v2827, %v2826
    %v3121 = vpack.c.b16 %v2829, %v2828
    %v3122 = vpack.c.b16 %v2831, %v2830
    %v3123 = vpack.c.b16 %v2833, %v2832
    %v3124 = vpack.c.b16 %v2835, %v2834
    %v3125 = vpack.c.b16 %v2837, %v2836
    %v3126 = vpack.c.b16 %v2839, %v2838
    %v3127 = vpack.c.b16 %v2841, %v2840
    %v3128 = vpack.c.b16 %v2843, %v2842
    %v3129 = vpack.c.b16 %v2845, %v2844
    %v3130 = vpack.c.b16 %v2847, %v2846
    %v3131 = vpack.c.b16 %v2849, %v2848
    %v3132 = vpack.c.b16 %v2851, %v2850
    %v3133 = vpack.c.b16 %v2853, %v2852
    %v3134 = vpack.c.b16 %v2855, %v2854
    %v3135 = vpack.c.b16 %v2857, %v2856
    %v3136 = vpack.c.b16 %v2859, %v2858
    %v3137 = vpack.c.b16 %v2861, %v2860
    %v3138 = vpack.c.b16 %v2863, %v2862
    %v3139 = vpack.c.b16 %v2865, %v2864
    %v3140 = vpack.c.b16 %v2867, %v2866
    %v3141 = vpack.c.b16 %v2869, %v2868
    %v3142 = vpack.c.b16 %v2871, %v2870
    %v3143 = vpack.c.b16 %v2873, %v2872
    %v3144 = vpack.c.b16 %v2875, %v2874
    %v3145 = vpack.c.b16 %v2877, %v2876
    %v3146 = vpack.c.b16 %v2879, %v2878
    %v3147 = vpack.c.b16 %v2881, %v2880
    %v3148 = vpack.c.b16 %v2883, %v2882
    %v3149 = vpack.c.b16 %v2885, %v2884
    %v3150 = vpack.c.b16 %v2887, %v2886
    %v3151 = vpack.c.b16 %v2889, %v2888
    %v3152 = vpack.c.b16 %v2891, %v2890
    %v3153 = vpack.c.b16 %v2893, %v2892
    %v3154 = vpack.c.b16 %v2895, %v2894
    %v3155 = vpack.c.b16 %v2897, %v2896
    %v3156 = vpack.c.b16 %v2899, %v2898
    %v3157 = vpack.c.b16 %v2901, %v2900
    %v3158 = vpack.c.b16 %v2903, %v2902
    %v3159 = vpack.c.b16 %v2905, %v2904
    %v3160 = vpack.c.b16 %v2907, %v2906
    %v3161 = vpack.c.b16 %v2909, %v2908
    %v3162 = vpack.c.b16 %v2911, %v2910
    %v3163 = vpack.c.b16 %v2913, %v2912
    %v3164 = vpack.c.b16 %v2915, %v2914
    %v3165 = vpack.c.b16 %v2917, %v2916
    %v3166 = vpack.c.b16 %v2919, %v2918
    %v3167 = vpack.c.b16 %v2921, %v2920
    %v3168 = vpack.c.b16 %v2923, %v2922
    %v3169 = vpack.c.b16 %v2925, %v2924
    %v3170 = vpack.c.b16 %v2927, %v2926
    %v3171 = vpack.c.b16 %v2929, %v2928
    %v3172 = vpack.c.b16 %v2931, %v2930
    %v3173 = vpack.c.b16 %v2933, %v2932
    %v3174 = vpack.c.b16 %v2935, %v2934
    %v3175 = vpack.c.b16 %v2937, %v2936
    %v3176 = vpack.c.b16 %v2939, %v2938
    %v3177 = vpack.c.b16 %v2941, %v2940
    %v3178 = vpack.c.b16 %v2943, %v2942
    %v3179 = vpack.c.b16 %v2945, %v2944
    %v3180 = vpack.c.b16 %v2947, %v2946
    %v3181 = vpack.c.b16 %v2949, %v2948
    %v3182 = vpack.c.b16 %v2951, %v2950
    %v3183 = vpack.c.b16 %v2953, %v2952
    %v3184 = vpack.c.b16 %v2955, %v2954
    %v3185 = vpack.c.b16 %v2957, %v2956
    %v3186 = vpack.c.b16 %v2959, %v2958
    %v3187 = vpack.c.b16 %v2961, %v2960
    %v3188 = vpack.c.b16 %v2963, %v2962
    %v3189 = vpack.c.b16 %v2965, %v2964
    %v3190 = vpack.c.b16 %v2967, %v2966
    %v3191 = vpack.c.b16 %v2969, %v2968
    %v3192 = vpack.c.b16 %v2971, %v2970
    %v3193 = vpack.c.b16 %v2973, %v2972
    %v3194 = vpack.c.b16 %v2975, %v2974
    %v3195 = vpack.c.b16 %v2977, %v2976
    %v3196 = vpack.c.b16 %v2979, %v2978
    %v3197 = vpack.c.b16 %v2981, %v2980
    %v3198 = vpack.c.b16 %v2983, %v2982
    %v3199 = vpack.c.b16 %v2985, %v2984
    %v3200 = vpack.c.b16 %v2987, %v2986
    %v3201 = vpack.c.b16 %v2989, %v2988
    %v3202 = vpack.c.b16 %v2991, %v2990
    %v3203 = vpack.c.b16 %v2993, %v2992
    %v3204 = vpack.c.b16 %v2995, %v2994
    %v3205 = vpack.c.b16 %v2997, %v2996
    %v3206 = vpack.c.b16 %v2999, %v2998
    %v3207 = vpack.c.b16 %v3001, %v3000
    %v3208 = vpack.c.b16 %v3003, %v3002
    %v3209 = vpack.c.b16 %v3005, %v3004
    %v3210 = vpack.c.b16 %v3007, %v3006
    %v3211 = vpack.c.b16 %v3009, %v3008
    %v3212 = vpack.c.b16 %v3011, %v3010
    %v3213 = vpack.c.b16 %v3013, %v3012
    %v3214 = vpack.c.b16 %v3015, %v3014
    %v3215 = vpack.c.b16 %v3017, %v3016
    %v3216 = vpack.c.b16 %v3019, %v3018
    %v3217 = vpack.c.b16 %v3021, %v3020
    %v3218 = vpack.c.b16 %v3023, %v3022
    %v3219 = vpack.c.b16 %v3025, %v3024
    %v3220 = vpack.c.b16 %v3027, %v3026
    %v3221 = vpack.c.b16 %v3029, %v3028
    %v3222 = vpack.c.b16 %v3031, %v3030
    %v3223 = vpack.c.b16 %v3033, %v3032
    %v3224 = vpack.c.b16 %v3035, %v3034
    %v3225 = vpack.c.b16 %v3037, %v3036
    %v3226 = vpack.c.b16 %v3039, %v3038
    %v3227 = vpack.c.b16 %v3041, %v3040
    %v3228 = vpack.c.b16 %v3043, %v3042
    %v3229 = vpack.c.b16 %v3045, %v3044
    %v3230 = vpack.c.b16 %v3047, %v3046
    %v3231 = vpack.c.b16 %v3049, %v3048
    %v3232 = vpack.c.b16 %v3051, %v3050
    %v3233 = vpack.c.b16 %v3053, %v3052
    %v3234 = vpack.c.b16 %v3055, %v3054
    %v3235 = vpack.c.b16 %v3057, %v3056
    %v3236 = vpack.c.b16 %v3059, %v3058
    %v3237 = vpack.c.b16 %v3061, %v3060
    %v3238 = vpack.c.b16 %v3063, %v3062
    %v3239 = vpack.c.b16 %v3065, %v3064
    %v3240 = vpack.c.b16 %v3067, %v3066
    %v3241 = vpack.c.b16 %v3069, %v3068
    %v3242 = vpack.c.b16 %v3071, %v3070
    %v3243 = vpack.c.b16 %v3073, %v3072
    %v3244 = vpack.c.b16 %v3075, %v3074
    %v3245 = vpack.c.b16 %v3077, %v3076
    %v3246 = vpack.c.b16 %v3079, %v3078
    %v3247 = vpack.c.b16 %v3081, %v3080
    %v3248 = vpack.c.b16 %v3083, %v3082
    %v3249 = vpack.c.b16 %v3085, %v3084
    %v3250 = vpack.c.b16 %v3087, %v3086
    %v3251 = vpack.c.b16 %v3089, %v3088
    %v3252 = vpack.c.b16 %v3091, %v3090
    %v3253 = vpack.c.b16 %v3093, %v3092
    %3414 = vmatprep.subr.bf16.mxu0 0
    %3415 = vmatpush1.bf16.msra.mxu0 %v3094
    %3416 = vmatprep.subr.bf16.mxu0 0
    %3417 = vmatpush1.bf16.msra.mxu0 %v3095
    %3418 = vmatprep.subr.bf16.mxu0 0
    %3419 = vmatpush1.bf16.msra.mxu0 %v3096
    %3420 = vmatprep.subr.bf16.mxu0 0
    %3421 = vmatpush1.bf16.msra.mxu0 %v3097
    %3422 = vmatprep.subr.bf16.mxu0 0
    %3423 = vmatpush1.bf16.msra.mxu0 %v3098
    %3424 = vmatprep.subr.bf16.mxu0 0
    %3425 = vmatpush1.bf16.msra.mxu0 %v3099
    %3426 = vmatprep.subr.bf16.mxu0 0
    %3427 = vmatpush1.bf16.msra.mxu0 %v3100
    %3428 = vmatprep.subr.bf16.mxu0 0
    %3429 = vmatpush1.bf16.msra.mxu0 %v3101
    %3430 = vmatprep.subr.bf16.mxu0 0
    %3431 = vmatpush1.bf16.msra.mxu0 %v3102
    %3432 = vmatprep.subr.bf16.mxu0 0
    %3433 = vmatpush1.bf16.msra.mxu0 %v3103
    %3434 = vmatprep.subr.bf16.mxu0 0
    %3435 = vmatpush1.bf16.msra.mxu0 %v3104
    %3436 = vmatprep.subr.bf16.mxu0 0
    %3437 = vmatpush1.bf16.msra.mxu0 %v3105
    %3438 = vmatprep.subr.bf16.mxu0 0
    %3439 = vmatpush1.bf16.msra.mxu0 %v3106
    %3440 = vmatprep.subr.bf16.mxu0 0
    %3441 = vmatpush1.bf16.msra.mxu0 %v3107
    %3442 = vmatprep.subr.bf16.mxu0 0
    %3443 = vmatpush1.bf16.msra.mxu0 %v3108
    %3444 = vmatprep.subr.bf16.mxu0 0
    %3445 = vmatpush1.bf16.msra.mxu0 %v3109
    %3446 = vmatprep.mubr.bf16.mxu0 %v2114
    %3447 = vmatmul.mubr.bf16.gmra.mrb[0].mxu0 %v2113
    %v3448 = vpop.f32.mrb[0].mxu0
    %v3449 = vadd.f32 %v2453, %v3448
    %v3450 = vpop.f32.mrb[0].mxu0
    %v3451 = vpop.f32.mrb[0].mxu0
    %v3452 = vpop.f32.mrb[0].mxu0
    %3453 = vdwg.mxu0
    %3454 = vmatprep.subr.bf16.mxu0 0
    %3455 = vmatpush1.bf16.msra.mxu0 %v3110
    %3456 = vmatprep.subr.bf16.mxu0 0
    %3457 = vmatpush1.bf16.msra.mxu0 %v3111
    %3458 = vmatprep.subr.bf16.mxu0 0
    %3459 = vmatpush1.bf16.msra.mxu0 %v3112
    %3460 = vmatprep.subr.bf16.mxu0 0
    %3461 = vmatpush1.bf16.msra.mxu0 %v3113
    %3462 = vmatprep.subr.bf16.mxu0 0
    %3463 = vmatpush1.bf16.msra.mxu0 %v3114
    %3464 = vmatprep.subr.bf16.mxu0 0
    %3465 = vmatpush1.bf16.msra.mxu0 %v3115
    %3466 = vmatprep.subr.bf16.mxu0 0
    %3467 = vmatpush1.bf16.msra.mxu0 %v3116
    %3468 = vmatprep.subr.bf16.mxu0 0
    %3469 = vmatpush1.bf16.msra.mxu0 %v3117
    %3470 = vmatprep.subr.bf16.mxu0 0
    %3471 = vmatpush1.bf16.msra.mxu0 %v3118
    %3472 = vmatprep.subr.bf16.mxu0 0
    %3473 = vmatpush1.bf16.msra.mxu0 %v3119
    %3474 = vmatprep.subr.bf16.mxu0 0
    %3475 = vmatpush1.bf16.msra.mxu0 %v3120
    %3476 = vmatprep.subr.bf16.mxu0 0
    %3477 = vmatpush1.bf16.msra.mxu0 %v3121
    %3478 = vmatprep.subr.bf16.mxu0 0
    %3479 = vmatpush1.bf16.msra.mxu0 %v3122
    %3480 = vmatprep.subr.bf16.mxu0 0
    %3481 = vmatpush1.bf16.msra.mxu0 %v3123
    %3482 = vmatprep.subr.bf16.mxu0 0
    %3483 = vmatpush1.bf16.msra.mxu0 %v3124
    %3484 = vmatprep.subr.bf16.mxu0 0
    %3485 = vmatpush1.bf16.msra.mxu0 %v3125
    %3486 = vmatprep.mubr.bf16.mxu0 %v2116
    %3487 = vmatmul.mubr.bf16.gmra.mrb[0].mxu0 %v2115
    %v3488 = vpop.f32.mrb[0].mxu0
    %v3489 = vadd.f32 %v3449, %v3488
    %v3490 = vpop.f32.mrb[0].mxu0
    %v3491 = vpop.f32.mrb[0].mxu0
    %v3492 = vpop.f32.mrb[0].mxu0
    %3493 = vdwg.mxu0
    %3494 = vmatprep.subr.bf16.mxu0 0
    %3495 = vmatpush1.bf16.msra.mxu0 %v3126
    %3496 = vmatprep.subr.bf16.mxu0 0
    %3497 = vmatpush1.bf16.msra.mxu0 %v3127
    %3498 = vmatprep.subr.bf16.mxu0 0
    %3499 = vmatpush1.bf16.msra.mxu0 %v3128
    %3500 = vmatprep.subr.bf16.mxu0 0
    %3501 = vmatpush1.bf16.msra.mxu0 %v3129
    %3502 = vmatprep.subr.bf16.mxu0 0
    %3503 = vmatpush1.bf16.msra.mxu0 %v3130
    %3504 = vmatprep.subr.bf16.mxu0 0
    %3505 = vmatpush1.bf16.msra.mxu0 %v3131
    %3506 = vmatprep.subr.bf16.mxu0 0
    %3507 = vmatpush1.bf16.msra.mxu0 %v3132
    %3508 = vmatprep.subr.bf16.mxu0 0
    %3509 = vmatpush1.bf16.msra.mxu0 %v3133
    %3510 = vmatprep.subr.bf16.mxu0 0
    %3511 = vmatpush1.bf16.msra.mxu0 %v3134
    %3512 = vmatprep.subr.bf16.mxu0 0
    %3513 = vmatpush1.bf16.msra.mxu0 %v3135
    %3514 = vmatprep.subr.bf16.mxu0 0
    %3515 = vmatpush1.bf16.msra.mxu0 %v3136
    %3516 = vmatprep.subr.bf16.mxu0 0
    %3517 = vmatpush1.bf16.msra.mxu0 %v3137
    %3518 = vmatprep.subr.bf16.mxu0 0
    %3519 = vmatpush1.bf16.msra.mxu0 %v3138
    %3520 = vmatprep.subr.bf16.mxu0 0
    %3521 = vmatpush1.bf16.msra.mxu0 %v3139
    %3522 = vmatprep.subr.bf16.mxu0 0
    %3523 = vmatpush1.bf16.msra.mxu0 %v3140
    %3524 = vmatprep.subr.bf16.mxu0 0
    %3525 = vmatpush1.bf16.msra.mxu0 %v3141
    %3526 = vmatprep.mubr.bf16.mxu0 %v2118
    %3527 = vmatmul.mubr.bf16.gmra.mrb[0].mxu0 %v2117
    %v3528 = vpop.f32.mrb[0].mxu0
    %v3529 = vadd.f32 %v3489, %v3528
    %v3530 = vpop.f32.mrb[0].mxu0
    %v3531 = vpop.f32.mrb[0].mxu0
    %v3532 = vpop.f32.mrb[0].mxu0
    %3533 = vdwg.mxu0
    %3534 = vmatprep.subr.bf16.mxu0 0
    %3535 = vmatpush1.bf16.msra.mxu0 %v3142
    %3536 = vmatprep.subr.bf16.mxu0 0
    %3537 = vmatpush1.bf16.msra.mxu0 %v3143
    %3538 = vmatprep.subr.bf16.mxu0 0
    %3539 = vmatpush1.bf16.msra.mxu0 %v3144
    %3540 = vmatprep.subr.bf16.mxu0 0
    %3541 = vmatpush1.bf16.msra.mxu0 %v3145
    %3542 = vmatprep.subr.bf16.mxu0 0
    %3543 = vmatpush1.bf16.msra.mxu0 %v3146
    %3544 = vmatprep.subr.bf16.mxu0 0
    %3545 = vmatpush1.bf16.msra.mxu0 %v3147
    %3546 = vmatprep.subr.bf16.mxu0 0
    %3547 = vmatpush1.bf16.msra.mxu0 %v3148
    %3548 = vmatprep.subr.bf16.mxu0 0
    %3549 = vmatpush1.bf16.msra.mxu0 %v3149
    %3550 = vmatprep.subr.bf16.mxu0 0
    %3551 = vmatpush1.bf16.msra.mxu0 %v3150
    %3552 = vmatprep.subr.bf16.mxu0 0
    %3553 = vmatpush1.bf16.msra.mxu0 %v3151
    %3554 = vmatprep.subr.bf16.mxu0 0
    %3555 = vmatpush1.bf16.msra.mxu0 %v3152
    %3556 = vmatprep.subr.bf16.mxu0 0
    %3557 = vmatpush1.bf16.msra.mxu0 %v3153
    %3558 = vmatprep.subr.bf16.mxu0 0
    %3559 = vmatpush1.bf16.msra.mxu0 %v3154
    %3560 = vmatprep.subr.bf16.mxu0 0
    %3561 = vmatpush1.bf16.msra.mxu0 %v3155
    %3562 = vmatprep.subr.bf16.mxu0 0
    %3563 = vmatpush1.bf16.msra.mxu0 %v3156
    %3564 = vmatprep.subr.bf16.mxu0 0
    %3565 = vmatpush1.bf16.msra.mxu0 %v3157
    %3566 = vmatprep.mubr.bf16.mxu0 %v2120
    %3567 = vmatmul.mubr.bf16.gmra.mrb[0].mxu0 %v2119
    %v3568 = vpop.f32.mrb[0].mxu0
    %v3569 = vadd.f32 %v3529, %v3568
    %v3570 = vpop.f32.mrb[0].mxu0
    %v3571 = vpop.f32.mrb[0].mxu0
    %v3572 = vpop.f32.mrb[0].mxu0
    %3573 = vdwg.mxu0
    %3574 = vmatprep.subr.bf16.mxu0 0
    %3575 = vmatpush1.bf16.msra.mxu0 %v3158
    %3576 = vmatprep.subr.bf16.mxu0 0
    %3577 = vmatpush1.bf16.msra.mxu0 %v3159
    %3578 = vmatprep.subr.bf16.mxu0 0
    %3579 = vmatpush1.bf16.msra.mxu0 %v3160
    %3580 = vmatprep.subr.bf16.mxu0 0
    %3581 = vmatpush1.bf16.msra.mxu0 %v3161
    %3582 = vmatprep.subr.bf16.mxu0 0
    %3583 = vmatpush1.bf16.msra.mxu0 %v3162
    %3584 = vmatprep.subr.bf16.mxu0 0
    %3585 = vmatpush1.bf16.msra.mxu0 %v3163
    %3586 = vmatprep.subr.bf16.mxu0 0
    %3587 = vmatpush1.bf16.msra.mxu0 %v3164
    %3588 = vmatprep.subr.bf16.mxu0 0
    %3589 = vmatpush1.bf16.msra.mxu0 %v3165
    %3590 = vmatprep.subr.bf16.mxu0 0
    %3591 = vmatpush1.bf16.msra.mxu0 %v3166
    %3592 = vmatprep.subr.bf16.mxu0 0
    %3593 = vmatpush1.bf16.msra.mxu0 %v3167
    %3594 = vmatprep.subr.bf16.mxu0 0
    %3595 = vmatpush1.bf16.msra.mxu0 %v3168
    %3596 = vmatprep.subr.bf16.mxu0 0
    %3597 = vmatpush1.bf16.msra.mxu0 %v3169
    %3598 = vmatprep.subr.bf16.mxu0 0
    %3599 = vmatpush1.bf16.msra.mxu0 %v3170
    %3600 = vmatprep.subr.bf16.mxu0 0
    %3601 = vmatpush1.bf16.msra.mxu0 %v3171
    %3602 = vmatprep.subr.bf16.mxu0 0
    %3603 = vmatpush1.bf16.msra.mxu0 %v3172
    %3604 = vmatprep.subr.bf16.mxu0 0
    %3605 = vmatpush1.bf16.msra.mxu0 %v3173
    %3606 = vmatprep.mubr.bf16.mxu0 %v2122
    %3607 = vmatmul.mubr.bf16.gmra.mrb[0].mxu0 %v2121
    %v3608 = vpop.f32.mrb[0].mxu0
    %v3609 = vadd.f32 %v3569, %v3608
    %v3610 = vpop.f32.mrb[0].mxu0
    %v3611 = vpop.f32.mrb[0].mxu0
    %v3612 = vpop.f32.mrb[0].mxu0
    %3613 = vdwg.mxu0
    %3614 = vmatprep.subr.bf16.mxu0 0
    %3615 = vmatpush1.bf16.msra.mxu0 %v3174
    %3616 = vmatprep.subr.bf16.mxu0 0
    %3617 = vmatpush1.bf16.msra.mxu0 %v3175
    %3618 = vmatprep.subr.bf16.mxu0 0
    %3619 = vmatpush1.bf16.msra.mxu0 %v3176
    %3620 = vmatprep.subr.bf16.mxu0 0
    %3621 = vmatpush1.bf16.msra.mxu0 %v3177
    %3622 = vmatprep.subr.bf16.mxu0 0
    %3623 = vmatpush1.bf16.msra.mxu0 %v3178
    %3624 = vmatprep.subr.bf16.mxu0 0
    %3625 = vmatpush1.bf16.msra.mxu0 %v3179
    %3626 = vmatprep.subr.bf16.mxu0 0
    %3627 = vmatpush1.bf16.msra.mxu0 %v3180
    %3628 = vmatprep.subr.bf16.mxu0 0
    %3629 = vmatpush1.bf16.msra.mxu0 %v3181
    %3630 = vmatprep.subr.bf16.mxu0 0
    %3631 = vmatpush1.bf16.msra.mxu0 %v3182
    %3632 = vmatprep.subr.bf16.mxu0 0
    %3633 = vmatpush1.bf16.msra.mxu0 %v3183
    %3634 = vmatprep.subr.bf16.mxu0 0
    %3635 = vmatpush1.bf16.msra.mxu0 %v3184
    %3636 = vmatprep.subr.bf16.mxu0 0
    %3637 = vmatpush1.bf16.msra.mxu0 %v3185
    %3638 = vmatprep.subr.bf16.mxu0 0
    %3639 = vmatpush1.bf16.msra.mxu0 %v3186
    %3640 = vmatprep.subr.bf16.mxu0 0
    %3641 = vmatpush1.bf16.msra.mxu0 %v3187
    %3642 = vmatprep.subr.bf16.mxu0 0
    %3643 = vmatpush1.bf16.msra.mxu0 %v3188
    %3644 = vmatprep.subr.bf16.mxu0 0
    %3645 = vmatpush1.bf16.msra.mxu0 %v3189
    %3646 = vmatprep.mubr.bf16.mxu0 %v2124
    %3647 = vmatmul.mubr.bf16.gmra.mrb[0].mxu0 %v2123
    %v3648 = vpop.f32.mrb[0].mxu0
    %v3649 = vadd.f32 %v3609, %v3648
    %v3650 = vpop.f32.mrb[0].mxu0
    %v3651 = vpop.f32.mrb[0].mxu0
    %v3652 = vpop.f32.mrb[0].mxu0
    %3653 = vdwg.mxu0
    %3654 = vmatprep.subr.bf16.mxu0 0
    %3655 = vmatpush1.bf16.msra.mxu0 %v3190
    %3656 = vmatprep.subr.bf16.mxu0 0
    %3657 = vmatpush1.bf16.msra.mxu0 %v3191
    %3658 = vmatprep.subr.bf16.mxu0 0
    %3659 = vmatpush1.bf16.msra.mxu0 %v3192
    %3660 = vmatprep.subr.bf16.mxu0 0
    %3661 = vmatpush1.bf16.msra.mxu0 %v3193
    %3662 = vmatprep.subr.bf16.mxu0 0
    %3663 = vmatpush1.bf16.msra.mxu0 %v3194
    %3664 = vmatprep.subr.bf16.mxu0 0
    %3665 = vmatpush1.bf16.msra.mxu0 %v3195
    %3666 = vmatprep.subr.bf16.mxu0 0
    %3667 = vmatpush1.bf16.msra.mxu0 %v3196
    %3668 = vmatprep.subr.bf16.mxu0 0
    %3669 = vmatpush1.bf16.msra.mxu0 %v3197
    %3670 = vmatprep.subr.bf16.mxu0 0
    %3671 = vmatpush1.bf16.msra.mxu0 %v3198
    %3672 = vmatprep.subr.bf16.mxu0 0
    %3673 = vmatpush1.bf16.msra.mxu0 %v3199
    %3674 = vmatprep.subr.bf16.mxu0 0
    %3675 = vmatpush1.bf16.msra.mxu0 %v3200
    %3676 = vmatprep.subr.bf16.mxu0 0
    %3677 = vmatpush1.bf16.msra.mxu0 %v3201
    %3678 = vmatprep.subr.bf16.mxu0 0
    %3679 = vmatpush1.bf16.msra.mxu0 %v3202
    %3680 = vmatprep.subr.bf16.mxu0 0
    %3681 = vmatpush1.bf16.msra.mxu0 %v3203
    %3682 = vmatprep.subr.bf16.mxu0 0
    %3683 = vmatpush1.bf16.msra.mxu0 %v3204
    %3684 = vmatprep.subr.bf16.mxu0 0
    %3685 = vmatpush1.bf16.msra.mxu0 %v3205
    %3686 = vmatprep.mubr.bf16.mxu0 %v2126
    %3687 = vmatmul.mubr.bf16.gmra.mrb[0].mxu0 %v2125
    %v3688 = vpop.f32.mrb[0].mxu0
    %v3689 = vadd.f32 %v3649, %v3688
    %v3690 = vpop.f32.mrb[0].mxu0
    %v3691 = vpop.f32.mrb[0].mxu0
    %v3692 = vpop.f32.mrb[0].mxu0
    %3693 = vdwg.mxu0
    %3694 = vmatprep.subr.bf16.mxu0 0
    %3695 = vmatpush1.bf16.msra.mxu0 %v3206
    %3696 = vmatprep.subr.bf16.mxu0 0
    %3697 = vmatpush1.bf16.msra.mxu0 %v3207
    %3698 = vmatprep.subr.bf16.mxu0 0
    %3699 = vmatpush1.bf16.msra.mxu0 %v3208
    %3700 = vmatprep.subr.bf16.mxu0 0
    %3701 = vmatpush1.bf16.msra.mxu0 %v3209
    %3702 = vmatprep.subr.bf16.mxu0 0
    %3703 = vmatpush1.bf16.msra.mxu0 %v3210
    %3704 = vmatprep.subr.bf16.mxu0 0
    %3705 = vmatpush1.bf16.msra.mxu0 %v3211
    %3706 = vmatprep.subr.bf16.mxu0 0
    %3707 = vmatpush1.bf16.msra.mxu0 %v3212
    %3708 = vmatprep.subr.bf16.mxu0 0
    %3709 = vmatpush1.bf16.msra.mxu0 %v3213
    %3710 = vmatprep.subr.bf16.mxu0 0
    %3711 = vmatpush1.bf16.msra.mxu0 %v3214
    %3712 = vmatprep.subr.bf16.mxu0 0
    %3713 = vmatpush1.bf16.msra.mxu0 %v3215
    %3714 = vmatprep.subr.bf16.mxu0 0
    %3715 = vmatpush1.bf16.msra.mxu0 %v3216
    %3716 = vmatprep.subr.bf16.mxu0 0
    %3717 = vmatpush1.bf16.msra.mxu0 %v3217
    %3718 = vmatprep.subr.bf16.mxu0 0
    %3719 = vmatpush1.bf16.msra.mxu0 %v3218
    %3720 = vmatprep.subr.bf16.mxu0 0
    %3721 = vmatpush1.bf16.msra.mxu0 %v3219
    %3722 = vmatprep.subr.bf16.mxu0 0
    %3723 = vmatpush1.bf16.msra.mxu0 %v3220
    %3724 = vmatprep.subr.bf16.mxu0 0
    %3725 = vmatpush1.bf16.msra.mxu0 %v3221
    %3726 = vmatprep.mubr.bf16.mxu0 %v2128
    %3727 = vmatmul.mubr.bf16.gmra.mrb[0].mxu0 %v2127
    %v3728 = vpop.f32.mrb[0].mxu0
    %v3729 = vadd.f32 %v3689, %v3728
    %v3730 = vpop.f32.mrb[0].mxu0
    %v3731 = vpop.f32.mrb[0].mxu0
    %v3732 = vpop.f32.mrb[0].mxu0
    %3733 = vdwg.mxu0
    %3734 = vmatprep.subr.bf16.mxu0 0
    %3735 = vmatpush1.bf16.msra.mxu0 %v3222
    %3736 = vmatprep.subr.bf16.mxu0 0
    %3737 = vmatpush1.bf16.msra.mxu0 %v3223
    %3738 = vmatprep.subr.bf16.mxu0 0
    %3739 = vmatpush1.bf16.msra.mxu0 %v3224
    %3740 = vmatprep.subr.bf16.mxu0 0
    %3741 = vmatpush1.bf16.msra.mxu0 %v3225
    %3742 = vmatprep.subr.bf16.mxu0 0
    %3743 = vmatpush1.bf16.msra.mxu0 %v3226
    %3744 = vmatprep.subr.bf16.mxu0 0
    %3745 = vmatpush1.bf16.msra.mxu0 %v3227
    %3746 = vmatprep.subr.bf16.mxu0 0
    %3747 = vmatpush1.bf16.msra.mxu0 %v3228
    %3748 = vmatprep.subr.bf16.mxu0 0
    %3749 = vmatpush1.bf16.msra.mxu0 %v3229
    %3750 = vmatprep.subr.bf16.mxu0 0
    %3751 = vmatpush1.bf16.msra.mxu0 %v3230
    %3752 = vmatprep.subr.bf16.mxu0 0
    %3753 = vmatpush1.bf16.msra.mxu0 %v3231
    %3754 = vmatprep.subr.bf16.mxu0 0
    %3755 = vmatpush1.bf16.msra.mxu0 %v3232
    %3756 = vmatprep.subr.bf16.mxu0 0
    %3757 = vmatpush1.bf16.msra.mxu0 %v3233
    %3758 = vmatprep.subr.bf16.mxu0 0
    %3759 = vmatpush1.bf16.msra.mxu0 %v3234
    %3760 = vmatprep.subr.bf16.mxu0 0
    %3761 = vmatpush1.bf16.msra.mxu0 %v3235
    %3762 = vmatprep.subr.bf16.mxu0 0
    %3763 = vmatpush1.bf16.msra.mxu0 %v3236
    %3764 = vmatprep.subr.bf16.mxu0 0
    %3765 = vmatpush1.bf16.msra.mxu0 %v3237
    %3766 = vmatprep.mubr.bf16.mxu0 %v2130
    %3767 = vmatmul.mubr.bf16.gmra.mrb[0].mxu0 %v2129
    %v3768 = vpop.f32.mrb[0].mxu0
    %v3769 = vadd.f32 %v3729, %v3768
    %v3770 = vpop.f32.mrb[0].mxu0
    %v3771 = vpop.f32.mrb[0].mxu0
    %v3772 = vpop.f32.mrb[0].mxu0
    %3773 = vdwg.mxu0
    %3774 = vmatprep.subr.bf16.mxu0 0
    %3775 = vmatpush1.bf16.msra.mxu0 %v3238
    %3776 = vmatprep.subr.bf16.mxu0 0
    %3777 = vmatpush1.bf16.msra.mxu0 %v3239
    %3778 = vmatprep.subr.bf16.mxu0 0
    %3779 = vmatpush1.bf16.msra.mxu0 %v3240
    %3780 = vmatprep.subr.bf16.mxu0 0
    %3781 = vmatpush1.bf16.msra.mxu0 %v3241
    %3782 = vmatprep.subr.bf16.mxu0 0
    %3783 = vmatpush1.bf16.msra.mxu0 %v3242
    %3784 = vmatprep.subr.bf16.mxu0 0
    %3785 = vmatpush1.bf16.msra.mxu0 %v3243
    %3786 = vmatprep.subr.bf16.mxu0 0
    %3787 = vmatpush1.bf16.msra.mxu0 %v3244
    %3788 = vmatprep.subr.bf16.mxu0 0
    %3789 = vmatpush1.bf16.msra.mxu0 %v3245
    %3790 = vmatprep.subr.bf16.mxu0 0
    %3791 = vmatpush1.bf16.msra.mxu0 %v3246
    %3792 = vmatprep.subr.bf16.mxu0 0
    %3793 = vmatpush1.bf16.msra.mxu0 %v3247
    %3794 = vmatprep.subr.bf16.mxu0 0
    %3795 = vmatpush1.bf16.msra.mxu0 %v3248
    %3796 = vmatprep.subr.bf16.mxu0 0
    %3797 = vmatpush1.bf16.msra.mxu0 %v3249
    %3798 = vmatprep.subr.bf16.mxu0 0
    %3799 = vmatpush1.bf16.msra.mxu0 %v3250
    %3800 = vmatprep.subr.bf16.mxu0 0
    %3801 = vmatpush1.bf16.msra.mxu0 %v3251
    %3802 = vmatprep.subr.bf16.mxu0 0
    %3803 = vmatpush1.bf16.msra.mxu0 %v3252
    %3804 = vmatprep.subr.bf16.mxu0 0
    %3805 = vmatpush1.bf16.msra.mxu0 %v3253
    %3806 = vmatprep.mubr.bf16.mxu0 %v2132
    %3807 = vmatmul.mubr.bf16.gmra.mrb[0].mxu0 %v2131
    %v3808 = vpop.f32.mrb[0].mxu0
    %v3809 = vadd.f32 %v3769, %v3808
    %v3810 = vpop.f32.mrb[0].mxu0
    %v3811 = vpop.f32.mrb[0].mxu0
    %v3812 = vpop.f32.mrb[0].mxu0
    %3813 = vdwg.mxu0
    %vm3814 = vcmask 1040384
    %v3815 = vsel %vm3814, %v3809, -inf
    %3816 = vmax.xlane.f32.xlu0 %v3815
    %v3817 = vpop.xlane.xlu0 %3816
    %v3818 = vsub.f32 %v3809, %v3817
    %v3819 = vmul.f32 %v3818, 1.442695
    %v3820 = vpow.pop %v3819
    %v3821 = vld [vmem:[%s2] sm:$0x1]
    %v3822 = vmul.f32 %v3820, %v3821
    %v3823 = vsel %vm3814, %v3822, 0.0
    %3824 = vadd.xlane.f32.xlu0 %v3823
    %v3825 = vpop.xlane.xlu0 %3824
    %v3826 = vrcp.pop %v3825
    %v3827 = vmul.f32 %v3822, %v3826
    %3828 = vst [vmem:[#allocation12] sm:$0x1] %v3827
    // Predicated region
    $region54: #{tpu_custom_call.1} parent=1 // pred_check
      _
    $region55: #{tpu_custom_call.1} parent=1 // pred_check_branch
      %3830 = sbr.rel (0) target = $region57
    $region56: #{tpu_custom_call.1} parent=1 // pred_region
      %s3832 = ssub.s32 16, 16
      %3833 = vsyncadd [#allocation6], %s3832
      %s3835 = sshll.u32 [#allocation12], 4
      %s3836 = int_to_ptr.vmem [resolvable:$true] %s3835
      %3838 = dma.vmem_to_hbm [thread:$0]  %s3836, 16, %s9, [#allocation6]
    $region57: #{tpu_custom_call.1} parent=1 // pred_fallthru
      _
    // Predicated region
    $region58: #{tpu_custom_call.1} parent=1 // pred_check
      _
    $region59: #{tpu_custom_call.1} parent=1 // pred_check_branch
      %3840 = sbr.rel (0) target = $region61
    $region60: #{tpu_custom_call.1} parent=1 // pred_region
      %3841 = dma.done [#allocation6], 16
    $region61: #{tpu_custom_call.1} parent=1 // pred_fallthru
      _
    %3842 = vsyncpa [#allocation5], 1
    %3843 = vsyncpa [#allocation8], 1
    %3844 = vsyncpa [#allocation11], 1
    %3845 = vsyncpa [#allocation6], 1

</llo_original>
